<compile_context>
chip_gen: v7x
topology: tpu7x:2x2x1
jax: 0.10.0
libtpu: 0.0.40
codegen_flags: <defaults>
</compile_context>

<pallas_src>
import functools

import jax
import jax.numpy as jnp
from jax import lax
from jax.experimental import pallas as pl
from jax.experimental.pallas import tpu as pltpu


# ------------------------------- Pallas kernel -------------------------------
def bidi_lstm_kernel(
    x_ref,        # (T*B, nIn)        input, flattened over time*batch
    wih_cat_ref,  # (nIn, 8*HP)       [W_ih fwd | W_ih bwd], gate-lane-padded
    b_cat_ref,    # (1,   8*HP)       [b_ih+b_hh fwd | bwd]
    whh_f_ref,    # (HP,  4*HP)       recurrent weights, forward
    whh_b_ref,    # (HP,  4*HP)       recurrent weights, backward
    wemb_f_ref,   # (HP,  nOutP)      Linear weight half acting on fwd hidden
    wemb_b_ref,   # (HP,  nOutP)      Linear weight half acting on bwd hidden
    b_emb_ref,    # (1,   nOutP)
    out_ref,      # (T*B, nOutP)
    xp_f_ref,     # scratch (T*B, 4*HP)  precomputed x-projection, forward
    xp_b_ref,     # scratch (T*B, 4*HP)  precomputed x-projection, backward
    rec_f_ref,    # scratch (T*B, HP)    forward hidden history
    rec_b_ref,    # scratch (T*B, HP)    backward hidden history
    *,
    B,
):
    TB = x_ref.shape[0]
    T = TB // B
    HP = whh_f_ref.shape[0]
    G = 4 * HP

    # ---- (1) batched input projection for BOTH directions, bias folded ------
    # One (T*B, nIn) x (nIn, 8*HP) matmul replaces 2*T tiny per-step matmuls.
    xproj = (
        jnp.dot(x_ref[...], wih_cat_ref[...], preferred_element_type=jnp.float32)
        + b_cat_ref[...]
    )
    xp_f_ref[...] = xproj[:, :G]
    xp_b_ref[...] = xproj[:, G:]

    # ---- (2) hoisted loop-invariant weight reads -----------------------------
    whh_f = whh_f_ref[...]
    whh_b = whh_b_ref[...]

    def cell(pre, h, c, whh):
        # PyTorch gate order: i, f, g, o.  Each gate is a full 128-lane tile.
        gates = pre + jnp.dot(h, whh, preferred_element_type=jnp.float32)
        i = jax.nn.sigmoid(gates[:, 0 * HP:1 * HP])
        f = jax.nn.sigmoid(gates[:, 1 * HP:2 * HP])
        g = jnp.tanh(gates[:, 2 * HP:3 * HP])
        o = jax.nn.sigmoid(gates[:, 3 * HP:4 * HP])
        c_new = f * c + i * g
        h_new = o * jnp.tanh(c_new)
        return h_new, c_new

    h_f = jnp.zeros((B, HP), jnp.float32)
    c_f = jnp.zeros((B, HP), jnp.float32)
    h_b = jnp.zeros((B, HP), jnp.float32)
    c_b = jnp.zeros((B, HP), jnp.float32)

    # ---- (3) interleaved fwd/bwd recurrence, fully unrolled (static T) ------
    # The two chains are independent; interleaving them back-to-back lets the
    # MXU/EUP latency of one direction hide under the other.
    for t in range(T):
        tb = T - 1 - t
        h_f, c_f = cell(xp_f_ref[t * B:(t + 1) * B, :], h_f, c_f, whh_f)
        h_b, c_b = cell(xp_b_ref[tb * B:(tb + 1) * B, :], h_b, c_b, whh_b)
        rec_f_ref[t * B:(t + 1) * B, :] = h_f
        rec_b_ref[tb * B:(tb + 1) * B, :] = h_b

    # ---- (4) fused output Linear over all timesteps at once -----------------
    out = (
        jnp.dot(rec_f_ref[...], wemb_f_ref[...], preferred_element_type=jnp.float32)
        + jnp.dot(rec_b_ref[...], wemb_b_ref[...], preferred_element_type=jnp.float32)
        + b_emb_ref[...]
    )
    out_ref[...] = out.astype(out_ref.dtype)


# ------------------------------- host wrapper --------------------------------
def _pad_gate_cols(w, H, HP):
    """(..., 4*H) -> (..., 4*HP): each of the 4 gate blocks zero-padded to HP."""
    pads = [(0, 0)] * (w.ndim - 1) + [(0, HP - H)]
    return jnp.concatenate(
        [jnp.pad(w[..., k * H:(k + 1) * H], pads) for k in range(4)], axis=-1
    )


@jax.jit
def bidirectional_lstm(x, params):
    T, B, nIn = x.shape
    H = params["whh_f"].shape[0]
    nOut = params["wemb_f"].shape[1]
    HP = ((H + 127) // 128) * 128        # lane-padded hidden size
    nOutP = ((nOut + 127) // 128) * 128  # lane-padded output size

    # --- build lane-dense (128-padded) parameter layout outside the kernel ---
    def pad_dir(wih, whh, b):
        wih_p = _pad_gate_cols(wih, H, HP)                               # (nIn, 4HP)
        whh_p = _pad_gate_cols(jnp.pad(whh, ((0, HP - H), (0, 0))), H, HP)  # (HP, 4HP)
        b_p = _pad_gate_cols(b, H, HP)                                   # (1, 4HP)
        return wih_p, whh_p, b_p

    wih_f, whh_f, b_f = pad_dir(params["wih_f"], params["whh_f"], params["b_f"])
    wih_b, whh_b, b_b = pad_dir(params["wih_b"], params["whh_b"], params["b_b"])
    wih_cat = jnp.concatenate([wih_f, wih_b], axis=1)                    # (nIn, 8HP)
    b_cat = jnp.concatenate([b_f, b_b], axis=1)                          # (1, 8HP)
    wemb_f = jnp.pad(params["wemb_f"], ((0, HP - H), (0, nOutP - nOut)))  # (HP, nOutP)
    wemb_b = jnp.pad(params["wemb_b"], ((0, HP - H), (0, nOutP - nOut)))
    b_emb = jnp.pad(params["b_emb"], ((0, 0), (0, nOutP - nOut)))        # (1, nOutP)

    x2d = x.reshape(T * B, nIn).astype(jnp.float32)

    flops = (
        2 * T * B * nIn * 8 * HP            # input projection (both dirs)
        + 2 * 2 * T * B * HP * 4 * HP       # recurrent matmuls (both dirs)
        + 2 * 2 * T * B * HP * nOutP        # output Linear (two halves)
    )
    transcendentals = 2 * 5 * T * B * HP    # 3 sigmoid + 2 tanh per dir per elem
    bytes_accessed = 4 * (
        x2d.size + wih_cat.size + b_cat.size + whh_f.size + whh_b.size
        + wemb_f.size + wemb_b.size + b_emb.size + T * B * nOutP
    )

    out_p = pl.pallas_call(
        functools.partial(bidi_lstm_kernel, B=B),
        out_shape=jax.ShapeDtypeStruct((T * B, nOutP), x.dtype),
        in_specs=[pl.BlockSpec(memory_space=pltpu.MemorySpace.VMEM)] * 8,
        out_specs=pl.BlockSpec(memory_space=pltpu.MemorySpace.VMEM),
        scratch_shapes=[
            pltpu.VMEM((T * B, 4 * HP), jnp.float32),  # xproj forward
            pltpu.VMEM((T * B, 4 * HP), jnp.float32),  # xproj backward
            pltpu.VMEM((T * B, HP), jnp.float32),      # forward hidden history
            pltpu.VMEM((T * B, HP), jnp.float32),      # backward hidden history
        ],
        compiler_params=pltpu.CompilerParams(
            vmem_limit_bytes=32 * 1024 * 1024),
        cost_estimate=pl.CostEstimate(
            flops=flops,
            transcendentals=transcendentals,
            bytes_accessed=bytes_accessed),
    )(x2d, wih_cat, b_cat, whh_f, whh_b, wemb_f, wemb_b, b_emb)

    # Un-pad and restore (T, B, nOut)
    return out_p[:, :nOut].reshape(T, B, nOut)


# ----------------------------- pure-JAX reference ----------------------------
def _ref_lstm_dir(x, wih, whh, bias, H, reverse):
    T, B, _ = x.shape
    h0 = jnp.zeros((B, H), jnp.float32)
    c0 = jnp.zeros((B, H), jnp.float32)
    xs = x[::-1] if reverse else x

    def step(carry, x_t):
        h, c = carry
        gates = x_t @ wih + h @ whh + bias
        i = jax.nn.sigmoid(gates[:, 0 * H:1 * H])
        f = jax.nn.sigmoid(gates[:, 1 * H:2 * H])
        g = jnp.tanh(gates[:, 2 * H:3 * H])
        o = jax.nn.sigmoid(gates[:, 3 * H:4 * H])
        c_new = f * c + i * g
        h_new = o * jnp.tanh(c_new)
        return (h_new, c_new), h_new

    _, hs = lax.scan(step, (h0, c0), xs)
    return hs[::-1] if reverse else hs


def bidirectional_lstm_ref(x, params):
    H = params["whh_f"].shape[0]
    h_f = _ref_lstm_dir(x, params["wih_f"], params["whh_f"], params["b_f"],
                        H, reverse=False)
    h_b = _ref_lstm_dir(x, params["wih_b"], params["whh_b"], params["b_b"],
                        H, reverse=True)
    return h_f @ params["wemb_f"] + h_b @ params["wemb_b"] + params["b_emb"]


# ----------------------------- parameter setup -------------------------------
def make_params(key, nIn, H, nOut):
    ks = jax.random.split(key, 11)
    scale = 1.0 / jnp.sqrt(H)
    u = lambda k, shape: jax.random.uniform(k, shape, jnp.float32, -scale, scale)
    # PyTorch stores weight_ih as (4H, nIn); we keep them pre-transposed.
    return {
        "wih_f":  u(ks[0], (nIn, 4 * H)),
        "whh_f":  u(ks[1], (H, 4 * H)),
        "b_f":    u(ks[2], (1, 4 * H)) + u(ks[3], (1, 4 * H)),   # b_ih + b_hh
        "wih_b":  u(ks[4], (nIn, 4 * H)),
        "whh_b":  u(ks[5], (H, 4 * H)),
        "b_b":    u(ks[6], (1, 4 * H)) + u(ks[7], (1, 4 * H)),
        # Linear(2H, nOut): weight (nOut, 2H) split into fwd/bwd halves,
        # stored transposed as (H, nOut) each (independent keys).
        "wemb_f": u(ks[8], (H, nOut)),
        "wemb_b": u(ks[9], (H, nOut)),
        "b_emb":  u(ks[10], (1, nOut)),
    }


if __name__ == "__main__":
    T, B, nIn, H, nOut = 8, 2, 16, 32, 16

    key = jax.random.PRNGKey(0)
    kx, kp = jax.random.split(key)
    x = jax.random.normal(kx, (T, B, nIn), jnp.float32)
    params = make_params(kp, nIn, H, nOut)

    out = jax.block_until_ready(bidirectional_lstm(x, params))
    ref = bidirectional_lstm_ref(x, params)

    assert out.shape == (T, B, nOut), out.shape
    max_err = float(jnp.max(jnp.abs(out - ref)))
    assert jnp.allclose(out, ref, rtol=1e-4, atol=2e-4), max_err
    print("KERNEL_OK")
</pallas_src>

<mosaic_0001>
module attributes {stable_mosaic.version = 11 : i64} {
  func.func @bidi_lstm_kernel(%arg0: memref<16x16xf32, #tpu.memory_space<vmem>>, %arg1: memref<16x1024xf32, #tpu.memory_space<vmem>>, %arg2: memref<1x1024xf32, #tpu.memory_space<vmem>>, %arg3: memref<128x512xf32, #tpu.memory_space<vmem>>, %arg4: memref<128x512xf32, #tpu.memory_space<vmem>>, %arg5: memref<128x128xf32, #tpu.memory_space<vmem>>, %arg6: memref<128x128xf32, #tpu.memory_space<vmem>>, %arg7: memref<1x128xf32, #tpu.memory_space<vmem>>, %arg8: memref<16x128xf32, #tpu.memory_space<vmem>>, %arg9: memref<16x512xf32, #tpu.memory_space<vmem>>, %arg10: memref<16x512xf32, #tpu.memory_space<vmem>>, %arg11: memref<16x128xf32, #tpu.memory_space<vmem>>, %arg12: memref<16x128xf32, #tpu.memory_space<vmem>>) attributes {dimension_semantics = [], scalar_prefetch = 0 : i64, scratch_operands = 4 : i64, tpu.core_type = #tpu.core_type<tc>} {
    %c0 = arith.constant 0 : index
    %c0_0 = arith.constant 0 : index
    %0 = vector.load %arg0[%c0, %c0_0] : memref<16x16xf32, #tpu.memory_space<vmem>>, vector<16x16xf32>
    %c0_1 = arith.constant 0 : index
    %c0_2 = arith.constant 0 : index
    %1 = vector.load %arg1[%c0_1, %c0_2] : memref<16x1024xf32, #tpu.memory_space<vmem>>, vector<16x1024xf32>
    %cst = arith.constant dense<0.000000e+00> : vector<16x1024xf32>
    %2 = tpu.matmul %0, %1, %cst {dimension_numbers = #tpu.dot_dimension_numbers<[1], [0], [0], [1], [0, 0, 1, 1], [], []>} : vector<16x16xf32>, vector<16x1024xf32>, vector<16x1024xf32> -> vector<16x1024xf32>
    %c0_3 = arith.constant 0 : index
    %c0_4 = arith.constant 0 : index
    %3 = vector.load %arg2[%c0_3, %c0_4] : memref<1x1024xf32, #tpu.memory_space<vmem>>, vector<1x1024xf32>
    %4 = vector.broadcast %3 : vector<1x1024xf32> to vector<16x1024xf32>
    %5 = arith.addf %2, %4 : vector<16x1024xf32>
    %6 = vector.extract_strided_slice %5 {offsets = [0, 0], sizes = [16, 512], strides = [1, 1]} : vector<16x1024xf32> to vector<16x512xf32>
    %c0_5 = arith.constant 0 : index
    %c0_6 = arith.constant 0 : index
    %7 = vector.load %arg9[%c0_5, %c0_6] : memref<16x512xf32, #tpu.memory_space<vmem>>, vector<16x512xf32>
    tpu.vector_store %arg9[%c0_5, %c0_6], %6 {strides = array<i32>} : memref<16x512xf32, #tpu.memory_space<vmem>>, vector<16x512xf32>,
    %8 = vector.extract_strided_slice %5 {offsets = [0, 512], sizes = [16, 512], strides = [1, 1]} : vector<16x1024xf32> to vector<16x512xf32>
    %c0_7 = arith.constant 0 : index
    %c0_8 = arith.constant 0 : index
    %9 = vector.load %arg10[%c0_7, %c0_8] : memref<16x512xf32, #tpu.memory_space<vmem>>, vector<16x512xf32>
    tpu.vector_store %arg10[%c0_7, %c0_8], %8 {strides = array<i32>} : memref<16x512xf32, #tpu.memory_space<vmem>>, vector<16x512xf32>,
    %c0_9 = arith.constant 0 : index
    %c0_10 = arith.constant 0 : index
    %10 = vector.load %arg3[%c0_9, %c0_10] : memref<128x512xf32, #tpu.memory_space<vmem>>, vector<128x512xf32>
    %c0_11 = arith.constant 0 : index
    %c0_12 = arith.constant 0 : index
    %11 = vector.load %arg4[%c0_11, %c0_12] : memref<128x512xf32, #tpu.memory_space<vmem>>, vector<128x512xf32>
    %cst_13 = arith.constant 0.000000e+00 : f32
    %12 = vector.broadcast %cst_13 : f32 to vector<2x128xf32>
    %cst_14 = arith.constant 0.000000e+00 : f32
    %13 = vector.broadcast %cst_14 : f32 to vector<2x128xf32>
    %cst_15 = arith.constant 0.000000e+00 : f32
    %14 = vector.broadcast %cst_15 : f32 to vector<2x128xf32>
    %cst_16 = arith.constant 0.000000e+00 : f32
    %15 = vector.broadcast %cst_16 : f32 to vector<2x128xf32>
    %c0_17 = arith.constant 0 : index
    %c0_18 = arith.constant 0 : index
    %16 = vector.load %arg9[%c0_17, %c0_18] : memref<16x512xf32, #tpu.memory_space<vmem>>, vector<2x512xf32>
    %cst_19 = arith.constant dense<0.000000e+00> : vector<2x512xf32>
    %17 = tpu.matmul %12, %10, %cst_19 {dimension_numbers = #tpu.dot_dimension_numbers<[1], [0], [0], [1], [0, 0, 1, 1], [], []>} : vector<2x128xf32>, vector<128x512xf32>, vector<2x512xf32> -> vector<2x512xf32>
    %18 = arith.addf %16, %17 : vector<2x512xf32>
    %19 = vector.extract_strided_slice %18 {offsets = [0, 0], sizes = [2, 128], strides = [1, 1]} : vector<2x512xf32> to vector<2x128xf32>
    %20 = arith.negf %19 : vector<2x128xf32>
    %21 = math.exp %20 : vector<2x128xf32>
    %cst_20 = arith.constant 1.000000e+00 : f32
    %22 = vector.broadcast %cst_20 : f32 to vector<2x128xf32>
    %23 = arith.addf %22, %21 : vector<2x128xf32>
    %24 = arith.divf %22, %23 : vector<2x128xf32>
    %25 = vector.extract_strided_slice %18 {offsets = [0, 128], sizes = [2, 128], strides = [1, 1]} : vector<2x512xf32> to vector<2x128xf32>
    %26 = arith.negf %25 : vector<2x128xf32>
    %27 = math.exp %26 : vector<2x128xf32>
    %cst_21 = arith.constant 1.000000e+00 : f32
    %28 = vector.broadcast %cst_21 : f32 to vector<2x128xf32>
    %29 = arith.addf %28, %27 : vector<2x128xf32>
    %30 = arith.divf %28, %29 : vector<2x128xf32>
    %31 = vector.extract_strided_slice %18 {offsets = [0, 256], sizes = [2, 128], strides = [1, 1]} : vector<2x512xf32> to vector<2x128xf32>
    %32 = math.tanh %31 : vector<2x128xf32>
    %33 = vector.extract_strided_slice %18 {offsets = [0, 384], sizes = [2, 128], strides = [1, 1]} : vector<2x512xf32> to vector<2x128xf32>
    %34 = arith.negf %33 : vector<2x128xf32>
    %35 = math.exp %34 : vector<2x128xf32>
    %cst_22 = arith.constant 1.000000e+00 : f32
    %36 = vector.broadcast %cst_22 : f32 to vector<2x128xf32>
    %37 = arith.addf %36, %35 : vector<2x128xf32>
    %38 = arith.divf %36, %37 : vector<2x128xf32>
    %39 = arith.mulf %30, %13 : vector<2x128xf32>
    %40 = arith.mulf %24, %32 : vector<2x128xf32>
    %41 = arith.addf %39, %40 : vector<2x128xf32>
    %42 = math.tanh %41 : vector<2x128xf32>
    %43 = arith.mulf %38, %42 : vector<2x128xf32>
    %c14 = arith.constant 14 : index
    %c0_23 = arith.constant 0 : index
    %44 = vector.load %arg10[%c14, %c0_23] : memref<16x512xf32, #tpu.memory_space<vmem>>, vector<2x512xf32>
    %cst_24 = arith.constant dense<0.000000e+00> : vector<2x512xf32>
    %45 = tpu.matmul %14, %11, %cst_24 {dimension_numbers = #tpu.dot_dimension_numbers<[1], [0], [0], [1], [0, 0, 1, 1], [], []>} : vector<2x128xf32>, vector<128x512xf32>, vector<2x512xf32> -> vector<2x512xf32>
    %46 = arith.addf %44, %45 : vector<2x512xf32>
    %47 = vector.extract_strided_slice %46 {offsets = [0, 0], sizes = [2, 128], strides = [1, 1]} : vector<2x512xf32> to vector<2x128xf32>
    %48 = arith.negf %47 : vector<2x128xf32>
    %49 = math.exp %48 : vector<2x128xf32>
    %cst_25 = arith.constant 1.000000e+00 : f32
    %50 = vector.broadcast %cst_25 : f32 to vector<2x128xf32>
    %51 = arith.addf %50, %49 : vector<2x128xf32>
    %52 = arith.divf %50, %51 : vector<2x128xf32>
    %53 = vector.extract_strided_slice %46 {offsets = [0, 128], sizes = [2, 128], strides = [1, 1]} : vector<2x512xf32> to vector<2x128xf32>
    %54 = arith.negf %53 : vector<2x128xf32>
    %55 = math.exp %54 : vector<2x128xf32>
    %cst_26 = arith.constant 1.000000e+00 : f32
    %56 = vector.broadcast %cst_26 : f32 to vector<2x128xf32>
    %57 = arith.addf %56, %55 : vector<2x128xf32>
    %58 = arith.divf %56, %57 : vector<2x128xf32>
    %59 = vector.extract_strided_slice %46 {offsets = [0, 256], sizes = [2, 128], strides = [1, 1]} : vector<2x512xf32> to vector<2x128xf32>
    %60 = math.tanh %59 : vector<2x128xf32>
    %61 = vector.extract_strided_slice %46 {offsets = [0, 384], sizes = [2, 128], strides = [1, 1]} : vector<2x512xf32> to vector<2x128xf32>
    %62 = arith.negf %61 : vector<2x128xf32>
    %63 = math.exp %62 : vector<2x128xf32>
    %cst_27 = arith.constant 1.000000e+00 : f32
    %64 = vector.broadcast %cst_27 : f32 to vector<2x128xf32>
    %65 = arith.addf %64, %63 : vector<2x128xf32>
    %66 = arith.divf %64, %65 : vector<2x128xf32>
    %67 = arith.mulf %58, %15 : vector<2x128xf32>
    %68 = arith.mulf %52, %60 : vector<2x128xf32>
    %69 = arith.addf %67, %68 : vector<2x128xf32>
    %70 = math.tanh %69 : vector<2x128xf32>
    %71 = arith.mulf %66, %70 : vector<2x128xf32>
    %c0_28 = arith.constant 0 : index
    %c0_29 = arith.constant 0 : index
    %72 = vector.load %arg11[%c0_28, %c0_29] : memref<16x128xf32, #tpu.memory_space<vmem>>, vector<2x128xf32>
    tpu.vector_store %arg11[%c0_28, %c0_29], %43 {strides = array<i32>} : memref<16x128xf32, #tpu.memory_space<vmem>>, vector<2x128xf32>,
    %c14_30 = arith.constant 14 : index
    %c0_31 = arith.constant 0 : index
    %73 = vector.load %arg12[%c14_30, %c0_31] : memref<16x128xf32, #tpu.memory_space<vmem>>, vector<2x128xf32>
    tpu.vector_store %arg12[%c14_30, %c0_31], %71 {strides = array<i32>} : memref<16x128xf32, #tpu.memory_space<vmem>>, vector<2x128xf32>,
    %c2 = arith.constant 2 : index
    %c0_32 = arith.constant 0 : index
    %74 = vector.load %arg9[%c2, %c0_32] : memref<16x512xf32, #tpu.memory_space<vmem>>, vector<2x512xf32>
    %cst_33 = arith.constant dense<0.000000e+00> : vector<2x512xf32>
    %75 = tpu.matmul %43, %10, %cst_33 {dimension_numbers = #tpu.dot_dimension_numbers<[1], [0], [0], [1], [0, 0, 1, 1], [], []>} : vector<2x128xf32>, vector<128x512xf32>, vector<2x512xf32> -> vector<2x512xf32>
    %76 = arith.addf %74, %75 : vector<2x512xf32>
    %77 = vector.extract_strided_slice %76 {offsets = [0, 0], sizes = [2, 128], strides = [1, 1]} : vector<2x512xf32> to vector<2x128xf32>
    %78 = arith.negf %77 : vector<2x128xf32>
    %79 = math.exp %78 : vector<2x128xf32>
    %cst_34 = arith.constant 1.000000e+00 : f32
    %80 = vector.broadcast %cst_34 : f32 to vector<2x128xf32>
    %81 = arith.addf %80, %79 : vector<2x128xf32>
    %82 = arith.divf %80, %81 : vector<2x128xf32>
    %83 = vector.extract_strided_slice %76 {offsets = [0, 128], sizes = [2, 128], strides = [1, 1]} : vector<2x512xf32> to vector<2x128xf32>
    %84 = arith.negf %83 : vector<2x128xf32>
    %85 = math.exp %84 : vector<2x128xf32>
    %cst_35 = arith.constant 1.000000e+00 : f32
    %86 = vector.broadcast %cst_35 : f32 to vector<2x128xf32>
    %87 = arith.addf %86, %85 : vector<2x128xf32>
    %88 = arith.divf %86, %87 : vector<2x128xf32>
    %89 = vector.extract_strided_slice %76 {offsets = [0, 256], sizes = [2, 128], strides = [1, 1]} : vector<2x512xf32> to vector<2x128xf32>
    %90 = math.tanh %89 : vector<2x128xf32>
    %91 = vector.extract_strided_slice %76 {offsets = [0, 384], sizes = [2, 128], strides = [1, 1]} : vector<2x512xf32> to vector<2x128xf32>
    %92 = arith.negf %91 : vector<2x128xf32>
    %93 = math.exp %92 : vector<2x128xf32>
    %cst_36 = arith.constant 1.000000e+00 : f32
    %94 = vector.broadcast %cst_36 : f32 to vector<2x128xf32>
    %95 = arith.addf %94, %93 : vector<2x128xf32>
    %96 = arith.divf %94, %95 : vector<2x128xf32>
    %97 = arith.mulf %88, %41 : vector<2x128xf32>
    %98 = arith.mulf %82, %90 : vector<2x128xf32>
    %99 = arith.addf %97, %98 : vector<2x128xf32>
    %100 = math.tanh %99 : vector<2x128xf32>
    %101 = arith.mulf %96, %100 : vector<2x128xf32>
    %c12 = arith.constant 12 : index
    %c0_37 = arith.constant 0 : index
    %102 = vector.load %arg10[%c12, %c0_37] : memref<16x512xf32, #tpu.memory_space<vmem>>, vector<2x512xf32>
    %cst_38 = arith.constant dense<0.000000e+00> : vector<2x512xf32>
    %103 = tpu.matmul %71, %11, %cst_38 {dimension_numbers = #tpu.dot_dimension_numbers<[1], [0], [0], [1], [0, 0, 1, 1], [], []>} : vector<2x128xf32>, vector<128x512xf32>, vector<2x512xf32> -> vector<2x512xf32>
    %104 = arith.addf %102, %103 : vector<2x512xf32>
    %105 = vector.extract_strided_slice %104 {offsets = [0, 0], sizes = [2, 128], strides = [1, 1]} : vector<2x512xf32> to vector<2x128xf32>
    %106 = arith.negf %105 : vector<2x128xf32>
    %107 = math.exp %106 : vector<2x128xf32>
    %cst_39 = arith.constant 1.000000e+00 : f32
    %108 = vector.broadcast %cst_39 : f32 to vector<2x128xf32>
    %109 = arith.addf %108, %107 : vector<2x128xf32>
    %110 = arith.divf %108, %109 : vector<2x128xf32>
    %111 = vector.extract_strided_slice %104 {offsets = [0, 128], sizes = [2, 128], strides = [1, 1]} : vector<2x512xf32> to vector<2x128xf32>
    %112 = arith.negf %111 : vector<2x128xf32>
    %113 = math.exp %112 : vector<2x128xf32>
    %cst_40 = arith.constant 1.000000e+00 : f32
    %114 = vector.broadcast %cst_40 : f32 to vector<2x128xf32>
    %115 = arith.addf %114, %113 : vector<2x128xf32>
    %116 = arith.divf %114, %115 : vector<2x128xf32>
    %117 = vector.extract_strided_slice %104 {offsets = [0, 256], sizes = [2, 128], strides = [1, 1]} : vector<2x512xf32> to vector<2x128xf32>
    %118 = math.tanh %117 : vector<2x128xf32>
    %119 = vector.extract_strided_slice %104 {offsets = [0, 384], sizes = [2, 128], strides = [1, 1]} : vector<2x512xf32> to vector<2x128xf32>
    %120 = arith.negf %119 : vector<2x128xf32>
    %121 = math.exp %120 : vector<2x128xf32>
    %cst_41 = arith.constant 1.000000e+00 : f32
    %122 = vector.broadcast %cst_41 : f32 to vector<2x128xf32>
    %123 = arith.addf %122, %121 : vector<2x128xf32>
    %124 = arith.divf %122, %123 : vector<2x128xf32>
    %125 = arith.mulf %116, %69 : vector<2x128xf32>
    %126 = arith.mulf %110, %118 : vector<2x128xf32>
    %127 = arith.addf %125, %126 : vector<2x128xf32>
    %128 = math.tanh %127 : vector<2x128xf32>
    %129 = arith.mulf %124, %128 : vector<2x128xf32>
    %c2_42 = arith.constant 2 : index
    %c0_43 = arith.constant 0 : index
    %130 = vector.load %arg11[%c2_42, %c0_43] : memref<16x128xf32, #tpu.memory_space<vmem>>, vector<2x128xf32>
    tpu.vector_store %arg11[%c2_42, %c0_43], %101 {strides = array<i32>} : memref<16x128xf32, #tpu.memory_space<vmem>>, vector<2x128xf32>,
    %c12_44 = arith.constant 12 : index
    %c0_45 = arith.constant 0 : index
    %131 = vector.load %arg12[%c12_44, %c0_45] : memref<16x128xf32, #tpu.memory_space<vmem>>, vector<2x128xf32>
    tpu.vector_store %arg12[%c12_44, %c0_45], %129 {strides = array<i32>} : memref<16x128xf32, #tpu.memory_space<vmem>>, vector<2x128xf32>,
    %c4 = arith.constant 4 : index
    %c0_46 = arith.constant 0 : index
    %132 = vector.load %arg9[%c4, %c0_46] : memref<16x512xf32, #tpu.memory_space<vmem>>, vector<2x512xf32>
    %cst_47 = arith.constant dense<0.000000e+00> : vector<2x512xf32>
    %133 = tpu.matmul %101, %10, %cst_47 {dimension_numbers = #tpu.dot_dimension_numbers<[1], [0], [0], [1], [0, 0, 1, 1], [], []>} : vector<2x128xf32>, vector<128x512xf32>, vector<2x512xf32> -> vector<2x512xf32>
    %134 = arith.addf %132, %133 : vector<2x512xf32>
    %135 = vector.extract_strided_slice %134 {offsets = [0, 0], sizes = [2, 128], strides = [1, 1]} : vector<2x512xf32> to vector<2x128xf32>
    %136 = arith.negf %135 : vector<2x128xf32>
    %137 = math.exp %136 : vector<2x128xf32>
    %cst_48 = arith.constant 1.000000e+00 : f32
    %138 = vector.broadcast %cst_48 : f32 to vector<2x128xf32>
    %139 = arith.addf %138, %137 : vector<2x128xf32>
    %140 = arith.divf %138, %139 : vector<2x128xf32>
    %141 = vector.extract_strided_slice %134 {offsets = [0, 128], sizes = [2, 128], strides = [1, 1]} : vector<2x512xf32> to vector<2x128xf32>
    %142 = arith.negf %141 : vector<2x128xf32>
    %143 = math.exp %142 : vector<2x128xf32>
    %cst_49 = arith.constant 1.000000e+00 : f32
    %144 = vector.broadcast %cst_49 : f32 to vector<2x128xf32>
    %145 = arith.addf %144, %143 : vector<2x128xf32>
    %146 = arith.divf %144, %145 : vector<2x128xf32>
    %147 = vector.extract_strided_slice %134 {offsets = [0, 256], sizes = [2, 128], strides = [1, 1]} : vector<2x512xf32> to vector<2x128xf32>
    %148 = math.tanh %147 : vector<2x128xf32>
    %149 = vector.extract_strided_slice %134 {offsets = [0, 384], sizes = [2, 128], strides = [1, 1]} : vector<2x512xf32> to vector<2x128xf32>
    %150 = arith.negf %149 : vector<2x128xf32>
    %151 = math.exp %150 : vector<2x128xf32>
    %cst_50 = arith.constant 1.000000e+00 : f32
    %152 = vector.broadcast %cst_50 : f32 to vector<2x128xf32>
    %153 = arith.addf %152, %151 : vector<2x128xf32>
    %154 = arith.divf %152, %153 : vector<2x128xf32>
    %155 = arith.mulf %146, %99 : vector<2x128xf32>
    %156 = arith.mulf %140, %148 : vector<2x128xf32>
    %157 = arith.addf %155, %156 : vector<2x128xf32>
    %158 = math.tanh %157 : vector<2x128xf32>
    %159 = arith.mulf %154, %158 : vector<2x128xf32>
    %c10 = arith.constant 10 : index
    %c0_51 = arith.constant 0 : index
    %160 = vector.load %arg10[%c10, %c0_51] : memref<16x512xf32, #tpu.memory_space<vmem>>, vector<2x512xf32>
    %cst_52 = arith.constant dense<0.000000e+00> : vector<2x512xf32>
    %161 = tpu.matmul %129, %11, %cst_52 {dimension_numbers = #tpu.dot_dimension_numbers<[1], [0], [0], [1], [0, 0, 1, 1], [], []>} : vector<2x128xf32>, vector<128x512xf32>, vector<2x512xf32> -> vector<2x512xf32>
    %162 = arith.addf %160, %161 : vector<2x512xf32>
    %163 = vector.extract_strided_slice %162 {offsets = [0, 0], sizes = [2, 128], strides = [1, 1]} : vector<2x512xf32> to vector<2x128xf32>
    %164 = arith.negf %163 : vector<2x128xf32>
    %165 = math.exp %164 : vector<2x128xf32>
    %cst_53 = arith.constant 1.000000e+00 : f32
    %166 = vector.broadcast %cst_53 : f32 to vector<2x128xf32>
    %167 = arith.addf %166, %165 : vector<2x128xf32>
    %168 = arith.divf %166, %167 : vector<2x128xf32>
    %169 = vector.extract_strided_slice %162 {offsets = [0, 128], sizes = [2, 128], strides = [1, 1]} : vector<2x512xf32> to vector<2x128xf32>
    %170 = arith.negf %169 : vector<2x128xf32>
    %171 = math.exp %170 : vector<2x128xf32>
    %cst_54 = arith.constant 1.000000e+00 : f32
    %172 = vector.broadcast %cst_54 : f32 to vector<2x128xf32>
    %173 = arith.addf %172, %171 : vector<2x128xf32>
    %174 = arith.divf %172, %173 : vector<2x128xf32>
    %175 = vector.extract_strided_slice %162 {offsets = [0, 256], sizes = [2, 128], strides = [1, 1]} : vector<2x512xf32> to vector<2x128xf32>
    %176 = math.tanh %175 : vector<2x128xf32>
    %177 = vector.extract_strided_slice %162 {offsets = [0, 384], sizes = [2, 128], strides = [1, 1]} : vector<2x512xf32> to vector<2x128xf32>
    %178 = arith.negf %177 : vector<2x128xf32>
    %179 = math.exp %178 : vector<2x128xf32>
    %cst_55 = arith.constant 1.000000e+00 : f32
    %180 = vector.broadcast %cst_55 : f32 to vector<2x128xf32>
    %181 = arith.addf %180, %179 : vector<2x128xf32>
    %182 = arith.divf %180, %181 : vector<2x128xf32>
    %183 = arith.mulf %174, %127 : vector<2x128xf32>
    %184 = arith.mulf %168, %176 : vector<2x128xf32>
    %185 = arith.addf %183, %184 : vector<2x128xf32>
    %186 = math.tanh %185 : vector<2x128xf32>
    %187 = arith.mulf %182, %186 : vector<2x128xf32>
    %c4_56 = arith.constant 4 : index
    %c0_57 = arith.constant 0 : index
    %188 = vector.load %arg11[%c4_56, %c0_57] : memref<16x128xf32, #tpu.memory_space<vmem>>, vector<2x128xf32>
    tpu.vector_store %arg11[%c4_56, %c0_57], %159 {strides = array<i32>} : memref<16x128xf32, #tpu.memory_space<vmem>>, vector<2x128xf32>,
    %c10_58 = arith.constant 10 : index
    %c0_59 = arith.constant 0 : index
    %189 = vector.load %arg12[%c10_58, %c0_59] : memref<16x128xf32, #tpu.memory_space<vmem>>, vector<2x128xf32>
    tpu.vector_store %arg12[%c10_58, %c0_59], %187 {strides = array<i32>} : memref<16x128xf32, #tpu.memory_space<vmem>>, vector<2x128xf32>,
    %c6 = arith.constant 6 : index
    %c0_60 = arith.constant 0 : index
    %190 = vector.load %arg9[%c6, %c0_60] : memref<16x512xf32, #tpu.memory_space<vmem>>, vector<2x512xf32>
    %cst_61 = arith.constant dense<0.000000e+00> : vector<2x512xf32>
    %191 = tpu.matmul %159, %10, %cst_61 {dimension_numbers = #tpu.dot_dimension_numbers<[1], [0], [0], [1], [0, 0, 1, 1], [], []>} : vector<2x128xf32>, vector<128x512xf32>, vector<2x512xf32> -> vector<2x512xf32>
    %192 = arith.addf %190, %191 : vector<2x512xf32>
    %193 = vector.extract_strided_slice %192 {offsets = [0, 0], sizes = [2, 128], strides = [1, 1]} : vector<2x512xf32> to vector<2x128xf32>
    %194 = arith.negf %193 : vector<2x128xf32>
    %195 = math.exp %194 : vector<2x128xf32>
    %cst_62 = arith.constant 1.000000e+00 : f32
    %196 = vector.broadcast %cst_62 : f32 to vector<2x128xf32>
    %197 = arith.addf %196, %195 : vector<2x128xf32>
    %198 = arith.divf %196, %197 : vector<2x128xf32>
    %199 = vector.extract_strided_slice %192 {offsets = [0, 128], sizes = [2, 128], strides = [1, 1]} : vector<2x512xf32> to vector<2x128xf32>
    %200 = arith.negf %199 : vector<2x128xf32>
    %201 = math.exp %200 : vector<2x128xf32>
    %cst_63 = arith.constant 1.000000e+00 : f32
    %202 = vector.broadcast %cst_63 : f32 to vector<2x128xf32>
    %203 = arith.addf %202, %201 : vector<2x128xf32>
    %204 = arith.divf %202, %203 : vector<2x128xf32>
    %205 = vector.extract_strided_slice %192 {offsets = [0, 256], sizes = [2, 128], strides = [1, 1]} : vector<2x512xf32> to vector<2x128xf32>
    %206 = math.tanh %205 : vector<2x128xf32>
    %207 = vector.extract_strided_slice %192 {offsets = [0, 384], sizes = [2, 128], strides = [1, 1]} : vector<2x512xf32> to vector<2x128xf32>
    %208 = arith.negf %207 : vector<2x128xf32>
    %209 = math.exp %208 : vector<2x128xf32>
    %cst_64 = arith.constant 1.000000e+00 : f32
    %210 = vector.broadcast %cst_64 : f32 to vector<2x128xf32>
    %211 = arith.addf %210, %209 : vector<2x128xf32>
    %212 = arith.divf %210, %211 : vector<2x128xf32>
    %213 = arith.mulf %204, %157 : vector<2x128xf32>
    %214 = arith.mulf %198, %206 : vector<2x128xf32>
    %215 = arith.addf %213, %214 : vector<2x128xf32>
    %216 = math.tanh %215 : vector<2x128xf32>
    %217 = arith.mulf %212, %216 : vector<2x128xf32>
    %c8 = arith.constant 8 : index
    %c0_65 = arith.constant 0 : index
    %218 = vector.load %arg10[%c8, %c0_65] : memref<16x512xf32, #tpu.memory_space<vmem>>, vector<2x512xf32>
    %cst_66 = arith.constant dense<0.000000e+00> : vector<2x512xf32>
    %219 = tpu.matmul %187, %11, %cst_66 {dimension_numbers = #tpu.dot_dimension_numbers<[1], [0], [0], [1], [0, 0, 1, 1], [], []>} : vector<2x128xf32>, vector<128x512xf32>, vector<2x512xf32> -> vector<2x512xf32>
    %220 = arith.addf %218, %219 : vector<2x512xf32>
    %221 = vector.extract_strided_slice %220 {offsets = [0, 0], sizes = [2, 128], strides = [1, 1]} : vector<2x512xf32> to vector<2x128xf32>
    %222 = arith.negf %221 : vector<2x128xf32>
    %223 = math.exp %222 : vector<2x128xf32>
    %cst_67 = arith.constant 1.000000e+00 : f32
    %224 = vector.broadcast %cst_67 : f32 to vector<2x128xf32>
    %225 = arith.addf %224, %223 : vector<2x128xf32>
    %226 = arith.divf %224, %225 : vector<2x128xf32>
    %227 = vector.extract_strided_slice %220 {offsets = [0, 128], sizes = [2, 128], strides = [1, 1]} : vector<2x512xf32> to vector<2x128xf32>
    %228 = arith.negf %227 : vector<2x128xf32>
    %229 = math.exp %228 : vector<2x128xf32>
    %cst_68 = arith.constant 1.000000e+00 : f32
    %230 = vector.broadcast %cst_68 : f32 to vector<2x128xf32>
    %231 = arith.addf %230, %229 : vector<2x128xf32>
    %232 = arith.divf %230, %231 : vector<2x128xf32>
    %233 = vector.extract_strided_slice %220 {offsets = [0, 256], sizes = [2, 128], strides = [1, 1]} : vector<2x512xf32> to vector<2x128xf32>
    %234 = math.tanh %233 : vector<2x128xf32>
    %235 = vector.extract_strided_slice %220 {offsets = [0, 384], sizes = [2, 128], strides = [1, 1]} : vector<2x512xf32> to vector<2x128xf32>
    %236 = arith.negf %235 : vector<2x128xf32>
    %237 = math.exp %236 : vector<2x128xf32>
    %cst_69 = arith.constant 1.000000e+00 : f32
    %238 = vector.broadcast %cst_69 : f32 to vector<2x128xf32>
    %239 = arith.addf %238, %237 : vector<2x128xf32>
    %240 = arith.divf %238, %239 : vector<2x128xf32>
    %241 = arith.mulf %232, %185 : vector<2x128xf32>
    %242 = arith.mulf %226, %234 : vector<2x128xf32>
    %243 = arith.addf %241, %242 : vector<2x128xf32>
    %244 = math.tanh %243 : vector<2x128xf32>
    %245 = arith.mulf %240, %244 : vector<2x128xf32>
    %c6_70 = arith.constant 6 : index
    %c0_71 = arith.constant 0 : index
    %246 = vector.load %arg11[%c6_70, %c0_71] : memref<16x128xf32, #tpu.memory_space<vmem>>, vector<2x128xf32>
    tpu.vector_store %arg11[%c6_70, %c0_71], %217 {strides = array<i32>} : memref<16x128xf32, #tpu.memory_space<vmem>>, vector<2x128xf32>,
    %c8_72 = arith.constant 8 : index
    %c0_73 = arith.constant 0 : index
    %247 = vector.load %arg12[%c8_72, %c0_73] : memref<16x128xf32, #tpu.memory_space<vmem>>, vector<2x128xf32>
    tpu.vector_store %arg12[%c8_72, %c0_73], %245 {strides = array<i32>} : memref<16x128xf32, #tpu.memory_space<vmem>>, vector<2x128xf32>,
    %c8_74 = arith.constant 8 : index
    %c0_75 = arith.constant 0 : index
    %248 = vector.load %arg9[%c8_74, %c0_75] : memref<16x512xf32, #tpu.memory_space<vmem>>, vector<2x512xf32>
    %cst_76 = arith.constant dense<0.000000e+00> : vector<2x512xf32>
    %249 = tpu.matmul %217, %10, %cst_76 {dimension_numbers = #tpu.dot_dimension_numbers<[1], [0], [0], [1], [0, 0, 1, 1], [], []>} : vector<2x128xf32>, vector<128x512xf32>, vector<2x512xf32> -> vector<2x512xf32>
    %250 = arith.addf %248, %249 : vector<2x512xf32>
    %251 = vector.extract_strided_slice %250 {offsets = [0, 0], sizes = [2, 128], strides = [1, 1]} : vector<2x512xf32> to vector<2x128xf32>
    %252 = arith.negf %251 : vector<2x128xf32>
    %253 = math.exp %252 : vector<2x128xf32>
    %cst_77 = arith.constant 1.000000e+00 : f32
    %254 = vector.broadcast %cst_77 : f32 to vector<2x128xf32>
    %255 = arith.addf %254, %253 : vector<2x128xf32>
    %256 = arith.divf %254, %255 : vector<2x128xf32>
    %257 = vector.extract_strided_slice %250 {offsets = [0, 128], sizes = [2, 128], strides = [1, 1]} : vector<2x512xf32> to vector<2x128xf32>
    %258 = arith.negf %257 : vector<2x128xf32>
    %259 = math.exp %258 : vector<2x128xf32>
    %cst_78 = arith.constant 1.000000e+00 : f32
    %260 = vector.broadcast %cst_78 : f32 to vector<2x128xf32>
    %261 = arith.addf %260, %259 : vector<2x128xf32>
    %262 = arith.divf %260, %261 : vector<2x128xf32>
    %263 = vector.extract_strided_slice %250 {offsets = [0, 256], sizes = [2, 128], strides = [1, 1]} : vector<2x512xf32> to vector<2x128xf32>
    %264 = math.tanh %263 : vector<2x128xf32>
    %265 = vector.extract_strided_slice %250 {offsets = [0, 384], sizes = [2, 128], strides = [1, 1]} : vector<2x512xf32> to vector<2x128xf32>
    %266 = arith.negf %265 : vector<2x128xf32>
    %267 = math.exp %266 : vector<2x128xf32>
    %cst_79 = arith.constant 1.000000e+00 : f32
    %268 = vector.broadcast %cst_79 : f32 to vector<2x128xf32>
    %269 = arith.addf %268, %267 : vector<2x128xf32>
    %270 = arith.divf %268, %269 : vector<2x128xf32>
    %271 = arith.mulf %262, %215 : vector<2x128xf32>
    %272 = arith.mulf %256, %264 : vector<2x128xf32>
    %273 = arith.addf %271, %272 : vector<2x128xf32>
    %274 = math.tanh %273 : vector<2x128xf32>
    %275 = arith.mulf %270, %274 : vector<2x128xf32>
    %c6_80 = arith.constant 6 : index
    %c0_81 = arith.constant 0 : index
    %276 = vector.load %arg10[%c6_80, %c0_81] : memref<16x512xf32, #tpu.memory_space<vmem>>, vector<2x512xf32>
    %cst_82 = arith.constant dense<0.000000e+00> : vector<2x512xf32>
    %277 = tpu.matmul %245, %11, %cst_82 {dimension_numbers = #tpu.dot_dimension_numbers<[1], [0], [0], [1], [0, 0, 1, 1], [], []>} : vector<2x128xf32>, vector<128x512xf32>, vector<2x512xf32> -> vector<2x512xf32>
    %278 = arith.addf %276, %277 : vector<2x512xf32>
    %279 = vector.extract_strided_slice %278 {offsets = [0, 0], sizes = [2, 128], strides = [1, 1]} : vector<2x512xf32> to vector<2x128xf32>
    %280 = arith.negf %279 : vector<2x128xf32>
    %281 = math.exp %280 : vector<2x128xf32>
    %cst_83 = arith.constant 1.000000e+00 : f32
    %282 = vector.broadcast %cst_83 : f32 to vector<2x128xf32>
    %283 = arith.addf %282, %281 : vector<2x128xf32>
    %284 = arith.divf %282, %283 : vector<2x128xf32>
    %285 = vector.extract_strided_slice %278 {offsets = [0, 128], sizes = [2, 128], strides = [1, 1]} : vector<2x512xf32> to vector<2x128xf32>
    %286 = arith.negf %285 : vector<2x128xf32>
    %287 = math.exp %286 : vector<2x128xf32>
    %cst_84 = arith.constant 1.000000e+00 : f32
    %288 = vector.broadcast %cst_84 : f32 to vector<2x128xf32>
    %289 = arith.addf %288, %287 : vector<2x128xf32>
    %290 = arith.divf %288, %289 : vector<2x128xf32>
    %291 = vector.extract_strided_slice %278 {offsets = [0, 256], sizes = [2, 128], strides = [1, 1]} : vector<2x512xf32> to vector<2x128xf32>
    %292 = math.tanh %291 : vector<2x128xf32>
    %293 = vector.extract_strided_slice %278 {offsets = [0, 384], sizes = [2, 128], strides = [1, 1]} : vector<2x512xf32> to vector<2x128xf32>
    %294 = arith.negf %293 : vector<2x128xf32>
    %295 = math.exp %294 : vector<2x128xf32>
    %cst_85 = arith.constant 1.000000e+00 : f32
    %296 = vector.broadcast %cst_85 : f32 to vector<2x128xf32>
    %297 = arith.addf %296, %295 : vector<2x128xf32>
    %298 = arith.divf %296, %297 : vector<2x128xf32>
    %299 = arith.mulf %290, %243 : vector<2x128xf32>
    %300 = arith.mulf %284, %292 : vector<2x128xf32>
    %301 = arith.addf %299, %300 : vector<2x128xf32>
    %302 = math.tanh %301 : vector<2x128xf32>
    %303 = arith.mulf %298, %302 : vector<2x128xf32>
    %c8_86 = arith.constant 8 : index
    %c0_87 = arith.constant 0 : index
    %304 = vector.load %arg11[%c8_86, %c0_87] : memref<16x128xf32, #tpu.memory_space<vmem>>, vector<2x128xf32>
    tpu.vector_store %arg11[%c8_86, %c0_87], %275 {strides = array<i32>} : memref<16x128xf32, #tpu.memory_space<vmem>>, vector<2x128xf32>,
    %c6_88 = arith.constant 6 : index
    %c0_89 = arith.constant 0 : index
    %305 = vector.load %arg12[%c6_88, %c0_89] : memref<16x128xf32, #tpu.memory_space<vmem>>, vector<2x128xf32>
    tpu.vector_store %arg12[%c6_88, %c0_89], %303 {strides = array<i32>} : memref<16x128xf32, #tpu.memory_space<vmem>>, vector<2x128xf32>,
    %c10_90 = arith.constant 10 : index
    %c0_91 = arith.constant 0 : index
    %306 = vector.load %arg9[%c10_90, %c0_91] : memref<16x512xf32, #tpu.memory_space<vmem>>, vector<2x512xf32>
    %cst_92 = arith.constant dense<0.000000e+00> : vector<2x512xf32>
    %307 = tpu.matmul %275, %10, %cst_92 {dimension_numbers = #tpu.dot_dimension_numbers<[1], [0], [0], [1], [0, 0, 1, 1], [], []>} : vector<2x128xf32>, vector<128x512xf32>, vector<2x512xf32> -> vector<2x512xf32>
    %308 = arith.addf %306, %307 : vector<2x512xf32>
    %309 = vector.extract_strided_slice %308 {offsets = [0, 0], sizes = [2, 128], strides = [1, 1]} : vector<2x512xf32> to vector<2x128xf32>
    %310 = arith.negf %309 : vector<2x128xf32>
    %311 = math.exp %310 : vector<2x128xf32>
    %cst_93 = arith.constant 1.000000e+00 : f32
    %312 = vector.broadcast %cst_93 : f32 to vector<2x128xf32>
    %313 = arith.addf %312, %311 : vector<2x128xf32>
    %314 = arith.divf %312, %313 : vector<2x128xf32>
    %315 = vector.extract_strided_slice %308 {offsets = [0, 128], sizes = [2, 128], strides = [1, 1]} : vector<2x512xf32> to vector<2x128xf32>
    %316 = arith.negf %315 : vector<2x128xf32>
    %317 = math.exp %316 : vector<2x128xf32>
    %cst_94 = arith.constant 1.000000e+00 : f32
    %318 = vector.broadcast %cst_94 : f32 to vector<2x128xf32>
    %319 = arith.addf %318, %317 : vector<2x128xf32>
    %320 = arith.divf %318, %319 : vector<2x128xf32>
    %321 = vector.extract_strided_slice %308 {offsets = [0, 256], sizes = [2, 128], strides = [1, 1]} : vector<2x512xf32> to vector<2x128xf32>
    %322 = math.tanh %321 : vector<2x128xf32>
    %323 = vector.extract_strided_slice %308 {offsets = [0, 384], sizes = [2, 128], strides = [1, 1]} : vector<2x512xf32> to vector<2x128xf32>
    %324 = arith.negf %323 : vector<2x128xf32>
    %325 = math.exp %324 : vector<2x128xf32>
    %cst_95 = arith.constant 1.000000e+00 : f32
    %326 = vector.broadcast %cst_95 : f32 to vector<2x128xf32>
    %327 = arith.addf %326, %325 : vector<2x128xf32>
    %328 = arith.divf %326, %327 : vector<2x128xf32>
    %329 = arith.mulf %320, %273 : vector<2x128xf32>
    %330 = arith.mulf %314, %322 : vector<2x128xf32>
    %331 = arith.addf %329, %330 : vector<2x128xf32>
    %332 = math.tanh %331 : vector<2x128xf32>
    %333 = arith.mulf %328, %332 : vector<2x128xf32>
    %c4_96 = arith.constant 4 : index
    %c0_97 = arith.constant 0 : index
    %334 = vector.load %arg10[%c4_96, %c0_97] : memref<16x512xf32, #tpu.memory_space<vmem>>, vector<2x512xf32>
    %cst_98 = arith.constant dense<0.000000e+00> : vector<2x512xf32>
    %335 = tpu.matmul %303, %11, %cst_98 {dimension_numbers = #tpu.dot_dimension_numbers<[1], [0], [0], [1], [0, 0, 1, 1], [], []>} : vector<2x128xf32>, vector<128x512xf32>, vector<2x512xf32> -> vector<2x512xf32>
    %336 = arith.addf %334, %335 : vector<2x512xf32>
    %337 = vector.extract_strided_slice %336 {offsets = [0, 0], sizes = [2, 128], strides = [1, 1]} : vector<2x512xf32> to vector<2x128xf32>
    %338 = arith.negf %337 : vector<2x128xf32>
    %339 = math.exp %338 : vector<2x128xf32>
    %cst_99 = arith.constant 1.000000e+00 : f32
    %340 = vector.broadcast %cst_99 : f32 to vector<2x128xf32>
    %341 = arith.addf %340, %339 : vector<2x128xf32>
    %342 = arith.divf %340, %341 : vector<2x128xf32>
    %343 = vector.extract_strided_slice %336 {offsets = [0, 128], sizes = [2, 128], strides = [1, 1]} : vector<2x512xf32> to vector<2x128xf32>
    %344 = arith.negf %343 : vector<2x128xf32>
    %345 = math.exp %344 : vector<2x128xf32>
    %cst_100 = arith.constant 1.000000e+00 : f32
    %346 = vector.broadcast %cst_100 : f32 to vector<2x128xf32>
    %347 = arith.addf %346, %345 : vector<2x128xf32>
    %348 = arith.divf %346, %347 : vector<2x128xf32>
    %349 = vector.extract_strided_slice %336 {offsets = [0, 256], sizes = [2, 128], strides = [1, 1]} : vector<2x512xf32> to vector<2x128xf32>
    %350 = math.tanh %349 : vector<2x128xf32>
    %351 = vector.extract_strided_slice %336 {offsets = [0, 384], sizes = [2, 128], strides = [1, 1]} : vector<2x512xf32> to vector<2x128xf32>
    %352 = arith.negf %351 : vector<2x128xf32>
    %353 = math.exp %352 : vector<2x128xf32>
    %cst_101 = arith.constant 1.000000e+00 : f32
    %354 = vector.broadcast %cst_101 : f32 to vector<2x128xf32>
    %355 = arith.addf %354, %353 : vector<2x128xf32>
    %356 = arith.divf %354, %355 : vector<2x128xf32>
    %357 = arith.mulf %348, %301 : vector<2x128xf32>
    %358 = arith.mulf %342, %350 : vector<2x128xf32>
    %359 = arith.addf %357, %358 : vector<2x128xf32>
    %360 = math.tanh %359 : vector<2x128xf32>
    %361 = arith.mulf %356, %360 : vector<2x128xf32>
    %c10_102 = arith.constant 10 : index
    %c0_103 = arith.constant 0 : index
    %362 = vector.load %arg11[%c10_102, %c0_103] : memref<16x128xf32, #tpu.memory_space<vmem>>, vector<2x128xf32>
    tpu.vector_store %arg11[%c10_102, %c0_103], %333 {strides = array<i32>} : memref<16x128xf32, #tpu.memory_space<vmem>>, vector<2x128xf32>,
    %c4_104 = arith.constant 4 : index
    %c0_105 = arith.constant 0 : index
    %363 = vector.load %arg12[%c4_104, %c0_105] : memref<16x128xf32, #tpu.memory_space<vmem>>, vector<2x128xf32>
    tpu.vector_store %arg12[%c4_104, %c0_105], %361 {strides = array<i32>} : memref<16x128xf32, #tpu.memory_space<vmem>>, vector<2x128xf32>,
    %c12_106 = arith.constant 12 : index
    %c0_107 = arith.constant 0 : index
    %364 = vector.load %arg9[%c12_106, %c0_107] : memref<16x512xf32, #tpu.memory_space<vmem>>, vector<2x512xf32>
    %cst_108 = arith.constant dense<0.000000e+00> : vector<2x512xf32>
    %365 = tpu.matmul %333, %10, %cst_108 {dimension_numbers = #tpu.dot_dimension_numbers<[1], [0], [0], [1], [0, 0, 1, 1], [], []>} : vector<2x128xf32>, vector<128x512xf32>, vector<2x512xf32> -> vector<2x512xf32>
    %366 = arith.addf %364, %365 : vector<2x512xf32>
    %367 = vector.extract_strided_slice %366 {offsets = [0, 0], sizes = [2, 128], strides = [1, 1]} : vector<2x512xf32> to vector<2x128xf32>
    %368 = arith.negf %367 : vector<2x128xf32>
    %369 = math.exp %368 : vector<2x128xf32>
    %cst_109 = arith.constant 1.000000e+00 : f32
    %370 = vector.broadcast %cst_109 : f32 to vector<2x128xf32>
    %371 = arith.addf %370, %369 : vector<2x128xf32>
    %372 = arith.divf %370, %371 : vector<2x128xf32>
    %373 = vector.extract_strided_slice %366 {offsets = [0, 128], sizes = [2, 128], strides = [1, 1]} : vector<2x512xf32> to vector<2x128xf32>
    %374 = arith.negf %373 : vector<2x128xf32>
    %375 = math.exp %374 : vector<2x128xf32>
    %cst_110 = arith.constant 1.000000e+00 : f32
    %376 = vector.broadcast %cst_110 : f32 to vector<2x128xf32>
    %377 = arith.addf %376, %375 : vector<2x128xf32>
    %378 = arith.divf %376, %377 : vector<2x128xf32>
    %379 = vector.extract_strided_slice %366 {offsets = [0, 256], sizes = [2, 128], strides = [1, 1]} : vector<2x512xf32> to vector<2x128xf32>
    %380 = math.tanh %379 : vector<2x128xf32>
    %381 = vector.extract_strided_slice %366 {offsets = [0, 384], sizes = [2, 128], strides = [1, 1]} : vector<2x512xf32> to vector<2x128xf32>
    %382 = arith.negf %381 : vector<2x128xf32>
    %383 = math.exp %382 : vector<2x128xf32>
    %cst_111 = arith.constant 1.000000e+00 : f32
    %384 = vector.broadcast %cst_111 : f32 to vector<2x128xf32>
    %385 = arith.addf %384, %383 : vector<2x128xf32>
    %386 = arith.divf %384, %385 : vector<2x128xf32>
    %387 = arith.mulf %378, %331 : vector<2x128xf32>
    %388 = arith.mulf %372, %380 : vector<2x128xf32>
    %389 = arith.addf %387, %388 : vector<2x128xf32>
    %390 = math.tanh %389 : vector<2x128xf32>
    %391 = arith.mulf %386, %390 : vector<2x128xf32>
    %c2_112 = arith.constant 2 : index
    %c0_113 = arith.constant 0 : index
    %392 = vector.load %arg10[%c2_112, %c0_113] : memref<16x512xf32, #tpu.memory_space<vmem>>, vector<2x512xf32>
    %cst_114 = arith.constant dense<0.000000e+00> : vector<2x512xf32>
    %393 = tpu.matmul %361, %11, %cst_114 {dimension_numbers = #tpu.dot_dimension_numbers<[1], [0], [0], [1], [0, 0, 1, 1], [], []>} : vector<2x128xf32>, vector<128x512xf32>, vector<2x512xf32> -> vector<2x512xf32>
    %394 = arith.addf %392, %393 : vector<2x512xf32>
    %395 = vector.extract_strided_slice %394 {offsets = [0, 0], sizes = [2, 128], strides = [1, 1]} : vector<2x512xf32> to vector<2x128xf32>
    %396 = arith.negf %395 : vector<2x128xf32>
    %397 = math.exp %396 : vector<2x128xf32>
    %cst_115 = arith.constant 1.000000e+00 : f32
    %398 = vector.broadcast %cst_115 : f32 to vector<2x128xf32>
    %399 = arith.addf %398, %397 : vector<2x128xf32>
    %400 = arith.divf %398, %399 : vector<2x128xf32>
    %401 = vector.extract_strided_slice %394 {offsets = [0, 128], sizes = [2, 128], strides = [1, 1]} : vector<2x512xf32> to vector<2x128xf32>
    %402 = arith.negf %401 : vector<2x128xf32>
    %403 = math.exp %402 : vector<2x128xf32>
    %cst_116 = arith.constant 1.000000e+00 : f32
    %404 = vector.broadcast %cst_116 : f32 to vector<2x128xf32>
    %405 = arith.addf %404, %403 : vector<2x128xf32>
    %406 = arith.divf %404, %405 : vector<2x128xf32>
    %407 = vector.extract_strided_slice %394 {offsets = [0, 256], sizes = [2, 128], strides = [1, 1]} : vector<2x512xf32> to vector<2x128xf32>
    %408 = math.tanh %407 : vector<2x128xf32>
    %409 = vector.extract_strided_slice %394 {offsets = [0, 384], sizes = [2, 128], strides = [1, 1]} : vector<2x512xf32> to vector<2x128xf32>
    %410 = arith.negf %409 : vector<2x128xf32>
    %411 = math.exp %410 : vector<2x128xf32>
    %cst_117 = arith.constant 1.000000e+00 : f32
    %412 = vector.broadcast %cst_117 : f32 to vector<2x128xf32>
    %413 = arith.addf %412, %411 : vector<2x128xf32>
    %414 = arith.divf %412, %413 : vector<2x128xf32>
    %415 = arith.mulf %406, %359 : vector<2x128xf32>
    %416 = arith.mulf %400, %408 : vector<2x128xf32>
    %417 = arith.addf %415, %416 : vector<2x128xf32>
    %418 = math.tanh %417 : vector<2x128xf32>
    %419 = arith.mulf %414, %418 : vector<2x128xf32>
    %c12_118 = arith.constant 12 : index
    %c0_119 = arith.constant 0 : index
    %420 = vector.load %arg11[%c12_118, %c0_119] : memref<16x128xf32, #tpu.memory_space<vmem>>, vector<2x128xf32>
    tpu.vector_store %arg11[%c12_118, %c0_119], %391 {strides = array<i32>} : memref<16x128xf32, #tpu.memory_space<vmem>>, vector<2x128xf32>,
    %c2_120 = arith.constant 2 : index
    %c0_121 = arith.constant 0 : index
    %421 = vector.load %arg12[%c2_120, %c0_121] : memref<16x128xf32, #tpu.memory_space<vmem>>, vector<2x128xf32>
    tpu.vector_store %arg12[%c2_120, %c0_121], %419 {strides = array<i32>} : memref<16x128xf32, #tpu.memory_space<vmem>>, vector<2x128xf32>,
    %c14_122 = arith.constant 14 : index
    %c0_123 = arith.constant 0 : index
    %422 = vector.load %arg9[%c14_122, %c0_123] : memref<16x512xf32, #tpu.memory_space<vmem>>, vector<2x512xf32>
    %cst_124 = arith.constant dense<0.000000e+00> : vector<2x512xf32>
    %423 = tpu.matmul %391, %10, %cst_124 {dimension_numbers = #tpu.dot_dimension_numbers<[1], [0], [0], [1], [0, 0, 1, 1], [], []>} : vector<2x128xf32>, vector<128x512xf32>, vector<2x512xf32> -> vector<2x512xf32>
    %424 = arith.addf %422, %423 : vector<2x512xf32>
    %425 = vector.extract_strided_slice %424 {offsets = [0, 0], sizes = [2, 128], strides = [1, 1]} : vector<2x512xf32> to vector<2x128xf32>
    %426 = arith.negf %425 : vector<2x128xf32>
    %427 = math.exp %426 : vector<2x128xf32>
    %cst_125 = arith.constant 1.000000e+00 : f32
    %428 = vector.broadcast %cst_125 : f32 to vector<2x128xf32>
    %429 = arith.addf %428, %427 : vector<2x128xf32>
    %430 = arith.divf %428, %429 : vector<2x128xf32>
    %431 = vector.extract_strided_slice %424 {offsets = [0, 128], sizes = [2, 128], strides = [1, 1]} : vector<2x512xf32> to vector<2x128xf32>
    %432 = arith.negf %431 : vector<2x128xf32>
    %433 = math.exp %432 : vector<2x128xf32>
    %cst_126 = arith.constant 1.000000e+00 : f32
    %434 = vector.broadcast %cst_126 : f32 to vector<2x128xf32>
    %435 = arith.addf %434, %433 : vector<2x128xf32>
    %436 = arith.divf %434, %435 : vector<2x128xf32>
    %437 = vector.extract_strided_slice %424 {offsets = [0, 256], sizes = [2, 128], strides = [1, 1]} : vector<2x512xf32> to vector<2x128xf32>
    %438 = math.tanh %437 : vector<2x128xf32>
    %439 = vector.extract_strided_slice %424 {offsets = [0, 384], sizes = [2, 128], strides = [1, 1]} : vector<2x512xf32> to vector<2x128xf32>
    %440 = arith.negf %439 : vector<2x128xf32>
    %441 = math.exp %440 : vector<2x128xf32>
    %cst_127 = arith.constant 1.000000e+00 : f32
    %442 = vector.broadcast %cst_127 : f32 to vector<2x128xf32>
    %443 = arith.addf %442, %441 : vector<2x128xf32>
    %444 = arith.divf %442, %443 : vector<2x128xf32>
    %445 = arith.mulf %436, %389 : vector<2x128xf32>
    %446 = arith.mulf %430, %438 : vector<2x128xf32>
    %447 = arith.addf %445, %446 : vector<2x128xf32>
    %448 = math.tanh %447 : vector<2x128xf32>
    %449 = arith.mulf %444, %448 : vector<2x128xf32>
    %c0_128 = arith.constant 0 : index
    %c0_129 = arith.constant 0 : index
    %450 = vector.load %arg10[%c0_128, %c0_129] : memref<16x512xf32, #tpu.memory_space<vmem>>, vector<2x512xf32>
    %cst_130 = arith.constant dense<0.000000e+00> : vector<2x512xf32>
    %451 = tpu.matmul %419, %11, %cst_130 {dimension_numbers = #tpu.dot_dimension_numbers<[1], [0], [0], [1], [0, 0, 1, 1], [], []>} : vector<2x128xf32>, vector<128x512xf32>, vector<2x512xf32> -> vector<2x512xf32>
    %452 = arith.addf %450, %451 : vector<2x512xf32>
    %453 = vector.extract_strided_slice %452 {offsets = [0, 0], sizes = [2, 128], strides = [1, 1]} : vector<2x512xf32> to vector<2x128xf32>
    %454 = arith.negf %453 : vector<2x128xf32>
    %455 = math.exp %454 : vector<2x128xf32>
    %cst_131 = arith.constant 1.000000e+00 : f32
    %456 = vector.broadcast %cst_131 : f32 to vector<2x128xf32>
    %457 = arith.addf %456, %455 : vector<2x128xf32>
    %458 = arith.divf %456, %457 : vector<2x128xf32>
    %459 = vector.extract_strided_slice %452 {offsets = [0, 128], sizes = [2, 128], strides = [1, 1]} : vector<2x512xf32> to vector<2x128xf32>
    %460 = arith.negf %459 : vector<2x128xf32>
    %461 = math.exp %460 : vector<2x128xf32>
    %cst_132 = arith.constant 1.000000e+00 : f32
    %462 = vector.broadcast %cst_132 : f32 to vector<2x128xf32>
    %463 = arith.addf %462, %461 : vector<2x128xf32>
    %464 = arith.divf %462, %463 : vector<2x128xf32>
    %465 = vector.extract_strided_slice %452 {offsets = [0, 256], sizes = [2, 128], strides = [1, 1]} : vector<2x512xf32> to vector<2x128xf32>
    %466 = math.tanh %465 : vector<2x128xf32>
    %467 = vector.extract_strided_slice %452 {offsets = [0, 384], sizes = [2, 128], strides = [1, 1]} : vector<2x512xf32> to vector<2x128xf32>
    %468 = arith.negf %467 : vector<2x128xf32>
    %469 = math.exp %468 : vector<2x128xf32>
    %cst_133 = arith.constant 1.000000e+00 : f32
    %470 = vector.broadcast %cst_133 : f32 to vector<2x128xf32>
    %471 = arith.addf %470, %469 : vector<2x128xf32>
    %472 = arith.divf %470, %471 : vector<2x128xf32>
    %473 = arith.mulf %464, %417 : vector<2x128xf32>
    %474 = arith.mulf %458, %466 : vector<2x128xf32>
    %475 = arith.addf %473, %474 : vector<2x128xf32>
    %476 = math.tanh %475 : vector<2x128xf32>
    %477 = arith.mulf %472, %476 : vector<2x128xf32>
    %c14_134 = arith.constant 14 : index
    %c0_135 = arith.constant 0 : index
    %478 = vector.load %arg11[%c14_134, %c0_135] : memref<16x128xf32, #tpu.memory_space<vmem>>, vector<2x128xf32>
    tpu.vector_store %arg11[%c14_134, %c0_135], %449 {strides = array<i32>} : memref<16x128xf32, #tpu.memory_space<vmem>>, vector<2x128xf32>,
    %c0_136 = arith.constant 0 : index
    %c0_137 = arith.constant 0 : index
    %479 = vector.load %arg12[%c0_136, %c0_137] : memref<16x128xf32, #tpu.memory_space<vmem>>, vector<2x128xf32>
    tpu.vector_store %arg12[%c0_136, %c0_137], %477 {strides = array<i32>} : memref<16x128xf32, #tpu.memory_space<vmem>>, vector<2x128xf32>,
    %c0_138 = arith.constant 0 : index
    %c0_139 = arith.constant 0 : index
    %480 = vector.load %arg11[%c0_138, %c0_139] : memref<16x128xf32, #tpu.memory_space<vmem>>, vector<16x128xf32>
    %c0_140 = arith.constant 0 : index
    %c0_141 = arith.constant 0 : index
    %481 = vector.load %arg5[%c0_140, %c0_141] : memref<128x128xf32, #tpu.memory_space<vmem>>, vector<128x128xf32>
    %cst_142 = arith.constant dense<0.000000e+00> : vector<16x128xf32>
    %482 = tpu.matmul %480, %481, %cst_142 {dimension_numbers = #tpu.dot_dimension_numbers<[1], [0], [0], [1], [0, 0, 1, 1], [], []>} : vector<16x128xf32>, vector<128x128xf32>, vector<16x128xf32> -> vector<16x128xf32>
    %c0_143 = arith.constant 0 : index
    %c0_144 = arith.constant 0 : index
    %483 = vector.load %arg12[%c0_143, %c0_144] : memref<16x128xf32, #tpu.memory_space<vmem>>, vector<16x128xf32>
    %c0_145 = arith.constant 0 : index
    %c0_146 = arith.constant 0 : index
    %484 = vector.load %arg6[%c0_145, %c0_146] : memref<128x128xf32, #tpu.memory_space<vmem>>, vector<128x128xf32>
    %cst_147 = arith.constant dense<0.000000e+00> : vector<16x128xf32>
    %485 = tpu.matmul %483, %484, %cst_147 {dimension_numbers = #tpu.dot_dimension_numbers<[1], [0], [0], [1], [0, 0, 1, 1], [], []>} : vector<16x128xf32>, vector<128x128xf32>, vector<16x128xf32> -> vector<16x128xf32>
    %486 = arith.addf %482, %485 : vector<16x128xf32>
    %c0_148 = arith.constant 0 : index
    %c0_149 = arith.constant 0 : index
    %487 = vector.load %arg7[%c0_148, %c0_149] : memref<1x128xf32, #tpu.memory_space<vmem>>, vector<1x128xf32>
    %488 = vector.broadcast %487 : vector<1x128xf32> to vector<16x128xf32>
    %489 = arith.addf %486, %488 : vector<16x128xf32>
    %c0_150 = arith.constant 0 : index
    %c0_151 = arith.constant 0 : index
    %490 = vector.load %arg8[%c0_150, %c0_151] : memref<16x128xf32, #tpu.memory_space<vmem>>, vector<16x128xf32>
    tpu.vector_store %arg8[%c0_150, %c0_151], %489 {strides = array<i32>} : memref<16x128xf32, #tpu.memory_space<vmem>>, vector<16x128xf32>,
    return
  }
}

</mosaic_0001>

<llo_original>
// kernel: bidirectional_lstm.1
$region0: #{bidirectional_lstm.1}
  #allocation0 [shape = 'u32[]', space=smem, size = 0x4, offset = 0x4, fixed_abs, tag = 'smem constant byte address 0x4 - core index']
  #allocation1 [shape = 'u32[144,128]{1,0:T(1,128)}', space=vmem, size = 0x12000, scoped, tag = 'internal scratch']
  #allocation2 [shape = 'f32[16,512]{1,0:T(8,128)}', space=vmem, size = 0x8000, scoped, tag = 'scratch operand']
  #allocation3 [shape = 'f32[16,512]{1,0:T(8,128)}', space=vmem, size = 0x8000, scoped, tag = 'scratch operand']
  #allocation4 [shape = 'f32[16,128]{1,0:T(8,128)}', space=vmem, size = 0x2000, scoped, tag = 'scratch operand']
  #allocation5 [shape = 'f32[16,128]{1,0:T(8,128)}', space=vmem, size = 0x2000, scoped, tag = 'scratch operand']
  %s0 = inlined_call_operand.vmem [shape: f32[16,16], index: 0, kind: input, shape index: {}]
  %s1 = inlined_call_operand.vmem [shape: f32[16,1024], index: 1, kind: input, shape index: {}]
  %s2 = inlined_call_operand.vmem [shape: f32[1,1024], index: 2, kind: input, shape index: {}]
  %s3 = inlined_call_operand.vmem [shape: f32[128,512], index: 3, kind: input, shape index: {}]
  %s4 = inlined_call_operand.vmem [shape: f32[128,512], index: 4, kind: input, shape index: {}]
  %s5 = inlined_call_operand.vmem [shape: f32[128,128], index: 5, kind: input, shape index: {}]
  %s6 = inlined_call_operand.vmem [shape: f32[128,128], index: 6, kind: input, shape index: {}]
  %s7 = inlined_call_operand.vmem [shape: f32[1,128], index: 7, kind: input, shape index: {}]
  %s8 = inlined_call_operand.hbm [shape: f32[16,128], index: 8, kind: output, shape index: {}]
  %s9 = sld [smem:[#allocation0]]
  $region42: #{bidirectional_lstm.1} parent=0
    _
  %s11 = ssub.s32 1, %s9
  %s12 = scalar_select 0, %s11, %s9
  $region1: #{bidirectional_lstm.1} parent=0
    #allocation6 [shape = 'u8[8192]{0}', space=vmem, size = 0x2000, scoped, tag = 'output window, operand 0, single buffered']
    #allocation7 [shape = 's32[1]{0}', space=sflag, size = 0x4, scoped, tag = 'scoped memory for bidirectional_lstm.1']
    %13 = vsyncpa [#allocation7], 0
    // Predicated region
    $region2: #{bidirectional_lstm.1} parent=1 // pred_check
      _
    $region3: #{bidirectional_lstm.1} parent=1 // pred_check_branch
      %15 = sbr.rel (0) target = $region5
    $region4: #{bidirectional_lstm.1} parent=1 // pred_region
      _
    $region5: #{bidirectional_lstm.1} parent=1 // pred_fallthru
      _
    // Predicated region
    $region6: #{bidirectional_lstm.1} parent=1 // pred_check
      _
    $region7: #{bidirectional_lstm.1} parent=1 // pred_check_branch
      %17 = sbr.rel (0) target = $region9
    $region8: #{bidirectional_lstm.1} parent=1 // pred_region
      _
    $region9: #{bidirectional_lstm.1} parent=1 // pred_fallthru
      _
    // Predicated region
    $region10: #{bidirectional_lstm.1} parent=1 // pred_check
      _
    $region11: #{bidirectional_lstm.1} parent=1 // pred_check_branch
      %19 = sbr.rel (0) target = $region13
    $region12: #{bidirectional_lstm.1} parent=1 // pred_region
      _
    $region13: #{bidirectional_lstm.1} parent=1 // pred_fallthru
      _
    // Predicated region
    $region14: #{bidirectional_lstm.1} parent=1 // pred_check
      _
    $region15: #{bidirectional_lstm.1} parent=1 // pred_check_branch
      %21 = sbr.rel (0) target = $region17
    $region16: #{bidirectional_lstm.1} parent=1 // pred_region
      _
    $region17: #{bidirectional_lstm.1} parent=1 // pred_fallthru
      _
    // Predicated region
    $region18: #{bidirectional_lstm.1} parent=1 // pred_check
      _
    $region19: #{bidirectional_lstm.1} parent=1 // pred_check_branch
      %23 = sbr.rel (0) target = $region21
    $region20: #{bidirectional_lstm.1} parent=1 // pred_region
      _
    $region21: #{bidirectional_lstm.1} parent=1 // pred_fallthru
      _
    // Predicated region
    $region22: #{bidirectional_lstm.1} parent=1 // pred_check
      _
    $region23: #{bidirectional_lstm.1} parent=1 // pred_check_branch
      %25 = sbr.rel (0) target = $region25
    $region24: #{bidirectional_lstm.1} parent=1 // pred_region
      _
    $region25: #{bidirectional_lstm.1} parent=1 // pred_fallthru
      _
    // Predicated region
    $region26: #{bidirectional_lstm.1} parent=1 // pred_check
      _
    $region27: #{bidirectional_lstm.1} parent=1 // pred_check_branch
      %27 = sbr.rel (0) target = $region29
    $region28: #{bidirectional_lstm.1} parent=1 // pred_region
      _
    $region29: #{bidirectional_lstm.1} parent=1 // pred_fallthru
      _
    // Predicated region
    $region30: #{bidirectional_lstm.1} parent=1 // pred_check
      _
    $region31: #{bidirectional_lstm.1} parent=1 // pred_check_branch
      %29 = sbr.rel (0) target = $region33
    $region32: #{bidirectional_lstm.1} parent=1 // pred_region
      _
    $region33: #{bidirectional_lstm.1} parent=1 // pred_fallthru
      _
    %v30 = vld [vmem:[%s0] sm:$0xff]
    %v31 = vld [vmem:[%s0 + $0x8] sm:$0xff]
    %v32 = vld [vmem:[%s1] sm:$0xff]
    %v33 = vld [vmem:[%s1 + $0x8] sm:$0xff]
    %v34 = vld [vmem:[%s1 + $0x10] sm:$0xff]
    %v35 = vld [vmem:[%s1 + $0x18] sm:$0xff]
    %v36 = vld [vmem:[%s1 + $0x20] sm:$0xff]
    %v37 = vld [vmem:[%s1 + $0x28] sm:$0xff]
    %v38 = vld [vmem:[%s1 + $0x30] sm:$0xff]
    %v39 = vld [vmem:[%s1 + $0x38] sm:$0xff]
    %v40 = vld [vmem:[%s1 + $0x40] sm:$0xff]
    %v41 = vld [vmem:[%s1 + $0x48] sm:$0xff]
    %v42 = vld [vmem:[%s1 + $0x50] sm:$0xff]
    %v43 = vld [vmem:[%s1 + $0x58] sm:$0xff]
    %v44 = vld [vmem:[%s1 + $0x60] sm:$0xff]
    %v45 = vld [vmem:[%s1 + $0x68] sm:$0xff]
    %v46 = vld [vmem:[%s1 + $0x70] sm:$0xff]
    %v47 = vld [vmem:[%s1 + $0x78] sm:$0xff]
    %v48 = vld [vmem:[%s2] sm:$0xff]
    %v50 = vlaneseq
    %v51 = vshrl.u32 %v50, 7
    %v52 = vsub.s32 0, %v51
    %v53 = vrot.slane %v48, %v52
    %v54 = vlaneseq
    %v55 = vshrl.u32 %v54, 7
    %v56 = vsub.s32 1, %v55
    %v57 = vrot.slane %v48, %v56
    %v58 = vlaneseq
    %v59 = vshrl.u32 %v58, 7
    %v60 = vsub.s32 2, %v59
    %v61 = vrot.slane %v48, %v60
    %v62 = vlaneseq
    %v63 = vshrl.u32 %v62, 7
    %v64 = vsub.s32 3, %v63
    %v65 = vrot.slane %v48, %v64
    %v66 = vlaneseq
    %v67 = vshrl.u32 %v66, 7
    %v68 = vsub.s32 4, %v67
    %v69 = vrot.slane %v48, %v68
    %v70 = vlaneseq
    %v71 = vshrl.u32 %v70, 7
    %v72 = vsub.s32 5, %v71
    %v73 = vrot.slane %v48, %v72
    %v74 = vlaneseq
    %v75 = vshrl.u32 %v74, 7
    %v76 = vsub.s32 6, %v75
    %v77 = vrot.slane %v48, %v76
    %v78 = vlaneseq
    %v79 = vshrl.u32 %v78, 7
    %v80 = vsub.s32 7, %v79
    %v81 = vrot.slane %v48, %v80
    %vm90 = vcmask 130048
    %v92 = vsel %vm90, %v30, 0
    %v95 = vsel %vm90, %v31, 0
    %97 = vmatprep.subr.mxu0 %v33
    %98 = vmatpush1.msra.mxu0 %v32
    %99 = vmatprep.subr.mxu0 %v41
    %100 = vmatpush1.msra.mxu0 %v40
    %101 = vmatprep.subr.mxu0 0.0
    %102 = vmatpush1.msra.mxu0 0.0
    %103 = vmatprep.subr.mxu0 0.0
    %104 = vmatpush1.msra.mxu0 0.0
    %105 = vmatprep.subr.mxu0 0.0
    %106 = vmatpush1.msra.mxu0 0.0
    %107 = vmatprep.subr.mxu0 0.0
    %108 = vmatpush1.msra.mxu0 0.0
    %109 = vmatprep.subr.mxu0 0.0
    %110 = vmatpush1.msra.mxu0 0.0
    %111 = vmatprep.subr.mxu0 0.0
    %112 = vmatpush1.msra.mxu0 0.0
    %113 = vmatprep.subr.mxu0 0.0
    %114 = vmatpush1.msra.mxu0 0.0
    %115 = vmatprep.subr.mxu0 0.0
    %116 = vmatpush1.msra.mxu0 0.0
    %117 = vmatprep.subr.mxu0 0.0
    %118 = vmatpush1.msra.mxu0 0.0
    %119 = vmatprep.subr.mxu0 0.0
    %120 = vmatpush1.msra.mxu0 0.0
    %121 = vmatprep.subr.mxu0 0.0
    %122 = vmatpush1.msra.mxu0 0.0
    %123 = vmatprep.subr.mxu0 0.0
    %124 = vmatpush1.msra.mxu0 0.0
    %125 = vmatprep.subr.mxu0 0.0
    %126 = vmatpush1.msra.mxu0 0.0
    %127 = vmatprep.subr.mxu0 0.0
    %128 = vmatpush1.msra.mxu0 0.0
    %129 = vmatprep.subr.mxu0 0.0
    %130 = vmatpush1.msra.mxu0 0.0
    %131 = vmatprep.subr.mxu0 0.0
    %132 = vmatpush1.msra.mxu0 0.0
    %133 = vmatprep.subr.mxu0 0.0
    %134 = vmatpush1.msra.mxu0 0.0
    %135 = vmatprep.subr.mxu0 0.0
    %136 = vmatpush1.msra.mxu0 0.0
    %137 = vmatprep.subr.mxu0 0.0
    %138 = vmatpush1.msra.mxu0 0.0
    %139 = vmatprep.subr.mxu0 0.0
    %140 = vmatpush1.msra.mxu0 0.0
    %141 = vmatprep.subr.mxu0 0.0
    %142 = vmatpush1.msra.mxu0 0.0
    %143 = vmatprep.subr.mxu0 0.0
    %144 = vmatpush1.msra.mxu0 0.0
    %145 = vmatprep.subr.mxu0 0.0
    %146 = vmatpush1.msra.mxu0 0.0
    %147 = vmatprep.subr.mxu0 0.0
    %148 = vmatpush1.msra.mxu0 0.0
    %149 = vmatprep.subr.mxu0 0.0
    %150 = vmatpush1.msra.mxu0 0.0
    %151 = vmatprep.subr.mxu0 0.0
    %152 = vmatpush1.msra.mxu0 0.0
    %153 = vmatprep.subr.mxu0 0.0
    %154 = vmatpush1.msra.mxu0 0.0
    %155 = vmatprep.subr.mxu0 0.0
    %156 = vmatpush1.msra.mxu0 0.0
    %157 = vmatprep.subr.mxu0 0.0
    %158 = vmatpush1.msra.mxu0 0.0
    %159 = vmatprep.subr.mxu0 0.0
    %160 = vmatpush1.msra.mxu0 0.0
    %161 = vmatprep.mubr.f32.mxu0 0.0
    %162 = vmatmul.mubr.f32.gmra.mrb[0].mxu0 %v92
    %v163 = vpop.f32.mrb[0].mxu0
    %v164 = vadd.f32 %v53, %v163
    %v165 = vpop.f32.mrb[0].mxu0
    %v166 = vadd.f32 %v57, %v165
    %167 = vmatprep.mubr.f32.mxu0 0.0
    %168 = vmatmul.mubr.f32.gmra.mrb[0].mxu0 %v95
    %v169 = vpop.f32.mrb[0].mxu0
    %v170 = vadd.f32 %v53, %v169
    %v171 = vpop.f32.mrb[0].mxu0
    %v172 = vadd.f32 %v57, %v171
    %173 = vdwg.mxu0
    %174 = vmatprep.subr.mxu0 %v35
    %175 = vmatpush1.msra.mxu0 %v34
    %176 = vmatprep.subr.mxu0 %v43
    %177 = vmatpush1.msra.mxu0 %v42
    %178 = vmatprep.subr.mxu0 0.0
    %179 = vmatpush1.msra.mxu0 0.0
    %180 = vmatprep.subr.mxu0 0.0
    %181 = vmatpush1.msra.mxu0 0.0
    %182 = vmatprep.subr.mxu0 0.0
    %183 = vmatpush1.msra.mxu0 0.0
    %184 = vmatprep.subr.mxu0 0.0
    %185 = vmatpush1.msra.mxu0 0.0
    %186 = vmatprep.subr.mxu0 0.0
    %187 = vmatpush1.msra.mxu0 0.0
    %188 = vmatprep.subr.mxu0 0.0
    %189 = vmatpush1.msra.mxu0 0.0
    %190 = vmatprep.subr.mxu0 0.0
    %191 = vmatpush1.msra.mxu0 0.0
    %192 = vmatprep.subr.mxu0 0.0
    %193 = vmatpush1.msra.mxu0 0.0
    %194 = vmatprep.subr.mxu0 0.0
    %195 = vmatpush1.msra.mxu0 0.0
    %196 = vmatprep.subr.mxu0 0.0
    %197 = vmatpush1.msra.mxu0 0.0
    %198 = vmatprep.subr.mxu0 0.0
    %199 = vmatpush1.msra.mxu0 0.0
    %200 = vmatprep.subr.mxu0 0.0
    %201 = vmatpush1.msra.mxu0 0.0
    %202 = vmatprep.subr.mxu0 0.0
    %203 = vmatpush1.msra.mxu0 0.0
    %204 = vmatprep.subr.mxu0 0.0
    %205 = vmatpush1.msra.mxu0 0.0
    %206 = vmatprep.subr.mxu0 0.0
    %207 = vmatpush1.msra.mxu0 0.0
    %208 = vmatprep.subr.mxu0 0.0
    %209 = vmatpush1.msra.mxu0 0.0
    %210 = vmatprep.subr.mxu0 0.0
    %211 = vmatpush1.msra.mxu0 0.0
    %212 = vmatprep.subr.mxu0 0.0
    %213 = vmatpush1.msra.mxu0 0.0
    %214 = vmatprep.subr.mxu0 0.0
    %215 = vmatpush1.msra.mxu0 0.0
    %216 = vmatprep.subr.mxu0 0.0
    %217 = vmatpush1.msra.mxu0 0.0
    %218 = vmatprep.subr.mxu0 0.0
    %219 = vmatpush1.msra.mxu0 0.0
    %220 = vmatprep.subr.mxu0 0.0
    %221 = vmatpush1.msra.mxu0 0.0
    %222 = vmatprep.subr.mxu0 0.0
    %223 = vmatpush1.msra.mxu0 0.0
    %224 = vmatprep.subr.mxu0 0.0
    %225 = vmatpush1.msra.mxu0 0.0
    %226 = vmatprep.subr.mxu0 0.0
    %227 = vmatpush1.msra.mxu0 0.0
    %228 = vmatprep.subr.mxu0 0.0
    %229 = vmatpush1.msra.mxu0 0.0
    %230 = vmatprep.subr.mxu0 0.0
    %231 = vmatpush1.msra.mxu0 0.0
    %232 = vmatprep.subr.mxu0 0.0
    %233 = vmatpush1.msra.mxu0 0.0
    %234 = vmatprep.subr.mxu0 0.0
    %235 = vmatpush1.msra.mxu0 0.0
    %236 = vmatprep.subr.mxu0 0.0
    %237 = vmatpush1.msra.mxu0 0.0
    %238 = vmatprep.mubr.f32.mxu0 0.0
    %239 = vmatmul.mubr.f32.gmra.mrb[0].mxu0 %v92
    %v240 = vpop.f32.mrb[0].mxu0
    %v241 = vadd.f32 %v61, %v240
    %v242 = vpop.f32.mrb[0].mxu0
    %v243 = vadd.f32 %v65, %v242
    %244 = vmatprep.mubr.f32.mxu0 0.0
    %245 = vmatmul.mubr.f32.gmra.mrb[0].mxu0 %v95
    %v246 = vpop.f32.mrb[0].mxu0
    %v247 = vadd.f32 %v61, %v246
    %v248 = vpop.f32.mrb[0].mxu0
    %v249 = vadd.f32 %v65, %v248
    %250 = vdwg.mxu0
    %251 = vmatprep.subr.mxu0 %v37
    %252 = vmatpush1.msra.mxu0 %v36
    %253 = vmatprep.subr.mxu0 %v45
    %254 = vmatpush1.msra.mxu0 %v44
    %255 = vmatprep.subr.mxu0 0.0
    %256 = vmatpush1.msra.mxu0 0.0
    %257 = vmatprep.subr.mxu0 0.0
    %258 = vmatpush1.msra.mxu0 0.0
    %259 = vmatprep.subr.mxu0 0.0
    %260 = vmatpush1.msra.mxu0 0.0
    %261 = vmatprep.subr.mxu0 0.0
    %262 = vmatpush1.msra.mxu0 0.0
    %263 = vmatprep.subr.mxu0 0.0
    %264 = vmatpush1.msra.mxu0 0.0
    %265 = vmatprep.subr.mxu0 0.0
    %266 = vmatpush1.msra.mxu0 0.0
    %267 = vmatprep.subr.mxu0 0.0
    %268 = vmatpush1.msra.mxu0 0.0
    %269 = vmatprep.subr.mxu0 0.0
    %270 = vmatpush1.msra.mxu0 0.0
    %271 = vmatprep.subr.mxu0 0.0
    %272 = vmatpush1.msra.mxu0 0.0
    %273 = vmatprep.subr.mxu0 0.0
    %274 = vmatpush1.msra.mxu0 0.0
    %275 = vmatprep.subr.mxu0 0.0
    %276 = vmatpush1.msra.mxu0 0.0
    %277 = vmatprep.subr.mxu0 0.0
    %278 = vmatpush1.msra.mxu0 0.0
    %279 = vmatprep.subr.mxu0 0.0
    %280 = vmatpush1.msra.mxu0 0.0
    %281 = vmatprep.subr.mxu0 0.0
    %282 = vmatpush1.msra.mxu0 0.0
    %283 = vmatprep.subr.mxu0 0.0
    %284 = vmatpush1.msra.mxu0 0.0
    %285 = vmatprep.subr.mxu0 0.0
    %286 = vmatpush1.msra.mxu0 0.0
    %287 = vmatprep.subr.mxu0 0.0
    %288 = vmatpush1.msra.mxu0 0.0
    %289 = vmatprep.subr.mxu0 0.0
    %290 = vmatpush1.msra.mxu0 0.0
    %291 = vmatprep.subr.mxu0 0.0
    %292 = vmatpush1.msra.mxu0 0.0
    %293 = vmatprep.subr.mxu0 0.0
    %294 = vmatpush1.msra.mxu0 0.0
    %295 = vmatprep.subr.mxu0 0.0
    %296 = vmatpush1.msra.mxu0 0.0
    %297 = vmatprep.subr.mxu0 0.0
    %298 = vmatpush1.msra.mxu0 0.0
    %299 = vmatprep.subr.mxu0 0.0
    %300 = vmatpush1.msra.mxu0 0.0
    %301 = vmatprep.subr.mxu0 0.0
    %302 = vmatpush1.msra.mxu0 0.0
    %303 = vmatprep.subr.mxu0 0.0
    %304 = vmatpush1.msra.mxu0 0.0
    %305 = vmatprep.subr.mxu0 0.0
    %306 = vmatpush1.msra.mxu0 0.0
    %307 = vmatprep.subr.mxu0 0.0
    %308 = vmatpush1.msra.mxu0 0.0
    %309 = vmatprep.subr.mxu0 0.0
    %310 = vmatpush1.msra.mxu0 0.0
    %311 = vmatprep.subr.mxu0 0.0
    %312 = vmatpush1.msra.mxu0 0.0
    %313 = vmatprep.subr.mxu0 0.0
    %314 = vmatpush1.msra.mxu0 0.0
    %315 = vmatprep.mubr.f32.mxu0 0.0
    %316 = vmatmul.mubr.f32.gmra.mrb[0].mxu0 %v92
    %v317 = vpop.f32.mrb[0].mxu0
    %v318 = vadd.f32 %v69, %v317
    %v319 = vpop.f32.mrb[0].mxu0
    %v320 = vadd.f32 %v73, %v319
    %321 = vmatprep.mubr.f32.mxu0 0.0
    %322 = vmatmul.mubr.f32.gmra.mrb[0].mxu0 %v95
    %v323 = vpop.f32.mrb[0].mxu0
    %v324 = vadd.f32 %v69, %v323
    %v325 = vpop.f32.mrb[0].mxu0
    %v326 = vadd.f32 %v73, %v325
    %327 = vdwg.mxu0
    %328 = vmatprep.subr.mxu0 %v39
    %329 = vmatpush1.msra.mxu0 %v38
    %330 = vmatprep.subr.mxu0 %v47
    %331 = vmatpush1.msra.mxu0 %v46
    %332 = vmatprep.subr.mxu0 0.0
    %333 = vmatpush1.msra.mxu0 0.0
    %334 = vmatprep.subr.mxu0 0.0
    %335 = vmatpush1.msra.mxu0 0.0
    %336 = vmatprep.subr.mxu0 0.0
    %337 = vmatpush1.msra.mxu0 0.0
    %338 = vmatprep.subr.mxu0 0.0
    %339 = vmatpush1.msra.mxu0 0.0
    %340 = vmatprep.subr.mxu0 0.0
    %341 = vmatpush1.msra.mxu0 0.0
    %342 = vmatprep.subr.mxu0 0.0
    %343 = vmatpush1.msra.mxu0 0.0
    %344 = vmatprep.subr.mxu0 0.0
    %345 = vmatpush1.msra.mxu0 0.0
    %346 = vmatprep.subr.mxu0 0.0
    %347 = vmatpush1.msra.mxu0 0.0
    %348 = vmatprep.subr.mxu0 0.0
    %349 = vmatpush1.msra.mxu0 0.0
    %350 = vmatprep.subr.mxu0 0.0
    %351 = vmatpush1.msra.mxu0 0.0
    %352 = vmatprep.subr.mxu0 0.0
    %353 = vmatpush1.msra.mxu0 0.0
    %354 = vmatprep.subr.mxu0 0.0
    %355 = vmatpush1.msra.mxu0 0.0
    %356 = vmatprep.subr.mxu0 0.0
    %357 = vmatpush1.msra.mxu0 0.0
    %358 = vmatprep.subr.mxu0 0.0
    %359 = vmatpush1.msra.mxu0 0.0
    %360 = vmatprep.subr.mxu0 0.0
    %361 = vmatpush1.msra.mxu0 0.0
    %362 = vmatprep.subr.mxu0 0.0
    %363 = vmatpush1.msra.mxu0 0.0
    %364 = vmatprep.subr.mxu0 0.0
    %365 = vmatpush1.msra.mxu0 0.0
    %366 = vmatprep.subr.mxu0 0.0
    %367 = vmatpush1.msra.mxu0 0.0
    %368 = vmatprep.subr.mxu0 0.0
    %369 = vmatpush1.msra.mxu0 0.0
    %370 = vmatprep.subr.mxu0 0.0
    %371 = vmatpush1.msra.mxu0 0.0
    %372 = vmatprep.subr.mxu0 0.0
    %373 = vmatpush1.msra.mxu0 0.0
    %374 = vmatprep.subr.mxu0 0.0
    %375 = vmatpush1.msra.mxu0 0.0
    %376 = vmatprep.subr.mxu0 0.0
    %377 = vmatpush1.msra.mxu0 0.0
    %378 = vmatprep.subr.mxu0 0.0
    %379 = vmatpush1.msra.mxu0 0.0
    %380 = vmatprep.subr.mxu0 0.0
    %381 = vmatpush1.msra.mxu0 0.0
    %382 = vmatprep.subr.mxu0 0.0
    %383 = vmatpush1.msra.mxu0 0.0
    %384 = vmatprep.subr.mxu0 0.0
    %385 = vmatpush1.msra.mxu0 0.0
    %386 = vmatprep.subr.mxu0 0.0
    %387 = vmatpush1.msra.mxu0 0.0
    %388 = vmatprep.subr.mxu0 0.0
    %389 = vmatpush1.msra.mxu0 0.0
    %390 = vmatprep.subr.mxu0 0.0
    %391 = vmatpush1.msra.mxu0 0.0
    %392 = vmatprep.mubr.f32.mxu0 0.0
    %393 = vmatmul.mubr.f32.gmra.mrb[0].mxu0 %v92
    %v394 = vpop.f32.mrb[0].mxu0
    %v395 = vadd.f32 %v77, %v394
    %v396 = vpop.f32.mrb[0].mxu0
    %v397 = vadd.f32 %v81, %v396
    %398 = vmatprep.mubr.f32.mxu0 0.0
    %399 = vmatmul.mubr.f32.gmra.mrb[0].mxu0 %v95
    %v400 = vpop.f32.mrb[0].mxu0
    %v401 = vadd.f32 %v77, %v400
    %v402 = vpop.f32.mrb[0].mxu0
    %v403 = vadd.f32 %v81, %v402
    %404 = vdwg.mxu0
    %405 = vst [vmem:[#allocation2] sm:$0xff] %v164
    %406 = vst [vmem:[#allocation2 + $0x8] sm:$0xff] %v166
    %407 = vst [vmem:[#allocation2 + $0x10] sm:$0xff] %v241
    %408 = vst [vmem:[#allocation2 + $0x18] sm:$0xff] %v243
    %409 = vst [vmem:[#allocation2 + $0x20] sm:$0xff] %v170
    %410 = vst [vmem:[#allocation2 + $0x28] sm:$0xff] %v172
    %411 = vst [vmem:[#allocation2 + $0x30] sm:$0xff] %v247
    %412 = vst [vmem:[#allocation2 + $0x38] sm:$0xff] %v249
    %413 = vst [vmem:[#allocation3] sm:$0xff] %v318
    %414 = vst [vmem:[#allocation3 + $0x8] sm:$0xff] %v320
    %415 = vst [vmem:[#allocation3 + $0x10] sm:$0xff] %v395
    %416 = vst [vmem:[#allocation3 + $0x18] sm:$0xff] %v397
    %417 = vst [vmem:[#allocation3 + $0x20] sm:$0xff] %v324
    %418 = vst [vmem:[#allocation3 + $0x28] sm:$0xff] %v326
    %419 = vst [vmem:[#allocation3 + $0x30] sm:$0xff] %v401
    %420 = vst [vmem:[#allocation3 + $0x38] sm:$0xff] %v403
    %v421 = vld [vmem:[%s3] sm:$0xff]
    %v422 = vld [vmem:[%s3 + $0x8] sm:$0xff]
    %v423 = vld [vmem:[%s3 + $0x10] sm:$0xff]
    %v424 = vld [vmem:[%s3 + $0x18] sm:$0xff]
    %v425 = vld [vmem:[%s3 + $0x20] sm:$0xff]
    %v426 = vld [vmem:[%s3 + $0x28] sm:$0xff]
    %v427 = vld [vmem:[%s3 + $0x30] sm:$0xff]
    %v428 = vld [vmem:[%s3 + $0x38] sm:$0xff]
    %v429 = vld [vmem:[%s3 + $0x40] sm:$0xff]
    %v430 = vld [vmem:[%s3 + $0x48] sm:$0xff]
    %v431 = vld [vmem:[%s3 + $0x50] sm:$0xff]
    %v432 = vld [vmem:[%s3 + $0x58] sm:$0xff]
    %v433 = vld [vmem:[%s3 + $0x60] sm:$0xff]
    %v434 = vld [vmem:[%s3 + $0x68] sm:$0xff]
    %v435 = vld [vmem:[%s3 + $0x70] sm:$0xff]
    %v436 = vld [vmem:[%s3 + $0x78] sm:$0xff]
    %v437 = vld [vmem:[%s3 + $0x80] sm:$0xff]
    %v438 = vld [vmem:[%s3 + $0x88] sm:$0xff]
    %v439 = vld [vmem:[%s3 + $0x90] sm:$0xff]
    %v440 = vld [vmem:[%s3 + $0x98] sm:$0xff]
    %v441 = vld [vmem:[%s3 + $0xa0] sm:$0xff]
    %v442 = vld [vmem:[%s3 + $0xa8] sm:$0xff]
    %v443 = vld [vmem:[%s3 + $0xb0] sm:$0xff]
    %v444 = vld [vmem:[%s3 + $0xb8] sm:$0xff]
    %v445 = vld [vmem:[%s3 + $0xc0] sm:$0xff]
    %v446 = vld [vmem:[%s3 + $0xc8] sm:$0xff]
    %v447 = vld [vmem:[%s3 + $0xd0] sm:$0xff]
    %v448 = vld [vmem:[%s3 + $0xd8] sm:$0xff]
    %v449 = vld [vmem:[%s3 + $0xe0] sm:$0xff]
    %v450 = vld [vmem:[%s3 + $0xe8] sm:$0xff]
    %v451 = vld [vmem:[%s3 + $0xf0] sm:$0xff]
    %v452 = vld [vmem:[%s3 + $0xf8] sm:$0xff]
    %v453 = vld [vmem:[%s3 + $0x100] sm:$0xff]
    %v454 = vld [vmem:[%s3 + $0x108] sm:$0xff]
    %v455 = vld [vmem:[%s3 + $0x110] sm:$0xff]
    %v456 = vld [vmem:[%s3 + $0x118] sm:$0xff]
    %v457 = vld [vmem:[%s3 + $0x120] sm:$0xff]
    %v458 = vld [vmem:[%s3 + $0x128] sm:$0xff]
    %v459 = vld [vmem:[%s3 + $0x130] sm:$0xff]
    %v460 = vld [vmem:[%s3 + $0x138] sm:$0xff]
    %v461 = vld [vmem:[%s3 + $0x140] sm:$0xff]
    %v462 = vld [vmem:[%s3 + $0x148] sm:$0xff]
    %v463 = vld [vmem:[%s3 + $0x150] sm:$0xff]
    %v464 = vld [vmem:[%s3 + $0x158] sm:$0xff]
    %v465 = vld [vmem:[%s3 + $0x160] sm:$0xff]
    %v466 = vld [vmem:[%s3 + $0x168] sm:$0xff]
    %v467 = vld [vmem:[%s3 + $0x170] sm:$0xff]
    %v468 = vld [vmem:[%s3 + $0x178] sm:$0xff]
    %v469 = vld [vmem:[%s3 + $0x180] sm:$0xff]
    %v470 = vld [vmem:[%s3 + $0x188] sm:$0xff]
    %v471 = vld [vmem:[%s3 + $0x190] sm:$0xff]
    %v472 = vld [vmem:[%s3 + $0x198] sm:$0xff]
    %v473 = vld [vmem:[%s3 + $0x1a0] sm:$0xff]
    %v474 = vld [vmem:[%s3 + $0x1a8] sm:$0xff]
    %v475 = vld [vmem:[%s3 + $0x1b0] sm:$0xff]
    %v476 = vld [vmem:[%s3 + $0x1b8] sm:$0xff]
    %v477 = vld [vmem:[%s3 + $0x1c0] sm:$0xff]
    %v478 = vld [vmem:[%s3 + $0x1c8] sm:$0xff]
    %v479 = vld [vmem:[%s3 + $0x1d0] sm:$0xff]
    %v480 = vld [vmem:[%s3 + $0x1d8] sm:$0xff]
    %v481 = vld [vmem:[%s3 + $0x1e0] sm:$0xff]
    %v482 = vld [vmem:[%s3 + $0x1e8] sm:$0xff]
    %v483 = vld [vmem:[%s3 + $0x1f0] sm:$0xff]
    %v484 = vld [vmem:[%s3 + $0x1f8] sm:$0xff]
    %v485 = vld [vmem:[%s4] sm:$0xff]
    %v486 = vld [vmem:[%s4 + $0x8] sm:$0xff]
    %v487 = vld [vmem:[%s4 + $0x10] sm:$0xff]
    %v488 = vld [vmem:[%s4 + $0x18] sm:$0xff]
    %v489 = vld [vmem:[%s4 + $0x20] sm:$0xff]
    %v490 = vld [vmem:[%s4 + $0x28] sm:$0xff]
    %v491 = vld [vmem:[%s4 + $0x30] sm:$0xff]
    %v492 = vld [vmem:[%s4 + $0x38] sm:$0xff]
    %v493 = vld [vmem:[%s4 + $0x40] sm:$0xff]
    %v494 = vld [vmem:[%s4 + $0x48] sm:$0xff]
    %v495 = vld [vmem:[%s4 + $0x50] sm:$0xff]
    %v496 = vld [vmem:[%s4 + $0x58] sm:$0xff]
    %v497 = vld [vmem:[%s4 + $0x60] sm:$0xff]
    %v498 = vld [vmem:[%s4 + $0x68] sm:$0xff]
    %v499 = vld [vmem:[%s4 + $0x70] sm:$0xff]
    %v500 = vld [vmem:[%s4 + $0x78] sm:$0xff]
    %v501 = vld [vmem:[%s4 + $0x80] sm:$0xff]
    %v502 = vld [vmem:[%s4 + $0x88] sm:$0xff]
    %v503 = vld [vmem:[%s4 + $0x90] sm:$0xff]
    %v504 = vld [vmem:[%s4 + $0x98] sm:$0xff]
    %v505 = vld [vmem:[%s4 + $0xa0] sm:$0xff]
    %v506 = vld [vmem:[%s4 + $0xa8] sm:$0xff]
    %v507 = vld [vmem:[%s4 + $0xb0] sm:$0xff]
    %v508 = vld [vmem:[%s4 + $0xb8] sm:$0xff]
    %v509 = vld [vmem:[%s4 + $0xc0] sm:$0xff]
    %v510 = vld [vmem:[%s4 + $0xc8] sm:$0xff]
    %v511 = vld [vmem:[%s4 + $0xd0] sm:$0xff]
    %v512 = vld [vmem:[%s4 + $0xd8] sm:$0xff]
    %v513 = vld [vmem:[%s4 + $0xe0] sm:$0xff]
    %v514 = vld [vmem:[%s4 + $0xe8] sm:$0xff]
    %v515 = vld [vmem:[%s4 + $0xf0] sm:$0xff]
    %v516 = vld [vmem:[%s4 + $0xf8] sm:$0xff]
    %v517 = vld [vmem:[%s4 + $0x100] sm:$0xff]
    %v518 = vld [vmem:[%s4 + $0x108] sm:$0xff]
    %v519 = vld [vmem:[%s4 + $0x110] sm:$0xff]
    %v520 = vld [vmem:[%s4 + $0x118] sm:$0xff]
    %v521 = vld [vmem:[%s4 + $0x120] sm:$0xff]
    %v522 = vld [vmem:[%s4 + $0x128] sm:$0xff]
    %v523 = vld [vmem:[%s4 + $0x130] sm:$0xff]
    %v524 = vld [vmem:[%s4 + $0x138] sm:$0xff]
    %v525 = vld [vmem:[%s4 + $0x140] sm:$0xff]
    %v526 = vld [vmem:[%s4 + $0x148] sm:$0xff]
    %v527 = vld [vmem:[%s4 + $0x150] sm:$0xff]
    %v528 = vld [vmem:[%s4 + $0x158] sm:$0xff]
    %v529 = vld [vmem:[%s4 + $0x160] sm:$0xff]
    %v530 = vld [vmem:[%s4 + $0x168] sm:$0xff]
    %v531 = vld [vmem:[%s4 + $0x170] sm:$0xff]
    %v532 = vld [vmem:[%s4 + $0x178] sm:$0xff]
    %v533 = vld [vmem:[%s4 + $0x180] sm:$0xff]
    %v534 = vld [vmem:[%s4 + $0x188] sm:$0xff]
    %v535 = vld [vmem:[%s4 + $0x190] sm:$0xff]
    %v536 = vld [vmem:[%s4 + $0x198] sm:$0xff]
    %v537 = vld [vmem:[%s4 + $0x1a0] sm:$0xff]
    %v538 = vld [vmem:[%s4 + $0x1a8] sm:$0xff]
    %v539 = vld [vmem:[%s4 + $0x1b0] sm:$0xff]
    %v540 = vld [vmem:[%s4 + $0x1b8] sm:$0xff]
    %v541 = vld [vmem:[%s4 + $0x1c0] sm:$0xff]
    %v542 = vld [vmem:[%s4 + $0x1c8] sm:$0xff]
    %v543 = vld [vmem:[%s4 + $0x1d0] sm:$0xff]
    %v544 = vld [vmem:[%s4 + $0x1d8] sm:$0xff]
    %v545 = vld [vmem:[%s4 + $0x1e0] sm:$0xff]
    %v546 = vld [vmem:[%s4 + $0x1e8] sm:$0xff]
    %v547 = vld [vmem:[%s4 + $0x1f0] sm:$0xff]
    %v548 = vld [vmem:[%s4 + $0x1f8] sm:$0xff]
    %v549 = vld [vmem:[#allocation2] sm:$0x3]
    %v550 = vld [vmem:[#allocation2 + $0x8] sm:$0x3]
    %v551 = vld [vmem:[#allocation2 + $0x10] sm:$0x3]
    %v552 = vld [vmem:[#allocation2 + $0x18] sm:$0x3]
    %553 = vmatprep.subr.mxu0 %v422
    %554 = vmatpush1.msra.mxu0 %v421
    %555 = vmatprep.subr.mxu0 %v426
    %556 = vmatpush1.msra.mxu0 %v425
    %557 = vmatprep.subr.mxu0 %v430
    %558 = vmatpush1.msra.mxu0 %v429
    %559 = vmatprep.subr.mxu0 %v434
    %560 = vmatpush1.msra.mxu0 %v433
    %561 = vmatprep.subr.mxu0 %v438
    %562 = vmatpush1.msra.mxu0 %v437
    %563 = vmatprep.subr.mxu0 %v442
    %564 = vmatpush1.msra.mxu0 %v441
    %565 = vmatprep.subr.mxu0 %v446
    %566 = vmatpush1.msra.mxu0 %v445
    %567 = vmatprep.subr.mxu0 %v450
    %568 = vmatpush1.msra.mxu0 %v449
    %569 = vmatprep.subr.mxu0 %v454
    %570 = vmatpush1.msra.mxu0 %v453
    %571 = vmatprep.subr.mxu0 %v458
    %572 = vmatpush1.msra.mxu0 %v457
    %573 = vmatprep.subr.mxu0 %v462
    %574 = vmatpush1.msra.mxu0 %v461
    %575 = vmatprep.subr.mxu0 %v466
    %576 = vmatpush1.msra.mxu0 %v465
    %577 = vmatprep.subr.mxu0 %v470
    %578 = vmatpush1.msra.mxu0 %v469
    %579 = vmatprep.subr.mxu0 %v474
    %580 = vmatpush1.msra.mxu0 %v473
    %581 = vmatprep.subr.mxu0 %v478
    %582 = vmatpush1.msra.mxu0 %v477
    %583 = vmatprep.subr.mxu0 %v482
    %584 = vmatpush1.msra.mxu0 %v481
    %585 = vmatprep.subr.mxu0 0.0
    %586 = vmatpush1.msra.mxu0 0.0
    %587 = vmatprep.subr.mxu0 0.0
    %588 = vmatpush1.msra.mxu0 0.0
    %589 = vmatprep.subr.mxu0 0.0
    %590 = vmatpush1.msra.mxu0 0.0
    %591 = vmatprep.subr.mxu0 0.0
    %592 = vmatpush1.msra.mxu0 0.0
    %593 = vmatprep.subr.mxu0 0.0
    %594 = vmatpush1.msra.mxu0 0.0
    %595 = vmatprep.subr.mxu0 0.0
    %596 = vmatpush1.msra.mxu0 0.0
    %597 = vmatprep.subr.mxu0 0.0
    %598 = vmatpush1.msra.mxu0 0.0
    %599 = vmatprep.subr.mxu0 0.0
    %600 = vmatpush1.msra.mxu0 0.0
    %601 = vmatprep.subr.mxu0 0.0
    %602 = vmatpush1.msra.mxu0 0.0
    %603 = vmatprep.subr.mxu0 0.0
    %604 = vmatpush1.msra.mxu0 0.0
    %605 = vmatprep.subr.mxu0 0.0
    %606 = vmatpush1.msra.mxu0 0.0
    %607 = vmatprep.subr.mxu0 0.0
    %608 = vmatpush1.msra.mxu0 0.0
    %609 = vmatprep.subr.mxu0 0.0
    %610 = vmatpush1.msra.mxu0 0.0
    %611 = vmatprep.subr.mxu0 0.0
    %612 = vmatpush1.msra.mxu0 0.0
    %613 = vmatprep.subr.mxu0 0.0
    %614 = vmatpush1.msra.mxu0 0.0
    %615 = vmatprep.subr.mxu0 0.0
    %616 = vmatpush1.msra.mxu0 0.0
    %617 = vmatprep.mubr.f32.mxu0 0.0
    %618 = vmatmul.mubr.f32.gmra.mrb[0].mxu0 0.0
    %v619 = vpop.f32.mrb[0].mxu0
    %v620 = vadd.f32 0.0, %v619
    %v621 = vpop.f32.mrb[0].mxu0
    %v622 = vadd.f32 0.0, %v621
    %623 = vdwg.mxu0
    %624 = vmatprep.subr.mxu0 %v424
    %625 = vmatpush1.msra.mxu0 %v423
    %626 = vmatprep.subr.mxu0 %v428
    %627 = vmatpush1.msra.mxu0 %v427
    %628 = vmatprep.subr.mxu0 %v432
    %629 = vmatpush1.msra.mxu0 %v431
    %630 = vmatprep.subr.mxu0 %v436
    %631 = vmatpush1.msra.mxu0 %v435
    %632 = vmatprep.subr.mxu0 %v440
    %633 = vmatpush1.msra.mxu0 %v439
    %634 = vmatprep.subr.mxu0 %v444
    %635 = vmatpush1.msra.mxu0 %v443
    %636 = vmatprep.subr.mxu0 %v448
    %637 = vmatpush1.msra.mxu0 %v447
    %638 = vmatprep.subr.mxu0 %v452
    %639 = vmatpush1.msra.mxu0 %v451
    %640 = vmatprep.subr.mxu0 %v456
    %641 = vmatpush1.msra.mxu0 %v455
    %642 = vmatprep.subr.mxu0 %v460
    %643 = vmatpush1.msra.mxu0 %v459
    %644 = vmatprep.subr.mxu0 %v464
    %645 = vmatpush1.msra.mxu0 %v463
    %646 = vmatprep.subr.mxu0 %v468
    %647 = vmatpush1.msra.mxu0 %v467
    %648 = vmatprep.subr.mxu0 %v472
    %649 = vmatpush1.msra.mxu0 %v471
    %650 = vmatprep.subr.mxu0 %v476
    %651 = vmatpush1.msra.mxu0 %v475
    %652 = vmatprep.subr.mxu0 %v480
    %653 = vmatpush1.msra.mxu0 %v479
    %654 = vmatprep.subr.mxu0 %v484
    %655 = vmatpush1.msra.mxu0 %v483
    %656 = vmatprep.subr.mxu0 0.0
    %657 = vmatpush1.msra.mxu0 0.0
    %658 = vmatprep.subr.mxu0 0.0
    %659 = vmatpush1.msra.mxu0 0.0
    %660 = vmatprep.subr.mxu0 0.0
    %661 = vmatpush1.msra.mxu0 0.0
    %662 = vmatprep.subr.mxu0 0.0
    %663 = vmatpush1.msra.mxu0 0.0
    %664 = vmatprep.subr.mxu0 0.0
    %665 = vmatpush1.msra.mxu0 0.0
    %666 = vmatprep.subr.mxu0 0.0
    %667 = vmatpush1.msra.mxu0 0.0
    %668 = vmatprep.subr.mxu0 0.0
    %669 = vmatpush1.msra.mxu0 0.0
    %670 = vmatprep.subr.mxu0 0.0
    %671 = vmatpush1.msra.mxu0 0.0
    %672 = vmatprep.subr.mxu0 0.0
    %673 = vmatpush1.msra.mxu0 0.0
    %674 = vmatprep.subr.mxu0 0.0
    %675 = vmatpush1.msra.mxu0 0.0
    %676 = vmatprep.subr.mxu0 0.0
    %677 = vmatpush1.msra.mxu0 0.0
    %678 = vmatprep.subr.mxu0 0.0
    %679 = vmatpush1.msra.mxu0 0.0
    %680 = vmatprep.subr.mxu0 0.0
    %681 = vmatpush1.msra.mxu0 0.0
    %682 = vmatprep.subr.mxu0 0.0
    %683 = vmatpush1.msra.mxu0 0.0
    %684 = vmatprep.subr.mxu0 0.0
    %685 = vmatpush1.msra.mxu0 0.0
    %686 = vmatprep.subr.mxu0 0.0
    %687 = vmatpush1.msra.mxu0 0.0
    %688 = vmatprep.mubr.f32.mxu0 0.0
    %689 = vmatmul.mubr.f32.gmra.mrb[0].mxu0 0.0
    %v690 = vpop.f32.mrb[0].mxu0
    %v691 = vadd.f32 0.0, %v690
    %v692 = vpop.f32.mrb[0].mxu0
    %v693 = vadd.f32 0.0, %v692
    %694 = vdwg.mxu0
    %v695 = vadd.f32 %v549, %v620
    %v696 = vadd.f32 %v550, %v622
    %v697 = vadd.f32 %v551, %v691
    %v698 = vadd.f32 %v552, %v693
    %v699 = vxor.u32 %v695, 2147483648
    %v700 = vmul.f32 %v699, 1.442695
    %v701 = vpow.pop %v700
    %v702 = vadd.f32 %v701, 1.0
    %v703 = vrcp.pop %v702
    %v704 = vmul.f32 1.0, %v703
    %v705 = vxor.u32 %v696, 2147483648
    %v706 = vmul.f32 %v705, 1.442695
    %v707 = vpow.pop %v706
    %v708 = vadd.f32 %v707, 1.0
    %v709 = vrcp.pop %v708
    %v710 = vmul.f32 1.0, %v709
    %v711 = vtanh.pop %v697
    %v712 = vxor.u32 %v698, 2147483648
    %v713 = vmul.f32 %v712, 1.442695
    %v714 = vpow.pop %v713
    %v715 = vadd.f32 %v714, 1.0
    %v716 = vrcp.pop %v715
    %v717 = vmul.f32 1.0, %v716
    %v718 = vmul.f32 %v710, 0.0
    %v719 = vmul.f32 %v704, %v711
    %v720 = vadd.f32 %v718, %v719
    %v721 = vtanh.pop %v720
    %v722 = vmul.f32 %v717, %v721
    %v723 = vld [vmem:[#allocation3 + $0x20] sm:$0xc0]
    %v724 = vld [vmem:[#allocation3 + $0x28] sm:$0xc0]
    %v725 = vld [vmem:[#allocation3 + $0x30] sm:$0xc0]
    %v726 = vld [vmem:[#allocation3 + $0x38] sm:$0xc0]
    %727 = vmatprep.subr.mxu0 %v486
    %728 = vmatpush1.msra.mxu0 %v485
    %729 = vmatprep.subr.mxu0 %v490
    %730 = vmatpush1.msra.mxu0 %v489
    %731 = vmatprep.subr.mxu0 %v494
    %732 = vmatpush1.msra.mxu0 %v493
    %733 = vmatprep.subr.mxu0 %v498
    %734 = vmatpush1.msra.mxu0 %v497
    %735 = vmatprep.subr.mxu0 %v502
    %736 = vmatpush1.msra.mxu0 %v501
    %737 = vmatprep.subr.mxu0 %v506
    %738 = vmatpush1.msra.mxu0 %v505
    %739 = vmatprep.subr.mxu0 %v510
    %740 = vmatpush1.msra.mxu0 %v509
    %741 = vmatprep.subr.mxu0 %v514
    %742 = vmatpush1.msra.mxu0 %v513
    %743 = vmatprep.subr.mxu0 %v518
    %744 = vmatpush1.msra.mxu0 %v517
    %745 = vmatprep.subr.mxu0 %v522
    %746 = vmatpush1.msra.mxu0 %v521
    %747 = vmatprep.subr.mxu0 %v526
    %748 = vmatpush1.msra.mxu0 %v525
    %749 = vmatprep.subr.mxu0 %v530
    %750 = vmatpush1.msra.mxu0 %v529
    %751 = vmatprep.subr.mxu0 %v534
    %752 = vmatpush1.msra.mxu0 %v533
    %753 = vmatprep.subr.mxu0 %v538
    %754 = vmatpush1.msra.mxu0 %v537
    %755 = vmatprep.subr.mxu0 %v542
    %756 = vmatpush1.msra.mxu0 %v541
    %757 = vmatprep.subr.mxu0 %v546
    %758 = vmatpush1.msra.mxu0 %v545
    %759 = vmatprep.subr.mxu0 0.0
    %760 = vmatpush1.msra.mxu0 0.0
    %761 = vmatprep.subr.mxu0 0.0
    %762 = vmatpush1.msra.mxu0 0.0
    %763 = vmatprep.subr.mxu0 0.0
    %764 = vmatpush1.msra.mxu0 0.0
    %765 = vmatprep.subr.mxu0 0.0
    %766 = vmatpush1.msra.mxu0 0.0
    %767 = vmatprep.subr.mxu0 0.0
    %768 = vmatpush1.msra.mxu0 0.0
    %769 = vmatprep.subr.mxu0 0.0
    %770 = vmatpush1.msra.mxu0 0.0
    %771 = vmatprep.subr.mxu0 0.0
    %772 = vmatpush1.msra.mxu0 0.0
    %773 = vmatprep.subr.mxu0 0.0
    %774 = vmatpush1.msra.mxu0 0.0
    %775 = vmatprep.subr.mxu0 0.0
    %776 = vmatpush1.msra.mxu0 0.0
    %777 = vmatprep.subr.mxu0 0.0
    %778 = vmatpush1.msra.mxu0 0.0
    %779 = vmatprep.subr.mxu0 0.0
    %780 = vmatpush1.msra.mxu0 0.0
    %781 = vmatprep.subr.mxu0 0.0
    %782 = vmatpush1.msra.mxu0 0.0
    %783 = vmatprep.subr.mxu0 0.0
    %784 = vmatpush1.msra.mxu0 0.0
    %785 = vmatprep.subr.mxu0 0.0
    %786 = vmatpush1.msra.mxu0 0.0
    %787 = vmatprep.subr.mxu0 0.0
    %788 = vmatpush1.msra.mxu0 0.0
    %789 = vmatprep.subr.mxu0 0.0
    %790 = vmatpush1.msra.mxu0 0.0
    %791 = vmatprep.mubr.f32.mxu0 0.0
    %792 = vmatmul.mubr.f32.gmra.mrb[0].mxu0 0.0
    %v793 = vpop.f32.mrb[0].mxu0
    %v794 = vadd.f32 0.0, %v793
    %v795 = vpop.f32.mrb[0].mxu0
    %v796 = vadd.f32 0.0, %v795
    %797 = vdwg.mxu0
    %798 = vmatprep.subr.mxu0 %v488
    %799 = vmatpush1.msra.mxu0 %v487
    %800 = vmatprep.subr.mxu0 %v492
    %801 = vmatpush1.msra.mxu0 %v491
    %802 = vmatprep.subr.mxu0 %v496
    %803 = vmatpush1.msra.mxu0 %v495
    %804 = vmatprep.subr.mxu0 %v500
    %805 = vmatpush1.msra.mxu0 %v499
    %806 = vmatprep.subr.mxu0 %v504
    %807 = vmatpush1.msra.mxu0 %v503
    %808 = vmatprep.subr.mxu0 %v508
    %809 = vmatpush1.msra.mxu0 %v507
    %810 = vmatprep.subr.mxu0 %v512
    %811 = vmatpush1.msra.mxu0 %v511
    %812 = vmatprep.subr.mxu0 %v516
    %813 = vmatpush1.msra.mxu0 %v515
    %814 = vmatprep.subr.mxu0 %v520
    %815 = vmatpush1.msra.mxu0 %v519
    %816 = vmatprep.subr.mxu0 %v524
    %817 = vmatpush1.msra.mxu0 %v523
    %818 = vmatprep.subr.mxu0 %v528
    %819 = vmatpush1.msra.mxu0 %v527
    %820 = vmatprep.subr.mxu0 %v532
    %821 = vmatpush1.msra.mxu0 %v531
    %822 = vmatprep.subr.mxu0 %v536
    %823 = vmatpush1.msra.mxu0 %v535
    %824 = vmatprep.subr.mxu0 %v540
    %825 = vmatpush1.msra.mxu0 %v539
    %826 = vmatprep.subr.mxu0 %v544
    %827 = vmatpush1.msra.mxu0 %v543
    %828 = vmatprep.subr.mxu0 %v548
    %829 = vmatpush1.msra.mxu0 %v547
    %830 = vmatprep.subr.mxu0 0.0
    %831 = vmatpush1.msra.mxu0 0.0
    %832 = vmatprep.subr.mxu0 0.0
    %833 = vmatpush1.msra.mxu0 0.0
    %834 = vmatprep.subr.mxu0 0.0
    %835 = vmatpush1.msra.mxu0 0.0
    %836 = vmatprep.subr.mxu0 0.0
    %837 = vmatpush1.msra.mxu0 0.0
    %838 = vmatprep.subr.mxu0 0.0
    %839 = vmatpush1.msra.mxu0 0.0
    %840 = vmatprep.subr.mxu0 0.0
    %841 = vmatpush1.msra.mxu0 0.0
    %842 = vmatprep.subr.mxu0 0.0
    %843 = vmatpush1.msra.mxu0 0.0
    %844 = vmatprep.subr.mxu0 0.0
    %845 = vmatpush1.msra.mxu0 0.0
    %846 = vmatprep.subr.mxu0 0.0
    %847 = vmatpush1.msra.mxu0 0.0
    %848 = vmatprep.subr.mxu0 0.0
    %849 = vmatpush1.msra.mxu0 0.0
    %850 = vmatprep.subr.mxu0 0.0
    %851 = vmatpush1.msra.mxu0 0.0
    %852 = vmatprep.subr.mxu0 0.0
    %853 = vmatpush1.msra.mxu0 0.0
    %854 = vmatprep.subr.mxu0 0.0
    %855 = vmatpush1.msra.mxu0 0.0
    %856 = vmatprep.subr.mxu0 0.0
    %857 = vmatpush1.msra.mxu0 0.0
    %858 = vmatprep.subr.mxu0 0.0
    %859 = vmatpush1.msra.mxu0 0.0
    %860 = vmatprep.subr.mxu0 0.0
    %861 = vmatpush1.msra.mxu0 0.0
    %862 = vmatprep.mubr.f32.mxu0 0.0
    %863 = vmatmul.mubr.f32.gmra.mrb[0].mxu0 0.0
    %v864 = vpop.f32.mrb[0].mxu0
    %v865 = vadd.f32 0.0, %v864
    %v866 = vpop.f32.mrb[0].mxu0
    %v867 = vadd.f32 0.0, %v866
    %868 = vdwg.mxu0
    %v873 = vrot.slane %v794, 2
    %v874 = vrot.slane %v796, 2
    %v875 = vrot.slane %v865, 2
    %v876 = vrot.slane %v867, 2
    %v881 = vadd.f32 %v723, %v873
    %v882 = vadd.f32 %v724, %v874
    %v883 = vadd.f32 %v725, %v875
    %v884 = vadd.f32 %v726, %v876
    %v885 = vxor.u32 %v881, 2147483648
    %v886 = vmul.f32 %v885, 1.442695
    %v887 = vpow.pop %v886
    %v888 = vadd.f32 %v887, 1.0
    %v889 = vrcp.pop %v888
    %v890 = vmul.f32 1.0, %v889
    %v891 = vxor.u32 %v882, 2147483648
    %v892 = vmul.f32 %v891, 1.442695
    %v893 = vpow.pop %v892
    %v894 = vadd.f32 %v893, 1.0
    %v895 = vrcp.pop %v894
    %v896 = vmul.f32 1.0, %v895
    %v897 = vtanh.pop %v883
    %v898 = vxor.u32 %v884, 2147483648
    %v899 = vmul.f32 %v898, 1.442695
    %v900 = vpow.pop %v899
    %v901 = vadd.f32 %v900, 1.0
    %v902 = vrcp.pop %v901
    %v903 = vmul.f32 1.0, %v902
    %v904 = vmul.f32 %v896, 0.0
    %v905 = vmul.f32 %v890, %v897
    %v906 = vadd.f32 %v904, %v905
    %v907 = vtanh.pop %v906
    %v908 = vmul.f32 %v903, %v907
    %909 = vst [vmem:[#allocation4] sm:$0x3] %v722
    %910 = vst [vmem:[#allocation5 + $0x8] sm:$0xc0] %v908
    %v911 = vld [vmem:[#allocation2] sm:$0xc]
    %v912 = vld [vmem:[#allocation2 + $0x8] sm:$0xc]
    %v913 = vld [vmem:[#allocation2 + $0x10] sm:$0xc]
    %v914 = vld [vmem:[#allocation2 + $0x18] sm:$0xc]
    %915 = vmatprep.subr.mxu0 %v422
    %916 = vmatpush1.msra.mxu0 %v421
    %917 = vmatprep.subr.mxu0 %v426
    %918 = vmatpush1.msra.mxu0 %v425
    %919 = vmatprep.subr.mxu0 %v430
    %920 = vmatpush1.msra.mxu0 %v429
    %921 = vmatprep.subr.mxu0 %v434
    %922 = vmatpush1.msra.mxu0 %v433
    %923 = vmatprep.subr.mxu0 %v438
    %924 = vmatpush1.msra.mxu0 %v437
    %925 = vmatprep.subr.mxu0 %v442
    %926 = vmatpush1.msra.mxu0 %v441
    %927 = vmatprep.subr.mxu0 %v446
    %928 = vmatpush1.msra.mxu0 %v445
    %929 = vmatprep.subr.mxu0 %v450
    %930 = vmatpush1.msra.mxu0 %v449
    %931 = vmatprep.subr.mxu0 %v454
    %932 = vmatpush1.msra.mxu0 %v453
    %933 = vmatprep.subr.mxu0 %v458
    %934 = vmatpush1.msra.mxu0 %v457
    %935 = vmatprep.subr.mxu0 %v462
    %936 = vmatpush1.msra.mxu0 %v461
    %937 = vmatprep.subr.mxu0 %v466
    %938 = vmatpush1.msra.mxu0 %v465
    %939 = vmatprep.subr.mxu0 %v470
    %940 = vmatpush1.msra.mxu0 %v469
    %941 = vmatprep.subr.mxu0 %v474
    %942 = vmatpush1.msra.mxu0 %v473
    %943 = vmatprep.subr.mxu0 %v478
    %944 = vmatpush1.msra.mxu0 %v477
    %945 = vmatprep.subr.mxu0 %v482
    %946 = vmatpush1.msra.mxu0 %v481
    %947 = vmatprep.subr.mxu0 0.0
    %948 = vmatpush1.msra.mxu0 0.0
    %949 = vmatprep.subr.mxu0 0.0
    %950 = vmatpush1.msra.mxu0 0.0
    %951 = vmatprep.subr.mxu0 0.0
    %952 = vmatpush1.msra.mxu0 0.0
    %953 = vmatprep.subr.mxu0 0.0
    %954 = vmatpush1.msra.mxu0 0.0
    %955 = vmatprep.subr.mxu0 0.0
    %956 = vmatpush1.msra.mxu0 0.0
    %957 = vmatprep.subr.mxu0 0.0
    %958 = vmatpush1.msra.mxu0 0.0
    %959 = vmatprep.subr.mxu0 0.0
    %960 = vmatpush1.msra.mxu0 0.0
    %961 = vmatprep.subr.mxu0 0.0
    %962 = vmatpush1.msra.mxu0 0.0
    %963 = vmatprep.subr.mxu0 0.0
    %964 = vmatpush1.msra.mxu0 0.0
    %965 = vmatprep.subr.mxu0 0.0
    %966 = vmatpush1.msra.mxu0 0.0
    %967 = vmatprep.subr.mxu0 0.0
    %968 = vmatpush1.msra.mxu0 0.0
    %969 = vmatprep.subr.mxu0 0.0
    %970 = vmatpush1.msra.mxu0 0.0
    %971 = vmatprep.subr.mxu0 0.0
    %972 = vmatpush1.msra.mxu0 0.0
    %973 = vmatprep.subr.mxu0 0.0
    %974 = vmatpush1.msra.mxu0 0.0
    %975 = vmatprep.subr.mxu0 0.0
    %976 = vmatpush1.msra.mxu0 0.0
    %977 = vmatprep.subr.mxu0 0.0
    %978 = vmatpush1.msra.mxu0 0.0
    %979 = vmatprep.mubr.f32.mxu0 0.0
    %980 = vmatmul.mubr.f32.gmra.mrb[0].mxu0 %v722
    %v981 = vpop.f32.mrb[0].mxu0
    %v982 = vadd.f32 0.0, %v981
    %v983 = vpop.f32.mrb[0].mxu0
    %v984 = vadd.f32 0.0, %v983
    %985 = vdwg.mxu0
    %986 = vmatprep.subr.mxu0 %v424
    %987 = vmatpush1.msra.mxu0 %v423
    %988 = vmatprep.subr.mxu0 %v428
    %989 = vmatpush1.msra.mxu0 %v427
    %990 = vmatprep.subr.mxu0 %v432
    %991 = vmatpush1.msra.mxu0 %v431
    %992 = vmatprep.subr.mxu0 %v436
    %993 = vmatpush1.msra.mxu0 %v435
    %994 = vmatprep.subr.mxu0 %v440
    %995 = vmatpush1.msra.mxu0 %v439
    %996 = vmatprep.subr.mxu0 %v444
    %997 = vmatpush1.msra.mxu0 %v443
    %998 = vmatprep.subr.mxu0 %v448
    %999 = vmatpush1.msra.mxu0 %v447
    %1000 = vmatprep.subr.mxu0 %v452
    %1001 = vmatpush1.msra.mxu0 %v451
    %1002 = vmatprep.subr.mxu0 %v456
    %1003 = vmatpush1.msra.mxu0 %v455
    %1004 = vmatprep.subr.mxu0 %v460
    %1005 = vmatpush1.msra.mxu0 %v459
    %1006 = vmatprep.subr.mxu0 %v464
    %1007 = vmatpush1.msra.mxu0 %v463
    %1008 = vmatprep.subr.mxu0 %v468
    %1009 = vmatpush1.msra.mxu0 %v467
    %1010 = vmatprep.subr.mxu0 %v472
    %1011 = vmatpush1.msra.mxu0 %v471
    %1012 = vmatprep.subr.mxu0 %v476
    %1013 = vmatpush1.msra.mxu0 %v475
    %1014 = vmatprep.subr.mxu0 %v480
    %1015 = vmatpush1.msra.mxu0 %v479
    %1016 = vmatprep.subr.mxu0 %v484
    %1017 = vmatpush1.msra.mxu0 %v483
    %1018 = vmatprep.subr.mxu0 0.0
    %1019 = vmatpush1.msra.mxu0 0.0
    %1020 = vmatprep.subr.mxu0 0.0
    %1021 = vmatpush1.msra.mxu0 0.0
    %1022 = vmatprep.subr.mxu0 0.0
    %1023 = vmatpush1.msra.mxu0 0.0
    %1024 = vmatprep.subr.mxu0 0.0
    %1025 = vmatpush1.msra.mxu0 0.0
    %1026 = vmatprep.subr.mxu0 0.0
    %1027 = vmatpush1.msra.mxu0 0.0
    %1028 = vmatprep.subr.mxu0 0.0
    %1029 = vmatpush1.msra.mxu0 0.0
    %1030 = vmatprep.subr.mxu0 0.0
    %1031 = vmatpush1.msra.mxu0 0.0
    %1032 = vmatprep.subr.mxu0 0.0
    %1033 = vmatpush1.msra.mxu0 0.0
    %1034 = vmatprep.subr.mxu0 0.0
    %1035 = vmatpush1.msra.mxu0 0.0
    %1036 = vmatprep.subr.mxu0 0.0
    %1037 = vmatpush1.msra.mxu0 0.0
    %1038 = vmatprep.subr.mxu0 0.0
    %1039 = vmatpush1.msra.mxu0 0.0
    %1040 = vmatprep.subr.mxu0 0.0
    %1041 = vmatpush1.msra.mxu0 0.0
    %1042 = vmatprep.subr.mxu0 0.0
    %1043 = vmatpush1.msra.mxu0 0.0
    %1044 = vmatprep.subr.mxu0 0.0
    %1045 = vmatpush1.msra.mxu0 0.0
    %1046 = vmatprep.subr.mxu0 0.0
    %1047 = vmatpush1.msra.mxu0 0.0
    %1048 = vmatprep.subr.mxu0 0.0
    %1049 = vmatpush1.msra.mxu0 0.0
    %1050 = vmatprep.mubr.f32.mxu0 0.0
    %1051 = vmatmul.mubr.f32.gmra.mrb[0].mxu0 %v722
    %v1052 = vpop.f32.mrb[0].mxu0
    %v1053 = vadd.f32 0.0, %v1052
    %v1054 = vpop.f32.mrb[0].mxu0
    %v1055 = vadd.f32 0.0, %v1054
    %1056 = vdwg.mxu0
    %v1061 = vrot.slane %v982, 6
    %v1062 = vrot.slane %v984, 6
    %v1063 = vrot.slane %v1053, 6
    %v1064 = vrot.slane %v1055, 6
    %v1069 = vadd.f32 %v911, %v1061
    %v1070 = vadd.f32 %v912, %v1062
    %v1071 = vadd.f32 %v913, %v1063
    %v1072 = vadd.f32 %v914, %v1064
    %v1073 = vxor.u32 %v1069, 2147483648
    %v1074 = vmul.f32 %v1073, 1.442695
    %v1075 = vpow.pop %v1074
    %v1076 = vadd.f32 %v1075, 1.0
    %v1077 = vrcp.pop %v1076
    %v1078 = vmul.f32 1.0, %v1077
    %v1079 = vxor.u32 %v1070, 2147483648
    %v1080 = vmul.f32 %v1079, 1.442695
    %v1081 = vpow.pop %v1080
    %v1082 = vadd.f32 %v1081, 1.0
    %v1083 = vrcp.pop %v1082
    %v1084 = vmul.f32 1.0, %v1083
    %v1085 = vtanh.pop %v1071
    %v1086 = vxor.u32 %v1072, 2147483648
    %v1087 = vmul.f32 %v1086, 1.442695
    %v1088 = vpow.pop %v1087
    %v1089 = vadd.f32 %v1088, 1.0
    %v1090 = vrcp.pop %v1089
    %v1091 = vmul.f32 1.0, %v1090
    %v1093 = vrot.slane %v720, 6
    %v1095 = vmul.f32 %v1084, %v1093
    %v1096 = vmul.f32 %v1078, %v1085
    %v1097 = vadd.f32 %v1095, %v1096
    %v1098 = vtanh.pop %v1097
    %v1099 = vmul.f32 %v1091, %v1098
    %v1100 = vld [vmem:[#allocation3 + $0x20] sm:$0x30]
    %v1101 = vld [vmem:[#allocation3 + $0x28] sm:$0x30]
    %v1102 = vld [vmem:[#allocation3 + $0x30] sm:$0x30]
    %v1103 = vld [vmem:[#allocation3 + $0x38] sm:$0x30]
    %v1105 = vrot.slane %v908, 6
    %1107 = vmatprep.subr.mxu0 %v486
    %1108 = vmatpush1.msra.mxu0 %v485
    %1109 = vmatprep.subr.mxu0 %v490
    %1110 = vmatpush1.msra.mxu0 %v489
    %1111 = vmatprep.subr.mxu0 %v494
    %1112 = vmatpush1.msra.mxu0 %v493
    %1113 = vmatprep.subr.mxu0 %v498
    %1114 = vmatpush1.msra.mxu0 %v497
    %1115 = vmatprep.subr.mxu0 %v502
    %1116 = vmatpush1.msra.mxu0 %v501
    %1117 = vmatprep.subr.mxu0 %v506
    %1118 = vmatpush1.msra.mxu0 %v505
    %1119 = vmatprep.subr.mxu0 %v510
    %1120 = vmatpush1.msra.mxu0 %v509
    %1121 = vmatprep.subr.mxu0 %v514
    %1122 = vmatpush1.msra.mxu0 %v513
    %1123 = vmatprep.subr.mxu0 %v518
    %1124 = vmatpush1.msra.mxu0 %v517
    %1125 = vmatprep.subr.mxu0 %v522
    %1126 = vmatpush1.msra.mxu0 %v521
    %1127 = vmatprep.subr.mxu0 %v526
    %1128 = vmatpush1.msra.mxu0 %v525
    %1129 = vmatprep.subr.mxu0 %v530
    %1130 = vmatpush1.msra.mxu0 %v529
    %1131 = vmatprep.subr.mxu0 %v534
    %1132 = vmatpush1.msra.mxu0 %v533
    %1133 = vmatprep.subr.mxu0 %v538
    %1134 = vmatpush1.msra.mxu0 %v537
    %1135 = vmatprep.subr.mxu0 %v542
    %1136 = vmatpush1.msra.mxu0 %v541
    %1137 = vmatprep.subr.mxu0 %v546
    %1138 = vmatpush1.msra.mxu0 %v545
    %1139 = vmatprep.subr.mxu0 0.0
    %1140 = vmatpush1.msra.mxu0 0.0
    %1141 = vmatprep.subr.mxu0 0.0
    %1142 = vmatpush1.msra.mxu0 0.0
    %1143 = vmatprep.subr.mxu0 0.0
    %1144 = vmatpush1.msra.mxu0 0.0
    %1145 = vmatprep.subr.mxu0 0.0
    %1146 = vmatpush1.msra.mxu0 0.0
    %1147 = vmatprep.subr.mxu0 0.0
    %1148 = vmatpush1.msra.mxu0 0.0
    %1149 = vmatprep.subr.mxu0 0.0
    %1150 = vmatpush1.msra.mxu0 0.0
    %1151 = vmatprep.subr.mxu0 0.0
    %1152 = vmatpush1.msra.mxu0 0.0
    %1153 = vmatprep.subr.mxu0 0.0
    %1154 = vmatpush1.msra.mxu0 0.0
    %1155 = vmatprep.subr.mxu0 0.0
    %1156 = vmatpush1.msra.mxu0 0.0
    %1157 = vmatprep.subr.mxu0 0.0
    %1158 = vmatpush1.msra.mxu0 0.0
    %1159 = vmatprep.subr.mxu0 0.0
    %1160 = vmatpush1.msra.mxu0 0.0
    %1161 = vmatprep.subr.mxu0 0.0
    %1162 = vmatpush1.msra.mxu0 0.0
    %1163 = vmatprep.subr.mxu0 0.0
    %1164 = vmatpush1.msra.mxu0 0.0
    %1165 = vmatprep.subr.mxu0 0.0
    %1166 = vmatpush1.msra.mxu0 0.0
    %1167 = vmatprep.subr.mxu0 0.0
    %1168 = vmatpush1.msra.mxu0 0.0
    %1169 = vmatprep.subr.mxu0 0.0
    %1170 = vmatpush1.msra.mxu0 0.0
    %1171 = vmatprep.mubr.f32.mxu0 0.0
    %1172 = vmatmul.mubr.f32.gmra.mrb[0].mxu0 %v1105
    %v1173 = vpop.f32.mrb[0].mxu0
    %v1174 = vadd.f32 0.0, %v1173
    %v1175 = vpop.f32.mrb[0].mxu0
    %v1176 = vadd.f32 0.0, %v1175
    %1177 = vdwg.mxu0
    %1178 = vmatprep.subr.mxu0 %v488
    %1179 = vmatpush1.msra.mxu0 %v487
    %1180 = vmatprep.subr.mxu0 %v492
    %1181 = vmatpush1.msra.mxu0 %v491
    %1182 = vmatprep.subr.mxu0 %v496
    %1183 = vmatpush1.msra.mxu0 %v495
    %1184 = vmatprep.subr.mxu0 %v500
    %1185 = vmatpush1.msra.mxu0 %v499
    %1186 = vmatprep.subr.mxu0 %v504
    %1187 = vmatpush1.msra.mxu0 %v503
    %1188 = vmatprep.subr.mxu0 %v508
    %1189 = vmatpush1.msra.mxu0 %v507
    %1190 = vmatprep.subr.mxu0 %v512
    %1191 = vmatpush1.msra.mxu0 %v511
    %1192 = vmatprep.subr.mxu0 %v516
    %1193 = vmatpush1.msra.mxu0 %v515
    %1194 = vmatprep.subr.mxu0 %v520
    %1195 = vmatpush1.msra.mxu0 %v519
    %1196 = vmatprep.subr.mxu0 %v524
    %1197 = vmatpush1.msra.mxu0 %v523
    %1198 = vmatprep.subr.mxu0 %v528
    %1199 = vmatpush1.msra.mxu0 %v527
    %1200 = vmatprep.subr.mxu0 %v532
    %1201 = vmatpush1.msra.mxu0 %v531
    %1202 = vmatprep.subr.mxu0 %v536
    %1203 = vmatpush1.msra.mxu0 %v535
    %1204 = vmatprep.subr.mxu0 %v540
    %1205 = vmatpush1.msra.mxu0 %v539
    %1206 = vmatprep.subr.mxu0 %v544
    %1207 = vmatpush1.msra.mxu0 %v543
    %1208 = vmatprep.subr.mxu0 %v548
    %1209 = vmatpush1.msra.mxu0 %v547
    %1210 = vmatprep.subr.mxu0 0.0
    %1211 = vmatpush1.msra.mxu0 0.0
    %1212 = vmatprep.subr.mxu0 0.0
    %1213 = vmatpush1.msra.mxu0 0.0
    %1214 = vmatprep.subr.mxu0 0.0
    %1215 = vmatpush1.msra.mxu0 0.0
    %1216 = vmatprep.subr.mxu0 0.0
    %1217 = vmatpush1.msra.mxu0 0.0
    %1218 = vmatprep.subr.mxu0 0.0
    %1219 = vmatpush1.msra.mxu0 0.0
    %1220 = vmatprep.subr.mxu0 0.0
    %1221 = vmatpush1.msra.mxu0 0.0
    %1222 = vmatprep.subr.mxu0 0.0
    %1223 = vmatpush1.msra.mxu0 0.0
    %1224 = vmatprep.subr.mxu0 0.0
    %1225 = vmatpush1.msra.mxu0 0.0
    %1226 = vmatprep.subr.mxu0 0.0
    %1227 = vmatpush1.msra.mxu0 0.0
    %1228 = vmatprep.subr.mxu0 0.0
    %1229 = vmatpush1.msra.mxu0 0.0
    %1230 = vmatprep.subr.mxu0 0.0
    %1231 = vmatpush1.msra.mxu0 0.0
    %1232 = vmatprep.subr.mxu0 0.0
    %1233 = vmatpush1.msra.mxu0 0.0
    %1234 = vmatprep.subr.mxu0 0.0
    %1235 = vmatpush1.msra.mxu0 0.0
    %1236 = vmatprep.subr.mxu0 0.0
    %1237 = vmatpush1.msra.mxu0 0.0
    %1238 = vmatprep.subr.mxu0 0.0
    %1239 = vmatpush1.msra.mxu0 0.0
    %1240 = vmatprep.subr.mxu0 0.0
    %1241 = vmatpush1.msra.mxu0 0.0
    %1242 = vmatprep.mubr.f32.mxu0 0.0
    %1243 = vmatmul.mubr.f32.gmra.mrb[0].mxu0 %v1105
    %v1244 = vpop.f32.mrb[0].mxu0
    %v1245 = vadd.f32 0.0, %v1244
    %v1246 = vpop.f32.mrb[0].mxu0
    %v1247 = vadd.f32 0.0, %v1246
    %1248 = vdwg.mxu0
    %v1253 = vrot.slane %v1174, 4
    %v1254 = vrot.slane %v1176, 4
    %v1255 = vrot.slane %v1245, 4
    %v1256 = vrot.slane %v1247, 4
    %v1261 = vadd.f32 %v1100, %v1253
    %v1262 = vadd.f32 %v1101, %v1254
    %v1263 = vadd.f32 %v1102, %v1255
    %v1264 = vadd.f32 %v1103, %v1256
    %v1265 = vxor.u32 %v1261, 2147483648
    %v1266 = vmul.f32 %v1265, 1.442695
    %v1267 = vpow.pop %v1266
    %v1268 = vadd.f32 %v1267, 1.0
    %v1269 = vrcp.pop %v1268
    %v1270 = vmul.f32 1.0, %v1269
    %v1271 = vxor.u32 %v1262, 2147483648
    %v1272 = vmul.f32 %v1271, 1.442695
    %v1273 = vpow.pop %v1272
    %v1274 = vadd.f32 %v1273, 1.0
    %v1275 = vrcp.pop %v1274
    %v1276 = vmul.f32 1.0, %v1275
    %v1277 = vtanh.pop %v1263
    %v1278 = vxor.u32 %v1264, 2147483648
    %v1279 = vmul.f32 %v1278, 1.442695
    %v1280 = vpow.pop %v1279
    %v1281 = vadd.f32 %v1280, 1.0
    %v1282 = vrcp.pop %v1281
    %v1283 = vmul.f32 1.0, %v1282
    %v1285 = vrot.slane %v906, 2
    %v1287 = vmul.f32 %v1276, %v1285
    %v1288 = vmul.f32 %v1270, %v1277
    %v1289 = vadd.f32 %v1287, %v1288
    %v1290 = vtanh.pop %v1289
    %v1291 = vmul.f32 %v1283, %v1290
    %1292 = vst [vmem:[#allocation4] sm:$0xc] %v1099
    %1293 = vst [vmem:[#allocation5 + $0x8] sm:$0x30] %v1291
    %v1294 = vld [vmem:[#allocation2] sm:$0x30]
    %v1295 = vld [vmem:[#allocation2 + $0x8] sm:$0x30]
    %v1296 = vld [vmem:[#allocation2 + $0x10] sm:$0x30]
    %v1297 = vld [vmem:[#allocation2 + $0x18] sm:$0x30]
    %v1299 = vrot.slane %v1099, 2
    %1301 = vmatprep.subr.mxu0 %v422
    %1302 = vmatpush1.msra.mxu0 %v421
    %1303 = vmatprep.subr.mxu0 %v426
    %1304 = vmatpush1.msra.mxu0 %v425
    %1305 = vmatprep.subr.mxu0 %v430
    %1306 = vmatpush1.msra.mxu0 %v429
    %1307 = vmatprep.subr.mxu0 %v434
    %1308 = vmatpush1.msra.mxu0 %v433
    %1309 = vmatprep.subr.mxu0 %v438
    %1310 = vmatpush1.msra.mxu0 %v437
    %1311 = vmatprep.subr.mxu0 %v442
    %1312 = vmatpush1.msra.mxu0 %v441
    %1313 = vmatprep.subr.mxu0 %v446
    %1314 = vmatpush1.msra.mxu0 %v445
    %1315 = vmatprep.subr.mxu0 %v450
    %1316 = vmatpush1.msra.mxu0 %v449
    %1317 = vmatprep.subr.mxu0 %v454
    %1318 = vmatpush1.msra.mxu0 %v453
    %1319 = vmatprep.subr.mxu0 %v458
    %1320 = vmatpush1.msra.mxu0 %v457
    %1321 = vmatprep.subr.mxu0 %v462
    %1322 = vmatpush1.msra.mxu0 %v461
    %1323 = vmatprep.subr.mxu0 %v466
    %1324 = vmatpush1.msra.mxu0 %v465
    %1325 = vmatprep.subr.mxu0 %v470
    %1326 = vmatpush1.msra.mxu0 %v469
    %1327 = vmatprep.subr.mxu0 %v474
    %1328 = vmatpush1.msra.mxu0 %v473
    %1329 = vmatprep.subr.mxu0 %v478
    %1330 = vmatpush1.msra.mxu0 %v477
    %1331 = vmatprep.subr.mxu0 %v482
    %1332 = vmatpush1.msra.mxu0 %v481
    %1333 = vmatprep.subr.mxu0 0.0
    %1334 = vmatpush1.msra.mxu0 0.0
    %1335 = vmatprep.subr.mxu0 0.0
    %1336 = vmatpush1.msra.mxu0 0.0
    %1337 = vmatprep.subr.mxu0 0.0
    %1338 = vmatpush1.msra.mxu0 0.0
    %1339 = vmatprep.subr.mxu0 0.0
    %1340 = vmatpush1.msra.mxu0 0.0
    %1341 = vmatprep.subr.mxu0 0.0
    %1342 = vmatpush1.msra.mxu0 0.0
    %1343 = vmatprep.subr.mxu0 0.0
    %1344 = vmatpush1.msra.mxu0 0.0
    %1345 = vmatprep.subr.mxu0 0.0
    %1346 = vmatpush1.msra.mxu0 0.0
    %1347 = vmatprep.subr.mxu0 0.0
    %1348 = vmatpush1.msra.mxu0 0.0
    %1349 = vmatprep.subr.mxu0 0.0
    %1350 = vmatpush1.msra.mxu0 0.0
    %1351 = vmatprep.subr.mxu0 0.0
    %1352 = vmatpush1.msra.mxu0 0.0
    %1353 = vmatprep.subr.mxu0 0.0
    %1354 = vmatpush1.msra.mxu0 0.0
    %1355 = vmatprep.subr.mxu0 0.0
    %1356 = vmatpush1.msra.mxu0 0.0
    %1357 = vmatprep.subr.mxu0 0.0
    %1358 = vmatpush1.msra.mxu0 0.0
    %1359 = vmatprep.subr.mxu0 0.0
    %1360 = vmatpush1.msra.mxu0 0.0
    %1361 = vmatprep.subr.mxu0 0.0
    %1362 = vmatpush1.msra.mxu0 0.0
    %1363 = vmatprep.subr.mxu0 0.0
    %1364 = vmatpush1.msra.mxu0 0.0
    %1365 = vmatprep.mubr.f32.mxu0 0.0
    %1366 = vmatmul.mubr.f32.gmra.mrb[0].mxu0 %v1299
    %v1367 = vpop.f32.mrb[0].mxu0
    %v1368 = vadd.f32 0.0, %v1367
    %v1369 = vpop.f32.mrb[0].mxu0
    %v1370 = vadd.f32 0.0, %v1369
    %1371 = vdwg.mxu0
    %1372 = vmatprep.subr.mxu0 %v424
    %1373 = vmatpush1.msra.mxu0 %v423
    %1374 = vmatprep.subr.mxu0 %v428
    %1375 = vmatpush1.msra.mxu0 %v427
    %1376 = vmatprep.subr.mxu0 %v432
    %1377 = vmatpush1.msra.mxu0 %v431
    %1378 = vmatprep.subr.mxu0 %v436
    %1379 = vmatpush1.msra.mxu0 %v435
    %1380 = vmatprep.subr.mxu0 %v440
    %1381 = vmatpush1.msra.mxu0 %v439
    %1382 = vmatprep.subr.mxu0 %v444
    %1383 = vmatpush1.msra.mxu0 %v443
    %1384 = vmatprep.subr.mxu0 %v448
    %1385 = vmatpush1.msra.mxu0 %v447
    %1386 = vmatprep.subr.mxu0 %v452
    %1387 = vmatpush1.msra.mxu0 %v451
    %1388 = vmatprep.subr.mxu0 %v456
    %1389 = vmatpush1.msra.mxu0 %v455
    %1390 = vmatprep.subr.mxu0 %v460
    %1391 = vmatpush1.msra.mxu0 %v459
    %1392 = vmatprep.subr.mxu0 %v464
    %1393 = vmatpush1.msra.mxu0 %v463
    %1394 = vmatprep.subr.mxu0 %v468
    %1395 = vmatpush1.msra.mxu0 %v467
    %1396 = vmatprep.subr.mxu0 %v472
    %1397 = vmatpush1.msra.mxu0 %v471
    %1398 = vmatprep.subr.mxu0 %v476
    %1399 = vmatpush1.msra.mxu0 %v475
    %1400 = vmatprep.subr.mxu0 %v480
    %1401 = vmatpush1.msra.mxu0 %v479
    %1402 = vmatprep.subr.mxu0 %v484
    %1403 = vmatpush1.msra.mxu0 %v483
    %1404 = vmatprep.subr.mxu0 0.0
    %1405 = vmatpush1.msra.mxu0 0.0
    %1406 = vmatprep.subr.mxu0 0.0
    %1407 = vmatpush1.msra.mxu0 0.0
    %1408 = vmatprep.subr.mxu0 0.0
    %1409 = vmatpush1.msra.mxu0 0.0
    %1410 = vmatprep.subr.mxu0 0.0
    %1411 = vmatpush1.msra.mxu0 0.0
    %1412 = vmatprep.subr.mxu0 0.0
    %1413 = vmatpush1.msra.mxu0 0.0
    %1414 = vmatprep.subr.mxu0 0.0
    %1415 = vmatpush1.msra.mxu0 0.0
    %1416 = vmatprep.subr.mxu0 0.0
    %1417 = vmatpush1.msra.mxu0 0.0
    %1418 = vmatprep.subr.mxu0 0.0
    %1419 = vmatpush1.msra.mxu0 0.0
    %1420 = vmatprep.subr.mxu0 0.0
    %1421 = vmatpush1.msra.mxu0 0.0
    %1422 = vmatprep.subr.mxu0 0.0
    %1423 = vmatpush1.msra.mxu0 0.0
    %1424 = vmatprep.subr.mxu0 0.0
    %1425 = vmatpush1.msra.mxu0 0.0
    %1426 = vmatprep.subr.mxu0 0.0
    %1427 = vmatpush1.msra.mxu0 0.0
    %1428 = vmatprep.subr.mxu0 0.0
    %1429 = vmatpush1.msra.mxu0 0.0
    %1430 = vmatprep.subr.mxu0 0.0
    %1431 = vmatpush1.msra.mxu0 0.0
    %1432 = vmatprep.subr.mxu0 0.0
    %1433 = vmatpush1.msra.mxu0 0.0
    %1434 = vmatprep.subr.mxu0 0.0
    %1435 = vmatpush1.msra.mxu0 0.0
    %1436 = vmatprep.mubr.f32.mxu0 0.0
    %1437 = vmatmul.mubr.f32.gmra.mrb[0].mxu0 %v1299
    %v1438 = vpop.f32.mrb[0].mxu0
    %v1439 = vadd.f32 0.0, %v1438
    %v1440 = vpop.f32.mrb[0].mxu0
    %v1441 = vadd.f32 0.0, %v1440
    %1442 = vdwg.mxu0
    %v1447 = vrot.slane %v1368, 4
    %v1448 = vrot.slane %v1370, 4
    %v1449 = vrot.slane %v1439, 4
    %v1450 = vrot.slane %v1441, 4
    %v1455 = vadd.f32 %v1294, %v1447
    %v1456 = vadd.f32 %v1295, %v1448
    %v1457 = vadd.f32 %v1296, %v1449
    %v1458 = vadd.f32 %v1297, %v1450
    %v1459 = vxor.u32 %v1455, 2147483648
    %v1460 = vmul.f32 %v1459, 1.442695
    %v1461 = vpow.pop %v1460
    %v1462 = vadd.f32 %v1461, 1.0
    %v1463 = vrcp.pop %v1462
    %v1464 = vmul.f32 1.0, %v1463
    %v1465 = vxor.u32 %v1456, 2147483648
    %v1466 = vmul.f32 %v1465, 1.442695
    %v1467 = vpow.pop %v1466
    %v1468 = vadd.f32 %v1467, 1.0
    %v1469 = vrcp.pop %v1468
    %v1470 = vmul.f32 1.0, %v1469
    %v1471 = vtanh.pop %v1457
    %v1472 = vxor.u32 %v1458, 2147483648
    %v1473 = vmul.f32 %v1472, 1.442695
    %v1474 = vpow.pop %v1473
    %v1475 = vadd.f32 %v1474, 1.0
    %v1476 = vrcp.pop %v1475
    %v1477 = vmul.f32 1.0, %v1476
    %v1479 = vrot.slane %v1097, 6
    %v1481 = vmul.f32 %v1470, %v1479
    %v1482 = vmul.f32 %v1464, %v1471
    %v1483 = vadd.f32 %v1481, %v1482
    %v1484 = vtanh.pop %v1483
    %v1485 = vmul.f32 %v1477, %v1484
    %v1486 = vld [vmem:[#allocation3 + $0x20] sm:$0xc]
    %v1487 = vld [vmem:[#allocation3 + $0x28] sm:$0xc]
    %v1488 = vld [vmem:[#allocation3 + $0x30] sm:$0xc]
    %v1489 = vld [vmem:[#allocation3 + $0x38] sm:$0xc]
    %v1491 = vrot.slane %v1291, 4
    %1493 = vmatprep.subr.mxu0 %v486
    %1494 = vmatpush1.msra.mxu0 %v485
    %1495 = vmatprep.subr.mxu0 %v490
    %1496 = vmatpush1.msra.mxu0 %v489
    %1497 = vmatprep.subr.mxu0 %v494
    %1498 = vmatpush1.msra.mxu0 %v493
    %1499 = vmatprep.subr.mxu0 %v498
    %1500 = vmatpush1.msra.mxu0 %v497
    %1501 = vmatprep.subr.mxu0 %v502
    %1502 = vmatpush1.msra.mxu0 %v501
    %1503 = vmatprep.subr.mxu0 %v506
    %1504 = vmatpush1.msra.mxu0 %v505
    %1505 = vmatprep.subr.mxu0 %v510
    %1506 = vmatpush1.msra.mxu0 %v509
    %1507 = vmatprep.subr.mxu0 %v514
    %1508 = vmatpush1.msra.mxu0 %v513
    %1509 = vmatprep.subr.mxu0 %v518
    %1510 = vmatpush1.msra.mxu0 %v517
    %1511 = vmatprep.subr.mxu0 %v522
    %1512 = vmatpush1.msra.mxu0 %v521
    %1513 = vmatprep.subr.mxu0 %v526
    %1514 = vmatpush1.msra.mxu0 %v525
    %1515 = vmatprep.subr.mxu0 %v530
    %1516 = vmatpush1.msra.mxu0 %v529
    %1517 = vmatprep.subr.mxu0 %v534
    %1518 = vmatpush1.msra.mxu0 %v533
    %1519 = vmatprep.subr.mxu0 %v538
    %1520 = vmatpush1.msra.mxu0 %v537
    %1521 = vmatprep.subr.mxu0 %v542
    %1522 = vmatpush1.msra.mxu0 %v541
    %1523 = vmatprep.subr.mxu0 %v546
    %1524 = vmatpush1.msra.mxu0 %v545
    %1525 = vmatprep.subr.mxu0 0.0
    %1526 = vmatpush1.msra.mxu0 0.0
    %1527 = vmatprep.subr.mxu0 0.0
    %1528 = vmatpush1.msra.mxu0 0.0
    %1529 = vmatprep.subr.mxu0 0.0
    %1530 = vmatpush1.msra.mxu0 0.0
    %1531 = vmatprep.subr.mxu0 0.0
    %1532 = vmatpush1.msra.mxu0 0.0
    %1533 = vmatprep.subr.mxu0 0.0
    %1534 = vmatpush1.msra.mxu0 0.0
    %1535 = vmatprep.subr.mxu0 0.0
    %1536 = vmatpush1.msra.mxu0 0.0
    %1537 = vmatprep.subr.mxu0 0.0
    %1538 = vmatpush1.msra.mxu0 0.0
    %1539 = vmatprep.subr.mxu0 0.0
    %1540 = vmatpush1.msra.mxu0 0.0
    %1541 = vmatprep.subr.mxu0 0.0
    %1542 = vmatpush1.msra.mxu0 0.0
    %1543 = vmatprep.subr.mxu0 0.0
    %1544 = vmatpush1.msra.mxu0 0.0
    %1545 = vmatprep.subr.mxu0 0.0
    %1546 = vmatpush1.msra.mxu0 0.0
    %1547 = vmatprep.subr.mxu0 0.0
    %1548 = vmatpush1.msra.mxu0 0.0
    %1549 = vmatprep.subr.mxu0 0.0
    %1550 = vmatpush1.msra.mxu0 0.0
    %1551 = vmatprep.subr.mxu0 0.0
    %1552 = vmatpush1.msra.mxu0 0.0
    %1553 = vmatprep.subr.mxu0 0.0
    %1554 = vmatpush1.msra.mxu0 0.0
    %1555 = vmatprep.subr.mxu0 0.0
    %1556 = vmatpush1.msra.mxu0 0.0
    %1557 = vmatprep.mubr.f32.mxu0 0.0
    %1558 = vmatmul.mubr.f32.gmra.mrb[0].mxu0 %v1491
    %v1559 = vpop.f32.mrb[0].mxu0
    %v1560 = vadd.f32 0.0, %v1559
    %v1561 = vpop.f32.mrb[0].mxu0
    %v1562 = vadd.f32 0.0, %v1561
    %1563 = vdwg.mxu0
    %1564 = vmatprep.subr.mxu0 %v488
    %1565 = vmatpush1.msra.mxu0 %v487
    %1566 = vmatprep.subr.mxu0 %v492
    %1567 = vmatpush1.msra.mxu0 %v491
    %1568 = vmatprep.subr.mxu0 %v496
    %1569 = vmatpush1.msra.mxu0 %v495
    %1570 = vmatprep.subr.mxu0 %v500
    %1571 = vmatpush1.msra.mxu0 %v499
    %1572 = vmatprep.subr.mxu0 %v504
    %1573 = vmatpush1.msra.mxu0 %v503
    %1574 = vmatprep.subr.mxu0 %v508
    %1575 = vmatpush1.msra.mxu0 %v507
    %1576 = vmatprep.subr.mxu0 %v512
    %1577 = vmatpush1.msra.mxu0 %v511
    %1578 = vmatprep.subr.mxu0 %v516
    %1579 = vmatpush1.msra.mxu0 %v515
    %1580 = vmatprep.subr.mxu0 %v520
    %1581 = vmatpush1.msra.mxu0 %v519
    %1582 = vmatprep.subr.mxu0 %v524
    %1583 = vmatpush1.msra.mxu0 %v523
    %1584 = vmatprep.subr.mxu0 %v528
    %1585 = vmatpush1.msra.mxu0 %v527
    %1586 = vmatprep.subr.mxu0 %v532
    %1587 = vmatpush1.msra.mxu0 %v531
    %1588 = vmatprep.subr.mxu0 %v536
    %1589 = vmatpush1.msra.mxu0 %v535
    %1590 = vmatprep.subr.mxu0 %v540
    %1591 = vmatpush1.msra.mxu0 %v539
    %1592 = vmatprep.subr.mxu0 %v544
    %1593 = vmatpush1.msra.mxu0 %v543
    %1594 = vmatprep.subr.mxu0 %v548
    %1595 = vmatpush1.msra.mxu0 %v547
    %1596 = vmatprep.subr.mxu0 0.0
    %1597 = vmatpush1.msra.mxu0 0.0
    %1598 = vmatprep.subr.mxu0 0.0
    %1599 = vmatpush1.msra.mxu0 0.0
    %1600 = vmatprep.subr.mxu0 0.0
    %1601 = vmatpush1.msra.mxu0 0.0
    %1602 = vmatprep.subr.mxu0 0.0
    %1603 = vmatpush1.msra.mxu0 0.0
    %1604 = vmatprep.subr.mxu0 0.0
    %1605 = vmatpush1.msra.mxu0 0.0
    %1606 = vmatprep.subr.mxu0 0.0
    %1607 = vmatpush1.msra.mxu0 0.0
    %1608 = vmatprep.subr.mxu0 0.0
    %1609 = vmatpush1.msra.mxu0 0.0
    %1610 = vmatprep.subr.mxu0 0.0
    %1611 = vmatpush1.msra.mxu0 0.0
    %1612 = vmatprep.subr.mxu0 0.0
    %1613 = vmatpush1.msra.mxu0 0.0
    %1614 = vmatprep.subr.mxu0 0.0
    %1615 = vmatpush1.msra.mxu0 0.0
    %1616 = vmatprep.subr.mxu0 0.0
    %1617 = vmatpush1.msra.mxu0 0.0
    %1618 = vmatprep.subr.mxu0 0.0
    %1619 = vmatpush1.msra.mxu0 0.0
    %1620 = vmatprep.subr.mxu0 0.0
    %1621 = vmatpush1.msra.mxu0 0.0
    %1622 = vmatprep.subr.mxu0 0.0
    %1623 = vmatpush1.msra.mxu0 0.0
    %1624 = vmatprep.subr.mxu0 0.0
    %1625 = vmatpush1.msra.mxu0 0.0
    %1626 = vmatprep.subr.mxu0 0.0
    %1627 = vmatpush1.msra.mxu0 0.0
    %1628 = vmatprep.mubr.f32.mxu0 0.0
    %1629 = vmatmul.mubr.f32.gmra.mrb[0].mxu0 %v1491
    %v1630 = vpop.f32.mrb[0].mxu0
    %v1631 = vadd.f32 0.0, %v1630
    %v1632 = vpop.f32.mrb[0].mxu0
    %v1633 = vadd.f32 0.0, %v1632
    %1634 = vdwg.mxu0
    %v1639 = vrot.slane %v1560, 6
    %v1640 = vrot.slane %v1562, 6
    %v1641 = vrot.slane %v1631, 6
    %v1642 = vrot.slane %v1633, 6
    %v1647 = vadd.f32 %v1486, %v1639
    %v1648 = vadd.f32 %v1487, %v1640
    %v1649 = vadd.f32 %v1488, %v1641
    %v1650 = vadd.f32 %v1489, %v1642
    %v1651 = vxor.u32 %v1647, 2147483648
    %v1652 = vmul.f32 %v1651, 1.442695
    %v1653 = vpow.pop %v1652
    %v1654 = vadd.f32 %v1653, 1.0
    %v1655 = vrcp.pop %v1654
    %v1656 = vmul.f32 1.0, %v1655
    %v1657 = vxor.u32 %v1648, 2147483648
    %v1658 = vmul.f32 %v1657, 1.442695
    %v1659 = vpow.pop %v1658
    %v1660 = vadd.f32 %v1659, 1.0
    %v1661 = vrcp.pop %v1660
    %v1662 = vmul.f32 1.0, %v1661
    %v1663 = vtanh.pop %v1649
    %v1664 = vxor.u32 %v1650, 2147483648
    %v1665 = vmul.f32 %v1664, 1.442695
    %v1666 = vpow.pop %v1665
    %v1667 = vadd.f32 %v1666, 1.0
    %v1668 = vrcp.pop %v1667
    %v1669 = vmul.f32 1.0, %v1668
    %v1671 = vrot.slane %v1289, 2
    %v1673 = vmul.f32 %v1662, %v1671
    %v1674 = vmul.f32 %v1656, %v1663
    %v1675 = vadd.f32 %v1673, %v1674
    %v1676 = vtanh.pop %v1675
    %v1677 = vmul.f32 %v1669, %v1676
    %1678 = vst [vmem:[#allocation4] sm:$0x30] %v1485
    %1679 = vst [vmem:[#allocation5 + $0x8] sm:$0xc] %v1677
    %v1680 = vld [vmem:[#allocation2] sm:$0xc0]
    %v1681 = vld [vmem:[#allocation2 + $0x8] sm:$0xc0]
    %v1682 = vld [vmem:[#allocation2 + $0x10] sm:$0xc0]
    %v1683 = vld [vmem:[#allocation2 + $0x18] sm:$0xc0]
    %v1685 = vrot.slane %v1485, 4
    %1687 = vmatprep.subr.mxu0 %v422
    %1688 = vmatpush1.msra.mxu0 %v421
    %1689 = vmatprep.subr.mxu0 %v426
    %1690 = vmatpush1.msra.mxu0 %v425
    %1691 = vmatprep.subr.mxu0 %v430
    %1692 = vmatpush1.msra.mxu0 %v429
    %1693 = vmatprep.subr.mxu0 %v434
    %1694 = vmatpush1.msra.mxu0 %v433
    %1695 = vmatprep.subr.mxu0 %v438
    %1696 = vmatpush1.msra.mxu0 %v437
    %1697 = vmatprep.subr.mxu0 %v442
    %1698 = vmatpush1.msra.mxu0 %v441
    %1699 = vmatprep.subr.mxu0 %v446
    %1700 = vmatpush1.msra.mxu0 %v445
    %1701 = vmatprep.subr.mxu0 %v450
    %1702 = vmatpush1.msra.mxu0 %v449
    %1703 = vmatprep.subr.mxu0 %v454
    %1704 = vmatpush1.msra.mxu0 %v453
    %1705 = vmatprep.subr.mxu0 %v458
    %1706 = vmatpush1.msra.mxu0 %v457
    %1707 = vmatprep.subr.mxu0 %v462
    %1708 = vmatpush1.msra.mxu0 %v461
    %1709 = vmatprep.subr.mxu0 %v466
    %1710 = vmatpush1.msra.mxu0 %v465
    %1711 = vmatprep.subr.mxu0 %v470
    %1712 = vmatpush1.msra.mxu0 %v469
    %1713 = vmatprep.subr.mxu0 %v474
    %1714 = vmatpush1.msra.mxu0 %v473
    %1715 = vmatprep.subr.mxu0 %v478
    %1716 = vmatpush1.msra.mxu0 %v477
    %1717 = vmatprep.subr.mxu0 %v482
    %1718 = vmatpush1.msra.mxu0 %v481
    %1719 = vmatprep.subr.mxu0 0.0
    %1720 = vmatpush1.msra.mxu0 0.0
    %1721 = vmatprep.subr.mxu0 0.0
    %1722 = vmatpush1.msra.mxu0 0.0
    %1723 = vmatprep.subr.mxu0 0.0
    %1724 = vmatpush1.msra.mxu0 0.0
    %1725 = vmatprep.subr.mxu0 0.0
    %1726 = vmatpush1.msra.mxu0 0.0
    %1727 = vmatprep.subr.mxu0 0.0
    %1728 = vmatpush1.msra.mxu0 0.0
    %1729 = vmatprep.subr.mxu0 0.0
    %1730 = vmatpush1.msra.mxu0 0.0
    %1731 = vmatprep.subr.mxu0 0.0
    %1732 = vmatpush1.msra.mxu0 0.0
    %1733 = vmatprep.subr.mxu0 0.0
    %1734 = vmatpush1.msra.mxu0 0.0
    %1735 = vmatprep.subr.mxu0 0.0
    %1736 = vmatpush1.msra.mxu0 0.0
    %1737 = vmatprep.subr.mxu0 0.0
    %1738 = vmatpush1.msra.mxu0 0.0
    %1739 = vmatprep.subr.mxu0 0.0
    %1740 = vmatpush1.msra.mxu0 0.0
    %1741 = vmatprep.subr.mxu0 0.0
    %1742 = vmatpush1.msra.mxu0 0.0
    %1743 = vmatprep.subr.mxu0 0.0
    %1744 = vmatpush1.msra.mxu0 0.0
    %1745 = vmatprep.subr.mxu0 0.0
    %1746 = vmatpush1.msra.mxu0 0.0
    %1747 = vmatprep.subr.mxu0 0.0
    %1748 = vmatpush1.msra.mxu0 0.0
    %1749 = vmatprep.subr.mxu0 0.0
    %1750 = vmatpush1.msra.mxu0 0.0
    %1751 = vmatprep.mubr.f32.mxu0 0.0
    %1752 = vmatmul.mubr.f32.gmra.mrb[0].mxu0 %v1685
    %v1753 = vpop.f32.mrb[0].mxu0
    %v1754 = vadd.f32 0.0, %v1753
    %v1755 = vpop.f32.mrb[0].mxu0
    %v1756 = vadd.f32 0.0, %v1755
    %1757 = vdwg.mxu0
    %1758 = vmatprep.subr.mxu0 %v424
    %1759 = vmatpush1.msra.mxu0 %v423
    %1760 = vmatprep.subr.mxu0 %v428
    %1761 = vmatpush1.msra.mxu0 %v427
    %1762 = vmatprep.subr.mxu0 %v432
    %1763 = vmatpush1.msra.mxu0 %v431
    %1764 = vmatprep.subr.mxu0 %v436
    %1765 = vmatpush1.msra.mxu0 %v435
    %1766 = vmatprep.subr.mxu0 %v440
    %1767 = vmatpush1.msra.mxu0 %v439
    %1768 = vmatprep.subr.mxu0 %v444
    %1769 = vmatpush1.msra.mxu0 %v443
    %1770 = vmatprep.subr.mxu0 %v448
    %1771 = vmatpush1.msra.mxu0 %v447
    %1772 = vmatprep.subr.mxu0 %v452
    %1773 = vmatpush1.msra.mxu0 %v451
    %1774 = vmatprep.subr.mxu0 %v456
    %1775 = vmatpush1.msra.mxu0 %v455
    %1776 = vmatprep.subr.mxu0 %v460
    %1777 = vmatpush1.msra.mxu0 %v459
    %1778 = vmatprep.subr.mxu0 %v464
    %1779 = vmatpush1.msra.mxu0 %v463
    %1780 = vmatprep.subr.mxu0 %v468
    %1781 = vmatpush1.msra.mxu0 %v467
    %1782 = vmatprep.subr.mxu0 %v472
    %1783 = vmatpush1.msra.mxu0 %v471
    %1784 = vmatprep.subr.mxu0 %v476
    %1785 = vmatpush1.msra.mxu0 %v475
    %1786 = vmatprep.subr.mxu0 %v480
    %1787 = vmatpush1.msra.mxu0 %v479
    %1788 = vmatprep.subr.mxu0 %v484
    %1789 = vmatpush1.msra.mxu0 %v483
    %1790 = vmatprep.subr.mxu0 0.0
    %1791 = vmatpush1.msra.mxu0 0.0
    %1792 = vmatprep.subr.mxu0 0.0
    %1793 = vmatpush1.msra.mxu0 0.0
    %1794 = vmatprep.subr.mxu0 0.0
    %1795 = vmatpush1.msra.mxu0 0.0
    %1796 = vmatprep.subr.mxu0 0.0
    %1797 = vmatpush1.msra.mxu0 0.0
    %1798 = vmatprep.subr.mxu0 0.0
    %1799 = vmatpush1.msra.mxu0 0.0
    %1800 = vmatprep.subr.mxu0 0.0
    %1801 = vmatpush1.msra.mxu0 0.0
    %1802 = vmatprep.subr.mxu0 0.0
    %1803 = vmatpush1.msra.mxu0 0.0
    %1804 = vmatprep.subr.mxu0 0.0
    %1805 = vmatpush1.msra.mxu0 0.0
    %1806 = vmatprep.subr.mxu0 0.0
    %1807 = vmatpush1.msra.mxu0 0.0
    %1808 = vmatprep.subr.mxu0 0.0
    %1809 = vmatpush1.msra.mxu0 0.0
    %1810 = vmatprep.subr.mxu0 0.0
    %1811 = vmatpush1.msra.mxu0 0.0
    %1812 = vmatprep.subr.mxu0 0.0
    %1813 = vmatpush1.msra.mxu0 0.0
    %1814 = vmatprep.subr.mxu0 0.0
    %1815 = vmatpush1.msra.mxu0 0.0
    %1816 = vmatprep.subr.mxu0 0.0
    %1817 = vmatpush1.msra.mxu0 0.0
    %1818 = vmatprep.subr.mxu0 0.0
    %1819 = vmatpush1.msra.mxu0 0.0
    %1820 = vmatprep.subr.mxu0 0.0
    %1821 = vmatpush1.msra.mxu0 0.0
    %1822 = vmatprep.mubr.f32.mxu0 0.0
    %1823 = vmatmul.mubr.f32.gmra.mrb[0].mxu0 %v1685
    %v1824 = vpop.f32.mrb[0].mxu0
    %v1825 = vadd.f32 0.0, %v1824
    %v1826 = vpop.f32.mrb[0].mxu0
    %v1827 = vadd.f32 0.0, %v1826
    %1828 = vdwg.mxu0
    %v1833 = vrot.slane %v1754, 2
    %v1834 = vrot.slane %v1756, 2
    %v1835 = vrot.slane %v1825, 2
    %v1836 = vrot.slane %v1827, 2
    %v1841 = vadd.f32 %v1680, %v1833
    %v1842 = vadd.f32 %v1681, %v1834
    %v1843 = vadd.f32 %v1682, %v1835
    %v1844 = vadd.f32 %v1683, %v1836
    %v1845 = vxor.u32 %v1841, 2147483648
    %v1846 = vmul.f32 %v1845, 1.442695
    %v1847 = vpow.pop %v1846
    %v1848 = vadd.f32 %v1847, 1.0
    %v1849 = vrcp.pop %v1848
    %v1850 = vmul.f32 1.0, %v1849
    %v1851 = vxor.u32 %v1842, 2147483648
    %v1852 = vmul.f32 %v1851, 1.442695
    %v1853 = vpow.pop %v1852
    %v1854 = vadd.f32 %v1853, 1.0
    %v1855 = vrcp.pop %v1854
    %v1856 = vmul.f32 1.0, %v1855
    %v1857 = vtanh.pop %v1843
    %v1858 = vxor.u32 %v1844, 2147483648
    %v1859 = vmul.f32 %v1858, 1.442695
    %v1860 = vpow.pop %v1859
    %v1861 = vadd.f32 %v1860, 1.0
    %v1862 = vrcp.pop %v1861
    %v1863 = vmul.f32 1.0, %v1862
    %v1865 = vrot.slane %v1483, 6
    %v1867 = vmul.f32 %v1856, %v1865
    %v1868 = vmul.f32 %v1850, %v1857
    %v1869 = vadd.f32 %v1867, %v1868
    %v1870 = vtanh.pop %v1869
    %v1871 = vmul.f32 %v1863, %v1870
    %v1872 = vld [vmem:[#allocation3 + $0x20] sm:$0x3]
    %v1873 = vld [vmem:[#allocation3 + $0x28] sm:$0x3]
    %v1874 = vld [vmem:[#allocation3 + $0x30] sm:$0x3]
    %v1875 = vld [vmem:[#allocation3 + $0x38] sm:$0x3]
    %v1877 = vrot.slane %v1677, 2
    %1879 = vmatprep.subr.mxu0 %v486
    %1880 = vmatpush1.msra.mxu0 %v485
    %1881 = vmatprep.subr.mxu0 %v490
    %1882 = vmatpush1.msra.mxu0 %v489
    %1883 = vmatprep.subr.mxu0 %v494
    %1884 = vmatpush1.msra.mxu0 %v493
    %1885 = vmatprep.subr.mxu0 %v498
    %1886 = vmatpush1.msra.mxu0 %v497
    %1887 = vmatprep.subr.mxu0 %v502
    %1888 = vmatpush1.msra.mxu0 %v501
    %1889 = vmatprep.subr.mxu0 %v506
    %1890 = vmatpush1.msra.mxu0 %v505
    %1891 = vmatprep.subr.mxu0 %v510
    %1892 = vmatpush1.msra.mxu0 %v509
    %1893 = vmatprep.subr.mxu0 %v514
    %1894 = vmatpush1.msra.mxu0 %v513
    %1895 = vmatprep.subr.mxu0 %v518
    %1896 = vmatpush1.msra.mxu0 %v517
    %1897 = vmatprep.subr.mxu0 %v522
    %1898 = vmatpush1.msra.mxu0 %v521
    %1899 = vmatprep.subr.mxu0 %v526
    %1900 = vmatpush1.msra.mxu0 %v525
    %1901 = vmatprep.subr.mxu0 %v530
    %1902 = vmatpush1.msra.mxu0 %v529
    %1903 = vmatprep.subr.mxu0 %v534
    %1904 = vmatpush1.msra.mxu0 %v533
    %1905 = vmatprep.subr.mxu0 %v538
    %1906 = vmatpush1.msra.mxu0 %v537
    %1907 = vmatprep.subr.mxu0 %v542
    %1908 = vmatpush1.msra.mxu0 %v541
    %1909 = vmatprep.subr.mxu0 %v546
    %1910 = vmatpush1.msra.mxu0 %v545
    %1911 = vmatprep.subr.mxu0 0.0
    %1912 = vmatpush1.msra.mxu0 0.0
    %1913 = vmatprep.subr.mxu0 0.0
    %1914 = vmatpush1.msra.mxu0 0.0
    %1915 = vmatprep.subr.mxu0 0.0
    %1916 = vmatpush1.msra.mxu0 0.0
    %1917 = vmatprep.subr.mxu0 0.0
    %1918 = vmatpush1.msra.mxu0 0.0
    %1919 = vmatprep.subr.mxu0 0.0
    %1920 = vmatpush1.msra.mxu0 0.0
    %1921 = vmatprep.subr.mxu0 0.0
    %1922 = vmatpush1.msra.mxu0 0.0
    %1923 = vmatprep.subr.mxu0 0.0
    %1924 = vmatpush1.msra.mxu0 0.0
    %1925 = vmatprep.subr.mxu0 0.0
    %1926 = vmatpush1.msra.mxu0 0.0
    %1927 = vmatprep.subr.mxu0 0.0
    %1928 = vmatpush1.msra.mxu0 0.0
    %1929 = vmatprep.subr.mxu0 0.0
    %1930 = vmatpush1.msra.mxu0 0.0
    %1931 = vmatprep.subr.mxu0 0.0
    %1932 = vmatpush1.msra.mxu0 0.0
    %1933 = vmatprep.subr.mxu0 0.0
    %1934 = vmatpush1.msra.mxu0 0.0
    %1935 = vmatprep.subr.mxu0 0.0
    %1936 = vmatpush1.msra.mxu0 0.0
    %1937 = vmatprep.subr.mxu0 0.0
    %1938 = vmatpush1.msra.mxu0 0.0
    %1939 = vmatprep.subr.mxu0 0.0
    %1940 = vmatpush1.msra.mxu0 0.0
    %1941 = vmatprep.subr.mxu0 0.0
    %1942 = vmatpush1.msra.mxu0 0.0
    %1943 = vmatprep.mubr.f32.mxu0 0.0
    %1944 = vmatmul.mubr.f32.gmra.mrb[0].mxu0 %v1877
    %v1945 = vpop.f32.mrb[0].mxu0
    %v1946 = vadd.f32 0.0, %v1945
    %v1947 = vpop.f32.mrb[0].mxu0
    %v1948 = vadd.f32 0.0, %v1947
    %1949 = vdwg.mxu0
    %1950 = vmatprep.subr.mxu0 %v488
    %1951 = vmatpush1.msra.mxu0 %v487
    %1952 = vmatprep.subr.mxu0 %v492
    %1953 = vmatpush1.msra.mxu0 %v491
    %1954 = vmatprep.subr.mxu0 %v496
    %1955 = vmatpush1.msra.mxu0 %v495
    %1956 = vmatprep.subr.mxu0 %v500
    %1957 = vmatpush1.msra.mxu0 %v499
    %1958 = vmatprep.subr.mxu0 %v504
    %1959 = vmatpush1.msra.mxu0 %v503
    %1960 = vmatprep.subr.mxu0 %v508
    %1961 = vmatpush1.msra.mxu0 %v507
    %1962 = vmatprep.subr.mxu0 %v512
    %1963 = vmatpush1.msra.mxu0 %v511
    %1964 = vmatprep.subr.mxu0 %v516
    %1965 = vmatpush1.msra.mxu0 %v515
    %1966 = vmatprep.subr.mxu0 %v520
    %1967 = vmatpush1.msra.mxu0 %v519
    %1968 = vmatprep.subr.mxu0 %v524
    %1969 = vmatpush1.msra.mxu0 %v523
    %1970 = vmatprep.subr.mxu0 %v528
    %1971 = vmatpush1.msra.mxu0 %v527
    %1972 = vmatprep.subr.mxu0 %v532
    %1973 = vmatpush1.msra.mxu0 %v531
    %1974 = vmatprep.subr.mxu0 %v536
    %1975 = vmatpush1.msra.mxu0 %v535
    %1976 = vmatprep.subr.mxu0 %v540
    %1977 = vmatpush1.msra.mxu0 %v539
    %1978 = vmatprep.subr.mxu0 %v544
    %1979 = vmatpush1.msra.mxu0 %v543
    %1980 = vmatprep.subr.mxu0 %v548
    %1981 = vmatpush1.msra.mxu0 %v547
    %1982 = vmatprep.subr.mxu0 0.0
    %1983 = vmatpush1.msra.mxu0 0.0
    %1984 = vmatprep.subr.mxu0 0.0
    %1985 = vmatpush1.msra.mxu0 0.0
    %1986 = vmatprep.subr.mxu0 0.0
    %1987 = vmatpush1.msra.mxu0 0.0
    %1988 = vmatprep.subr.mxu0 0.0
    %1989 = vmatpush1.msra.mxu0 0.0
    %1990 = vmatprep.subr.mxu0 0.0
    %1991 = vmatpush1.msra.mxu0 0.0
    %1992 = vmatprep.subr.mxu0 0.0
    %1993 = vmatpush1.msra.mxu0 0.0
    %1994 = vmatprep.subr.mxu0 0.0
    %1995 = vmatpush1.msra.mxu0 0.0
    %1996 = vmatprep.subr.mxu0 0.0
    %1997 = vmatpush1.msra.mxu0 0.0
    %1998 = vmatprep.subr.mxu0 0.0
    %1999 = vmatpush1.msra.mxu0 0.0
    %2000 = vmatprep.subr.mxu0 0.0
    %2001 = vmatpush1.msra.mxu0 0.0
    %2002 = vmatprep.subr.mxu0 0.0
    %2003 = vmatpush1.msra.mxu0 0.0
    %2004 = vmatprep.subr.mxu0 0.0
    %2005 = vmatpush1.msra.mxu0 0.0
    %2006 = vmatprep.subr.mxu0 0.0
    %2007 = vmatpush1.msra.mxu0 0.0
    %2008 = vmatprep.subr.mxu0 0.0
    %2009 = vmatpush1.msra.mxu0 0.0
    %2010 = vmatprep.subr.mxu0 0.0
    %2011 = vmatpush1.msra.mxu0 0.0
    %2012 = vmatprep.subr.mxu0 0.0
    %2013 = vmatpush1.msra.mxu0 0.0
    %2014 = vmatprep.mubr.f32.mxu0 0.0
    %2015 = vmatmul.mubr.f32.gmra.mrb[0].mxu0 %v1877
    %v2016 = vpop.f32.mrb[0].mxu0
    %v2017 = vadd.f32 0.0, %v2016
    %v2018 = vpop.f32.mrb[0].mxu0
    %v2019 = vadd.f32 0.0, %v2018
    %2020 = vdwg.mxu0
    %v2021 = vadd.f32 %v1872, %v1946
    %v2022 = vadd.f32 %v1873, %v1948
    %v2023 = vadd.f32 %v1874, %v2017
    %v2024 = vadd.f32 %v1875, %v2019
    %v2025 = vxor.u32 %v2021, 2147483648
    %v2026 = vmul.f32 %v2025, 1.442695
    %v2027 = vpow.pop %v2026
    %v2028 = vadd.f32 %v2027, 1.0
    %v2029 = vrcp.pop %v2028
    %v2030 = vmul.f32 1.0, %v2029
    %v2031 = vxor.u32 %v2022, 2147483648
    %v2032 = vmul.f32 %v2031, 1.442695
    %v2033 = vpow.pop %v2032
    %v2034 = vadd.f32 %v2033, 1.0
    %v2035 = vrcp.pop %v2034
    %v2036 = vmul.f32 1.0, %v2035
    %v2037 = vtanh.pop %v2023
    %v2038 = vxor.u32 %v2024, 2147483648
    %v2039 = vmul.f32 %v2038, 1.442695
    %v2040 = vpow.pop %v2039
    %v2041 = vadd.f32 %v2040, 1.0
    %v2042 = vrcp.pop %v2041
    %v2043 = vmul.f32 1.0, %v2042
    %v2045 = vrot.slane %v1675, 2
    %v2047 = vmul.f32 %v2036, %v2045
    %v2048 = vmul.f32 %v2030, %v2037
    %v2049 = vadd.f32 %v2047, %v2048
    %v2050 = vtanh.pop %v2049
    %v2051 = vmul.f32 %v2043, %v2050
    %2052 = vst [vmem:[#allocation4] sm:$0xc0] %v1871
    %2053 = vst [vmem:[#allocation5 + $0x8] sm:$0x3] %v2051
    %v2054 = vld [vmem:[#allocation2 + $0x20] sm:$0x3]
    %v2055 = vld [vmem:[#allocation2 + $0x28] sm:$0x3]
    %v2056 = vld [vmem:[#allocation2 + $0x30] sm:$0x3]
    %v2057 = vld [vmem:[#allocation2 + $0x38] sm:$0x3]
    %v2059 = vrot.slane %v1871, 6
    %2061 = vmatprep.subr.mxu0 %v422
    %2062 = vmatpush1.msra.mxu0 %v421
    %2063 = vmatprep.subr.mxu0 %v426
    %2064 = vmatpush1.msra.mxu0 %v425
    %2065 = vmatprep.subr.mxu0 %v430
    %2066 = vmatpush1.msra.mxu0 %v429
    %2067 = vmatprep.subr.mxu0 %v434
    %2068 = vmatpush1.msra.mxu0 %v433
    %2069 = vmatprep.subr.mxu0 %v438
    %2070 = vmatpush1.msra.mxu0 %v437
    %2071 = vmatprep.subr.mxu0 %v442
    %2072 = vmatpush1.msra.mxu0 %v441
    %2073 = vmatprep.subr.mxu0 %v446
    %2074 = vmatpush1.msra.mxu0 %v445
    %2075 = vmatprep.subr.mxu0 %v450
    %2076 = vmatpush1.msra.mxu0 %v449
    %2077 = vmatprep.subr.mxu0 %v454
    %2078 = vmatpush1.msra.mxu0 %v453
    %2079 = vmatprep.subr.mxu0 %v458
    %2080 = vmatpush1.msra.mxu0 %v457
    %2081 = vmatprep.subr.mxu0 %v462
    %2082 = vmatpush1.msra.mxu0 %v461
    %2083 = vmatprep.subr.mxu0 %v466
    %2084 = vmatpush1.msra.mxu0 %v465
    %2085 = vmatprep.subr.mxu0 %v470
    %2086 = vmatpush1.msra.mxu0 %v469
    %2087 = vmatprep.subr.mxu0 %v474
    %2088 = vmatpush1.msra.mxu0 %v473
    %2089 = vmatprep.subr.mxu0 %v478
    %2090 = vmatpush1.msra.mxu0 %v477
    %2091 = vmatprep.subr.mxu0 %v482
    %2092 = vmatpush1.msra.mxu0 %v481
    %2093 = vmatprep.subr.mxu0 0.0
    %2094 = vmatpush1.msra.mxu0 0.0
    %2095 = vmatprep.subr.mxu0 0.0
    %2096 = vmatpush1.msra.mxu0 0.0
    %2097 = vmatprep.subr.mxu0 0.0
    %2098 = vmatpush1.msra.mxu0 0.0
    %2099 = vmatprep.subr.mxu0 0.0
    %2100 = vmatpush1.msra.mxu0 0.0
    %2101 = vmatprep.subr.mxu0 0.0
    %2102 = vmatpush1.msra.mxu0 0.0
    %2103 = vmatprep.subr.mxu0 0.0
    %2104 = vmatpush1.msra.mxu0 0.0
    %2105 = vmatprep.subr.mxu0 0.0
    %2106 = vmatpush1.msra.mxu0 0.0
    %2107 = vmatprep.subr.mxu0 0.0
    %2108 = vmatpush1.msra.mxu0 0.0
    %2109 = vmatprep.subr.mxu0 0.0
    %2110 = vmatpush1.msra.mxu0 0.0
    %2111 = vmatprep.subr.mxu0 0.0
    %2112 = vmatpush1.msra.mxu0 0.0
    %2113 = vmatprep.subr.mxu0 0.0
    %2114 = vmatpush1.msra.mxu0 0.0
    %2115 = vmatprep.subr.mxu0 0.0
    %2116 = vmatpush1.msra.mxu0 0.0
    %2117 = vmatprep.subr.mxu0 0.0
    %2118 = vmatpush1.msra.mxu0 0.0
    %2119 = vmatprep.subr.mxu0 0.0
    %2120 = vmatpush1.msra.mxu0 0.0
    %2121 = vmatprep.subr.mxu0 0.0
    %2122 = vmatpush1.msra.mxu0 0.0
    %2123 = vmatprep.subr.mxu0 0.0
    %2124 = vmatpush1.msra.mxu0 0.0
    %2125 = vmatprep.mubr.f32.mxu0 0.0
    %2126 = vmatmul.mubr.f32.gmra.mrb[0].mxu0 %v2059
    %v2127 = vpop.f32.mrb[0].mxu0
    %v2128 = vadd.f32 0.0, %v2127
    %v2129 = vpop.f32.mrb[0].mxu0
    %v2130 = vadd.f32 0.0, %v2129
    %2131 = vdwg.mxu0
    %2132 = vmatprep.subr.mxu0 %v424
    %2133 = vmatpush1.msra.mxu0 %v423
    %2134 = vmatprep.subr.mxu0 %v428
    %2135 = vmatpush1.msra.mxu0 %v427
    %2136 = vmatprep.subr.mxu0 %v432
    %2137 = vmatpush1.msra.mxu0 %v431
    %2138 = vmatprep.subr.mxu0 %v436
    %2139 = vmatpush1.msra.mxu0 %v435
    %2140 = vmatprep.subr.mxu0 %v440
    %2141 = vmatpush1.msra.mxu0 %v439
    %2142 = vmatprep.subr.mxu0 %v444
    %2143 = vmatpush1.msra.mxu0 %v443
    %2144 = vmatprep.subr.mxu0 %v448
    %2145 = vmatpush1.msra.mxu0 %v447
    %2146 = vmatprep.subr.mxu0 %v452
    %2147 = vmatpush1.msra.mxu0 %v451
    %2148 = vmatprep.subr.mxu0 %v456
    %2149 = vmatpush1.msra.mxu0 %v455
    %2150 = vmatprep.subr.mxu0 %v460
    %2151 = vmatpush1.msra.mxu0 %v459
    %2152 = vmatprep.subr.mxu0 %v464
    %2153 = vmatpush1.msra.mxu0 %v463
    %2154 = vmatprep.subr.mxu0 %v468
    %2155 = vmatpush1.msra.mxu0 %v467
    %2156 = vmatprep.subr.mxu0 %v472
    %2157 = vmatpush1.msra.mxu0 %v471
    %2158 = vmatprep.subr.mxu0 %v476
    %2159 = vmatpush1.msra.mxu0 %v475
    %2160 = vmatprep.subr.mxu0 %v480
    %2161 = vmatpush1.msra.mxu0 %v479
    %2162 = vmatprep.subr.mxu0 %v484
    %2163 = vmatpush1.msra.mxu0 %v483
    %2164 = vmatprep.subr.mxu0 0.0
    %2165 = vmatpush1.msra.mxu0 0.0
    %2166 = vmatprep.subr.mxu0 0.0
    %2167 = vmatpush1.msra.mxu0 0.0
    %2168 = vmatprep.subr.mxu0 0.0
    %2169 = vmatpush1.msra.mxu0 0.0
    %2170 = vmatprep.subr.mxu0 0.0
    %2171 = vmatpush1.msra.mxu0 0.0
    %2172 = vmatprep.subr.mxu0 0.0
    %2173 = vmatpush1.msra.mxu0 0.0
    %2174 = vmatprep.subr.mxu0 0.0
    %2175 = vmatpush1.msra.mxu0 0.0
    %2176 = vmatprep.subr.mxu0 0.0
    %2177 = vmatpush1.msra.mxu0 0.0
    %2178 = vmatprep.subr.mxu0 0.0
    %2179 = vmatpush1.msra.mxu0 0.0
    %2180 = vmatprep.subr.mxu0 0.0
    %2181 = vmatpush1.msra.mxu0 0.0
    %2182 = vmatprep.subr.mxu0 0.0
    %2183 = vmatpush1.msra.mxu0 0.0
    %2184 = vmatprep.subr.mxu0 0.0
    %2185 = vmatpush1.msra.mxu0 0.0
    %2186 = vmatprep.subr.mxu0 0.0
    %2187 = vmatpush1.msra.mxu0 0.0
    %2188 = vmatprep.subr.mxu0 0.0
    %2189 = vmatpush1.msra.mxu0 0.0
    %2190 = vmatprep.subr.mxu0 0.0
    %2191 = vmatpush1.msra.mxu0 0.0
    %2192 = vmatprep.subr.mxu0 0.0
    %2193 = vmatpush1.msra.mxu0 0.0
    %2194 = vmatprep.subr.mxu0 0.0
    %2195 = vmatpush1.msra.mxu0 0.0
    %2196 = vmatprep.mubr.f32.mxu0 0.0
    %2197 = vmatmul.mubr.f32.gmra.mrb[0].mxu0 %v2059
    %v2198 = vpop.f32.mrb[0].mxu0
    %v2199 = vadd.f32 0.0, %v2198
    %v2200 = vpop.f32.mrb[0].mxu0
    %v2201 = vadd.f32 0.0, %v2200
    %2202 = vdwg.mxu0
    %v2203 = vadd.f32 %v2054, %v2128
    %v2204 = vadd.f32 %v2055, %v2130
    %v2205 = vadd.f32 %v2056, %v2199
    %v2206 = vadd.f32 %v2057, %v2201
    %v2207 = vxor.u32 %v2203, 2147483648
    %v2208 = vmul.f32 %v2207, 1.442695
    %v2209 = vpow.pop %v2208
    %v2210 = vadd.f32 %v2209, 1.0
    %v2211 = vrcp.pop %v2210
    %v2212 = vmul.f32 1.0, %v2211
    %v2213 = vxor.u32 %v2204, 2147483648
    %v2214 = vmul.f32 %v2213, 1.442695
    %v2215 = vpow.pop %v2214
    %v2216 = vadd.f32 %v2215, 1.0
    %v2217 = vrcp.pop %v2216
    %v2218 = vmul.f32 1.0, %v2217
    %v2219 = vtanh.pop %v2205
    %v2220 = vxor.u32 %v2206, 2147483648
    %v2221 = vmul.f32 %v2220, 1.442695
    %v2222 = vpow.pop %v2221
    %v2223 = vadd.f32 %v2222, 1.0
    %v2224 = vrcp.pop %v2223
    %v2225 = vmul.f32 1.0, %v2224
    %v2227 = vrot.slane %v1869, 6
    %v2229 = vmul.f32 %v2218, %v2227
    %v2230 = vmul.f32 %v2212, %v2219
    %v2231 = vadd.f32 %v2229, %v2230
    %v2232 = vtanh.pop %v2231
    %v2233 = vmul.f32 %v2225, %v2232
    %v2234 = vld [vmem:[#allocation3] sm:$0xc0]
    %v2235 = vld [vmem:[#allocation3 + $0x8] sm:$0xc0]
    %v2236 = vld [vmem:[#allocation3 + $0x10] sm:$0xc0]
    %v2237 = vld [vmem:[#allocation3 + $0x18] sm:$0xc0]
    %2238 = vmatprep.subr.mxu0 %v486
    %2239 = vmatpush1.msra.mxu0 %v485
    %2240 = vmatprep.subr.mxu0 %v490
    %2241 = vmatpush1.msra.mxu0 %v489
    %2242 = vmatprep.subr.mxu0 %v494
    %2243 = vmatpush1.msra.mxu0 %v493
    %2244 = vmatprep.subr.mxu0 %v498
    %2245 = vmatpush1.msra.mxu0 %v497
    %2246 = vmatprep.subr.mxu0 %v502
    %2247 = vmatpush1.msra.mxu0 %v501
    %2248 = vmatprep.subr.mxu0 %v506
    %2249 = vmatpush1.msra.mxu0 %v505
    %2250 = vmatprep.subr.mxu0 %v510
    %2251 = vmatpush1.msra.mxu0 %v509
    %2252 = vmatprep.subr.mxu0 %v514
    %2253 = vmatpush1.msra.mxu0 %v513
    %2254 = vmatprep.subr.mxu0 %v518
    %2255 = vmatpush1.msra.mxu0 %v517
    %2256 = vmatprep.subr.mxu0 %v522
    %2257 = vmatpush1.msra.mxu0 %v521
    %2258 = vmatprep.subr.mxu0 %v526
    %2259 = vmatpush1.msra.mxu0 %v525
    %2260 = vmatprep.subr.mxu0 %v530
    %2261 = vmatpush1.msra.mxu0 %v529
    %2262 = vmatprep.subr.mxu0 %v534
    %2263 = vmatpush1.msra.mxu0 %v533
    %2264 = vmatprep.subr.mxu0 %v538
    %2265 = vmatpush1.msra.mxu0 %v537
    %2266 = vmatprep.subr.mxu0 %v542
    %2267 = vmatpush1.msra.mxu0 %v541
    %2268 = vmatprep.subr.mxu0 %v546
    %2269 = vmatpush1.msra.mxu0 %v545
    %2270 = vmatprep.subr.mxu0 0.0
    %2271 = vmatpush1.msra.mxu0 0.0
    %2272 = vmatprep.subr.mxu0 0.0
    %2273 = vmatpush1.msra.mxu0 0.0
    %2274 = vmatprep.subr.mxu0 0.0
    %2275 = vmatpush1.msra.mxu0 0.0
    %2276 = vmatprep.subr.mxu0 0.0
    %2277 = vmatpush1.msra.mxu0 0.0
    %2278 = vmatprep.subr.mxu0 0.0
    %2279 = vmatpush1.msra.mxu0 0.0
    %2280 = vmatprep.subr.mxu0 0.0
    %2281 = vmatpush1.msra.mxu0 0.0
    %2282 = vmatprep.subr.mxu0 0.0
    %2283 = vmatpush1.msra.mxu0 0.0
    %2284 = vmatprep.subr.mxu0 0.0
    %2285 = vmatpush1.msra.mxu0 0.0
    %2286 = vmatprep.subr.mxu0 0.0
    %2287 = vmatpush1.msra.mxu0 0.0
    %2288 = vmatprep.subr.mxu0 0.0
    %2289 = vmatpush1.msra.mxu0 0.0
    %2290 = vmatprep.subr.mxu0 0.0
    %2291 = vmatpush1.msra.mxu0 0.0
    %2292 = vmatprep.subr.mxu0 0.0
    %2293 = vmatpush1.msra.mxu0 0.0
    %2294 = vmatprep.subr.mxu0 0.0
    %2295 = vmatpush1.msra.mxu0 0.0
    %2296 = vmatprep.subr.mxu0 0.0
    %2297 = vmatpush1.msra.mxu0 0.0
    %2298 = vmatprep.subr.mxu0 0.0
    %2299 = vmatpush1.msra.mxu0 0.0
    %2300 = vmatprep.subr.mxu0 0.0
    %2301 = vmatpush1.msra.mxu0 0.0
    %2302 = vmatprep.mubr.f32.mxu0 0.0
    %2303 = vmatmul.mubr.f32.gmra.mrb[0].mxu0 %v2051
    %v2304 = vpop.f32.mrb[0].mxu0
    %v2305 = vadd.f32 0.0, %v2304
    %v2306 = vpop.f32.mrb[0].mxu0
    %v2307 = vadd.f32 0.0, %v2306
    %2308 = vdwg.mxu0
    %2309 = vmatprep.subr.mxu0 %v488
    %2310 = vmatpush1.msra.mxu0 %v487
    %2311 = vmatprep.subr.mxu0 %v492
    %2312 = vmatpush1.msra.mxu0 %v491
    %2313 = vmatprep.subr.mxu0 %v496
    %2314 = vmatpush1.msra.mxu0 %v495
    %2315 = vmatprep.subr.mxu0 %v500
    %2316 = vmatpush1.msra.mxu0 %v499
    %2317 = vmatprep.subr.mxu0 %v504
    %2318 = vmatpush1.msra.mxu0 %v503
    %2319 = vmatprep.subr.mxu0 %v508
    %2320 = vmatpush1.msra.mxu0 %v507
    %2321 = vmatprep.subr.mxu0 %v512
    %2322 = vmatpush1.msra.mxu0 %v511
    %2323 = vmatprep.subr.mxu0 %v516
    %2324 = vmatpush1.msra.mxu0 %v515
    %2325 = vmatprep.subr.mxu0 %v520
    %2326 = vmatpush1.msra.mxu0 %v519
    %2327 = vmatprep.subr.mxu0 %v524
    %2328 = vmatpush1.msra.mxu0 %v523
    %2329 = vmatprep.subr.mxu0 %v528
    %2330 = vmatpush1.msra.mxu0 %v527
    %2331 = vmatprep.subr.mxu0 %v532
    %2332 = vmatpush1.msra.mxu0 %v531
    %2333 = vmatprep.subr.mxu0 %v536
    %2334 = vmatpush1.msra.mxu0 %v535
    %2335 = vmatprep.subr.mxu0 %v540
    %2336 = vmatpush1.msra.mxu0 %v539
    %2337 = vmatprep.subr.mxu0 %v544
    %2338 = vmatpush1.msra.mxu0 %v543
    %2339 = vmatprep.subr.mxu0 %v548
    %2340 = vmatpush1.msra.mxu0 %v547
    %2341 = vmatprep.subr.mxu0 0.0
    %2342 = vmatpush1.msra.mxu0 0.0
    %2343 = vmatprep.subr.mxu0 0.0
    %2344 = vmatpush1.msra.mxu0 0.0
    %2345 = vmatprep.subr.mxu0 0.0
    %2346 = vmatpush1.msra.mxu0 0.0
    %2347 = vmatprep.subr.mxu0 0.0
    %2348 = vmatpush1.msra.mxu0 0.0
    %2349 = vmatprep.subr.mxu0 0.0
    %2350 = vmatpush1.msra.mxu0 0.0
    %2351 = vmatprep.subr.mxu0 0.0
    %2352 = vmatpush1.msra.mxu0 0.0
    %2353 = vmatprep.subr.mxu0 0.0
    %2354 = vmatpush1.msra.mxu0 0.0
    %2355 = vmatprep.subr.mxu0 0.0
    %2356 = vmatpush1.msra.mxu0 0.0
    %2357 = vmatprep.subr.mxu0 0.0
    %2358 = vmatpush1.msra.mxu0 0.0
    %2359 = vmatprep.subr.mxu0 0.0
    %2360 = vmatpush1.msra.mxu0 0.0
    %2361 = vmatprep.subr.mxu0 0.0
    %2362 = vmatpush1.msra.mxu0 0.0
    %2363 = vmatprep.subr.mxu0 0.0
    %2364 = vmatpush1.msra.mxu0 0.0
    %2365 = vmatprep.subr.mxu0 0.0
    %2366 = vmatpush1.msra.mxu0 0.0
    %2367 = vmatprep.subr.mxu0 0.0
    %2368 = vmatpush1.msra.mxu0 0.0
    %2369 = vmatprep.subr.mxu0 0.0
    %2370 = vmatpush1.msra.mxu0 0.0
    %2371 = vmatprep.subr.mxu0 0.0
    %2372 = vmatpush1.msra.mxu0 0.0
    %2373 = vmatprep.mubr.f32.mxu0 0.0
    %2374 = vmatmul.mubr.f32.gmra.mrb[0].mxu0 %v2051
    %v2375 = vpop.f32.mrb[0].mxu0
    %v2376 = vadd.f32 0.0, %v2375
    %v2377 = vpop.f32.mrb[0].mxu0
    %v2378 = vadd.f32 0.0, %v2377
    %2379 = vdwg.mxu0
    %v2384 = vrot.slane %v2305, 2
    %v2385 = vrot.slane %v2307, 2
    %v2386 = vrot.slane %v2376, 2
    %v2387 = vrot.slane %v2378, 2
    %v2392 = vadd.f32 %v2234, %v2384
    %v2393 = vadd.f32 %v2235, %v2385
    %v2394 = vadd.f32 %v2236, %v2386
    %v2395 = vadd.f32 %v2237, %v2387
    %v2396 = vxor.u32 %v2392, 2147483648
    %v2397 = vmul.f32 %v2396, 1.442695
    %v2398 = vpow.pop %v2397
    %v2399 = vadd.f32 %v2398, 1.0
    %v2400 = vrcp.pop %v2399
    %v2401 = vmul.f32 1.0, %v2400
    %v2402 = vxor.u32 %v2393, 2147483648
    %v2403 = vmul.f32 %v2402, 1.442695
    %v2404 = vpow.pop %v2403
    %v2405 = vadd.f32 %v2404, 1.0
    %v2406 = vrcp.pop %v2405
    %v2407 = vmul.f32 1.0, %v2406
    %v2408 = vtanh.pop %v2394
    %v2409 = vxor.u32 %v2395, 2147483648
    %v2410 = vmul.f32 %v2409, 1.442695
    %v2411 = vpow.pop %v2410
    %v2412 = vadd.f32 %v2411, 1.0
    %v2413 = vrcp.pop %v2412
    %v2414 = vmul.f32 1.0, %v2413
    %v2416 = vrot.slane %v2049, 2
    %v2418 = vmul.f32 %v2407, %v2416
    %v2419 = vmul.f32 %v2401, %v2408
    %v2420 = vadd.f32 %v2418, %v2419
    %v2421 = vtanh.pop %v2420
    %v2422 = vmul.f32 %v2414, %v2421
    %2423 = vst [vmem:[#allocation4 + $0x8] sm:$0x3] %v2233
    %2424 = vst [vmem:[#allocation5] sm:$0xc0] %v2422
    %v2425 = vld [vmem:[#allocation2 + $0x20] sm:$0xc]
    %v2426 = vld [vmem:[#allocation2 + $0x28] sm:$0xc]
    %v2427 = vld [vmem:[#allocation2 + $0x30] sm:$0xc]
    %v2428 = vld [vmem:[#allocation2 + $0x38] sm:$0xc]
    %2429 = vmatprep.subr.mxu0 %v422
    %2430 = vmatpush1.msra.mxu0 %v421
    %2431 = vmatprep.subr.mxu0 %v426
    %2432 = vmatpush1.msra.mxu0 %v425
    %2433 = vmatprep.subr.mxu0 %v430
    %2434 = vmatpush1.msra.mxu0 %v429
    %2435 = vmatprep.subr.mxu0 %v434
    %2436 = vmatpush1.msra.mxu0 %v433
    %2437 = vmatprep.subr.mxu0 %v438
    %2438 = vmatpush1.msra.mxu0 %v437
    %2439 = vmatprep.subr.mxu0 %v442
    %2440 = vmatpush1.msra.mxu0 %v441
    %2441 = vmatprep.subr.mxu0 %v446
    %2442 = vmatpush1.msra.mxu0 %v445
    %2443 = vmatprep.subr.mxu0 %v450
    %2444 = vmatpush1.msra.mxu0 %v449
    %2445 = vmatprep.subr.mxu0 %v454
    %2446 = vmatpush1.msra.mxu0 %v453
    %2447 = vmatprep.subr.mxu0 %v458
    %2448 = vmatpush1.msra.mxu0 %v457
    %2449 = vmatprep.subr.mxu0 %v462
    %2450 = vmatpush1.msra.mxu0 %v461
    %2451 = vmatprep.subr.mxu0 %v466
    %2452 = vmatpush1.msra.mxu0 %v465
    %2453 = vmatprep.subr.mxu0 %v470
    %2454 = vmatpush1.msra.mxu0 %v469
    %2455 = vmatprep.subr.mxu0 %v474
    %2456 = vmatpush1.msra.mxu0 %v473
    %2457 = vmatprep.subr.mxu0 %v478
    %2458 = vmatpush1.msra.mxu0 %v477
    %2459 = vmatprep.subr.mxu0 %v482
    %2460 = vmatpush1.msra.mxu0 %v481
    %2461 = vmatprep.subr.mxu0 0.0
    %2462 = vmatpush1.msra.mxu0 0.0
    %2463 = vmatprep.subr.mxu0 0.0
    %2464 = vmatpush1.msra.mxu0 0.0
    %2465 = vmatprep.subr.mxu0 0.0
    %2466 = vmatpush1.msra.mxu0 0.0
    %2467 = vmatprep.subr.mxu0 0.0
    %2468 = vmatpush1.msra.mxu0 0.0
    %2469 = vmatprep.subr.mxu0 0.0
    %2470 = vmatpush1.msra.mxu0 0.0
    %2471 = vmatprep.subr.mxu0 0.0
    %2472 = vmatpush1.msra.mxu0 0.0
    %2473 = vmatprep.subr.mxu0 0.0
    %2474 = vmatpush1.msra.mxu0 0.0
    %2475 = vmatprep.subr.mxu0 0.0
    %2476 = vmatpush1.msra.mxu0 0.0
    %2477 = vmatprep.subr.mxu0 0.0
    %2478 = vmatpush1.msra.mxu0 0.0
    %2479 = vmatprep.subr.mxu0 0.0
    %2480 = vmatpush1.msra.mxu0 0.0
    %2481 = vmatprep.subr.mxu0 0.0
    %2482 = vmatpush1.msra.mxu0 0.0
    %2483 = vmatprep.subr.mxu0 0.0
    %2484 = vmatpush1.msra.mxu0 0.0
    %2485 = vmatprep.subr.mxu0 0.0
    %2486 = vmatpush1.msra.mxu0 0.0
    %2487 = vmatprep.subr.mxu0 0.0
    %2488 = vmatpush1.msra.mxu0 0.0
    %2489 = vmatprep.subr.mxu0 0.0
    %2490 = vmatpush1.msra.mxu0 0.0
    %2491 = vmatprep.subr.mxu0 0.0
    %2492 = vmatpush1.msra.mxu0 0.0
    %2493 = vmatprep.mubr.f32.mxu0 0.0
    %2494 = vmatmul.mubr.f32.gmra.mrb[0].mxu0 %v2233
    %v2495 = vpop.f32.mrb[0].mxu0
    %v2496 = vadd.f32 0.0, %v2495
    %v2497 = vpop.f32.mrb[0].mxu0
    %v2498 = vadd.f32 0.0, %v2497
    %2499 = vdwg.mxu0
    %2500 = vmatprep.subr.mxu0 %v424
    %2501 = vmatpush1.msra.mxu0 %v423
    %2502 = vmatprep.subr.mxu0 %v428
    %2503 = vmatpush1.msra.mxu0 %v427
    %2504 = vmatprep.subr.mxu0 %v432
    %2505 = vmatpush1.msra.mxu0 %v431
    %2506 = vmatprep.subr.mxu0 %v436
    %2507 = vmatpush1.msra.mxu0 %v435
    %2508 = vmatprep.subr.mxu0 %v440
    %2509 = vmatpush1.msra.mxu0 %v439
    %2510 = vmatprep.subr.mxu0 %v444
    %2511 = vmatpush1.msra.mxu0 %v443
    %2512 = vmatprep.subr.mxu0 %v448
    %2513 = vmatpush1.msra.mxu0 %v447
    %2514 = vmatprep.subr.mxu0 %v452
    %2515 = vmatpush1.msra.mxu0 %v451
    %2516 = vmatprep.subr.mxu0 %v456
    %2517 = vmatpush1.msra.mxu0 %v455
    %2518 = vmatprep.subr.mxu0 %v460
    %2519 = vmatpush1.msra.mxu0 %v459
    %2520 = vmatprep.subr.mxu0 %v464
    %2521 = vmatpush1.msra.mxu0 %v463
    %2522 = vmatprep.subr.mxu0 %v468
    %2523 = vmatpush1.msra.mxu0 %v467
    %2524 = vmatprep.subr.mxu0 %v472
    %2525 = vmatpush1.msra.mxu0 %v471
    %2526 = vmatprep.subr.mxu0 %v476
    %2527 = vmatpush1.msra.mxu0 %v475
    %2528 = vmatprep.subr.mxu0 %v480
    %2529 = vmatpush1.msra.mxu0 %v479
    %2530 = vmatprep.subr.mxu0 %v484
    %2531 = vmatpush1.msra.mxu0 %v483
    %2532 = vmatprep.subr.mxu0 0.0
    %2533 = vmatpush1.msra.mxu0 0.0
    %2534 = vmatprep.subr.mxu0 0.0
    %2535 = vmatpush1.msra.mxu0 0.0
    %2536 = vmatprep.subr.mxu0 0.0
    %2537 = vmatpush1.msra.mxu0 0.0
    %2538 = vmatprep.subr.mxu0 0.0
    %2539 = vmatpush1.msra.mxu0 0.0
    %2540 = vmatprep.subr.mxu0 0.0
    %2541 = vmatpush1.msra.mxu0 0.0
    %2542 = vmatprep.subr.mxu0 0.0
    %2543 = vmatpush1.msra.mxu0 0.0
    %2544 = vmatprep.subr.mxu0 0.0
    %2545 = vmatpush1.msra.mxu0 0.0
    %2546 = vmatprep.subr.mxu0 0.0
    %2547 = vmatpush1.msra.mxu0 0.0
    %2548 = vmatprep.subr.mxu0 0.0
    %2549 = vmatpush1.msra.mxu0 0.0
    %2550 = vmatprep.subr.mxu0 0.0
    %2551 = vmatpush1.msra.mxu0 0.0
    %2552 = vmatprep.subr.mxu0 0.0
    %2553 = vmatpush1.msra.mxu0 0.0
    %2554 = vmatprep.subr.mxu0 0.0
    %2555 = vmatpush1.msra.mxu0 0.0
    %2556 = vmatprep.subr.mxu0 0.0
    %2557 = vmatpush1.msra.mxu0 0.0
    %2558 = vmatprep.subr.mxu0 0.0
    %2559 = vmatpush1.msra.mxu0 0.0
    %2560 = vmatprep.subr.mxu0 0.0
    %2561 = vmatpush1.msra.mxu0 0.0
    %2562 = vmatprep.subr.mxu0 0.0
    %2563 = vmatpush1.msra.mxu0 0.0
    %2564 = vmatprep.mubr.f32.mxu0 0.0
    %2565 = vmatmul.mubr.f32.gmra.mrb[0].mxu0 %v2233
    %v2566 = vpop.f32.mrb[0].mxu0
    %v2567 = vadd.f32 0.0, %v2566
    %v2568 = vpop.f32.mrb[0].mxu0
    %v2569 = vadd.f32 0.0, %v2568
    %2570 = vdwg.mxu0
    %v2575 = vrot.slane %v2496, 6
    %v2576 = vrot.slane %v2498, 6
    %v2577 = vrot.slane %v2567, 6
    %v2578 = vrot.slane %v2569, 6
    %v2583 = vadd.f32 %v2425, %v2575
    %v2584 = vadd.f32 %v2426, %v2576
    %v2585 = vadd.f32 %v2427, %v2577
    %v2586 = vadd.f32 %v2428, %v2578
    %v2587 = vxor.u32 %v2583, 2147483648
    %v2588 = vmul.f32 %v2587, 1.442695
    %v2589 = vpow.pop %v2588
    %v2590 = vadd.f32 %v2589, 1.0
    %v2591 = vrcp.pop %v2590
    %v2592 = vmul.f32 1.0, %v2591
    %v2593 = vxor.u32 %v2584, 2147483648
    %v2594 = vmul.f32 %v2593, 1.442695
    %v2595 = vpow.pop %v2594
    %v2596 = vadd.f32 %v2595, 1.0
    %v2597 = vrcp.pop %v2596
    %v2598 = vmul.f32 1.0, %v2597
    %v2599 = vtanh.pop %v2585
    %v2600 = vxor.u32 %v2586, 2147483648
    %v2601 = vmul.f32 %v2600, 1.442695
    %v2602 = vpow.pop %v2601
    %v2603 = vadd.f32 %v2602, 1.0
    %v2604 = vrcp.pop %v2603
    %v2605 = vmul.f32 1.0, %v2604
    %v2607 = vrot.slane %v2231, 6
    %v2609 = vmul.f32 %v2598, %v2607
    %v2610 = vmul.f32 %v2592, %v2599
    %v2611 = vadd.f32 %v2609, %v2610
    %v2612 = vtanh.pop %v2611
    %v2613 = vmul.f32 %v2605, %v2612
    %v2614 = vld [vmem:[#allocation3] sm:$0x30]
    %v2615 = vld [vmem:[#allocation3 + $0x8] sm:$0x30]
    %v2616 = vld [vmem:[#allocation3 + $0x10] sm:$0x30]
    %v2617 = vld [vmem:[#allocation3 + $0x18] sm:$0x30]
    %v2619 = vrot.slane %v2422, 6
    %2621 = vmatprep.subr.mxu0 %v486
    %2622 = vmatpush1.msra.mxu0 %v485
    %2623 = vmatprep.subr.mxu0 %v490
    %2624 = vmatpush1.msra.mxu0 %v489
    %2625 = vmatprep.subr.mxu0 %v494
    %2626 = vmatpush1.msra.mxu0 %v493
    %2627 = vmatprep.subr.mxu0 %v498
    %2628 = vmatpush1.msra.mxu0 %v497
    %2629 = vmatprep.subr.mxu0 %v502
    %2630 = vmatpush1.msra.mxu0 %v501
    %2631 = vmatprep.subr.mxu0 %v506
    %2632 = vmatpush1.msra.mxu0 %v505
    %2633 = vmatprep.subr.mxu0 %v510
    %2634 = vmatpush1.msra.mxu0 %v509
    %2635 = vmatprep.subr.mxu0 %v514
    %2636 = vmatpush1.msra.mxu0 %v513
    %2637 = vmatprep.subr.mxu0 %v518
    %2638 = vmatpush1.msra.mxu0 %v517
    %2639 = vmatprep.subr.mxu0 %v522
    %2640 = vmatpush1.msra.mxu0 %v521
    %2641 = vmatprep.subr.mxu0 %v526
    %2642 = vmatpush1.msra.mxu0 %v525
    %2643 = vmatprep.subr.mxu0 %v530
    %2644 = vmatpush1.msra.mxu0 %v529
    %2645 = vmatprep.subr.mxu0 %v534
    %2646 = vmatpush1.msra.mxu0 %v533
    %2647 = vmatprep.subr.mxu0 %v538
    %2648 = vmatpush1.msra.mxu0 %v537
    %2649 = vmatprep.subr.mxu0 %v542
    %2650 = vmatpush1.msra.mxu0 %v541
    %2651 = vmatprep.subr.mxu0 %v546
    %2652 = vmatpush1.msra.mxu0 %v545
    %2653 = vmatprep.subr.mxu0 0.0
    %2654 = vmatpush1.msra.mxu0 0.0
    %2655 = vmatprep.subr.mxu0 0.0
    %2656 = vmatpush1.msra.mxu0 0.0
    %2657 = vmatprep.subr.mxu0 0.0
    %2658 = vmatpush1.msra.mxu0 0.0
    %2659 = vmatprep.subr.mxu0 0.0
    %2660 = vmatpush1.msra.mxu0 0.0
    %2661 = vmatprep.subr.mxu0 0.0
    %2662 = vmatpush1.msra.mxu0 0.0
    %2663 = vmatprep.subr.mxu0 0.0
    %2664 = vmatpush1.msra.mxu0 0.0
    %2665 = vmatprep.subr.mxu0 0.0
    %2666 = vmatpush1.msra.mxu0 0.0
    %2667 = vmatprep.subr.mxu0 0.0
    %2668 = vmatpush1.msra.mxu0 0.0
    %2669 = vmatprep.subr.mxu0 0.0
    %2670 = vmatpush1.msra.mxu0 0.0
    %2671 = vmatprep.subr.mxu0 0.0
    %2672 = vmatpush1.msra.mxu0 0.0
    %2673 = vmatprep.subr.mxu0 0.0
    %2674 = vmatpush1.msra.mxu0 0.0
    %2675 = vmatprep.subr.mxu0 0.0
    %2676 = vmatpush1.msra.mxu0 0.0
    %2677 = vmatprep.subr.mxu0 0.0
    %2678 = vmatpush1.msra.mxu0 0.0
    %2679 = vmatprep.subr.mxu0 0.0
    %2680 = vmatpush1.msra.mxu0 0.0
    %2681 = vmatprep.subr.mxu0 0.0
    %2682 = vmatpush1.msra.mxu0 0.0
    %2683 = vmatprep.subr.mxu0 0.0
    %2684 = vmatpush1.msra.mxu0 0.0
    %2685 = vmatprep.mubr.f32.mxu0 0.0
    %2686 = vmatmul.mubr.f32.gmra.mrb[0].mxu0 %v2619
    %v2687 = vpop.f32.mrb[0].mxu0
    %v2688 = vadd.f32 0.0, %v2687
    %v2689 = vpop.f32.mrb[0].mxu0
    %v2690 = vadd.f32 0.0, %v2689
    %2691 = vdwg.mxu0
    %2692 = vmatprep.subr.mxu0 %v488
    %2693 = vmatpush1.msra.mxu0 %v487
    %2694 = vmatprep.subr.mxu0 %v492
    %2695 = vmatpush1.msra.mxu0 %v491
    %2696 = vmatprep.subr.mxu0 %v496
    %2697 = vmatpush1.msra.mxu0 %v495
    %2698 = vmatprep.subr.mxu0 %v500
    %2699 = vmatpush1.msra.mxu0 %v499
    %2700 = vmatprep.subr.mxu0 %v504
    %2701 = vmatpush1.msra.mxu0 %v503
    %2702 = vmatprep.subr.mxu0 %v508
    %2703 = vmatpush1.msra.mxu0 %v507
    %2704 = vmatprep.subr.mxu0 %v512
    %2705 = vmatpush1.msra.mxu0 %v511
    %2706 = vmatprep.subr.mxu0 %v516
    %2707 = vmatpush1.msra.mxu0 %v515
    %2708 = vmatprep.subr.mxu0 %v520
    %2709 = vmatpush1.msra.mxu0 %v519
    %2710 = vmatprep.subr.mxu0 %v524
    %2711 = vmatpush1.msra.mxu0 %v523
    %2712 = vmatprep.subr.mxu0 %v528
    %2713 = vmatpush1.msra.mxu0 %v527
    %2714 = vmatprep.subr.mxu0 %v532
    %2715 = vmatpush1.msra.mxu0 %v531
    %2716 = vmatprep.subr.mxu0 %v536
    %2717 = vmatpush1.msra.mxu0 %v535
    %2718 = vmatprep.subr.mxu0 %v540
    %2719 = vmatpush1.msra.mxu0 %v539
    %2720 = vmatprep.subr.mxu0 %v544
    %2721 = vmatpush1.msra.mxu0 %v543
    %2722 = vmatprep.subr.mxu0 %v548
    %2723 = vmatpush1.msra.mxu0 %v547
    %2724 = vmatprep.subr.mxu0 0.0
    %2725 = vmatpush1.msra.mxu0 0.0
    %2726 = vmatprep.subr.mxu0 0.0
    %2727 = vmatpush1.msra.mxu0 0.0
    %2728 = vmatprep.subr.mxu0 0.0
    %2729 = vmatpush1.msra.mxu0 0.0
    %2730 = vmatprep.subr.mxu0 0.0
    %2731 = vmatpush1.msra.mxu0 0.0
    %2732 = vmatprep.subr.mxu0 0.0
    %2733 = vmatpush1.msra.mxu0 0.0
    %2734 = vmatprep.subr.mxu0 0.0
    %2735 = vmatpush1.msra.mxu0 0.0
    %2736 = vmatprep.subr.mxu0 0.0
    %2737 = vmatpush1.msra.mxu0 0.0
    %2738 = vmatprep.subr.mxu0 0.0
    %2739 = vmatpush1.msra.mxu0 0.0
    %2740 = vmatprep.subr.mxu0 0.0
    %2741 = vmatpush1.msra.mxu0 0.0
    %2742 = vmatprep.subr.mxu0 0.0
    %2743 = vmatpush1.msra.mxu0 0.0
    %2744 = vmatprep.subr.mxu0 0.0
    %2745 = vmatpush1.msra.mxu0 0.0
    %2746 = vmatprep.subr.mxu0 0.0
    %2747 = vmatpush1.msra.mxu0 0.0
    %2748 = vmatprep.subr.mxu0 0.0
    %2749 = vmatpush1.msra.mxu0 0.0
    %2750 = vmatprep.subr.mxu0 0.0
    %2751 = vmatpush1.msra.mxu0 0.0
    %2752 = vmatprep.subr.mxu0 0.0
    %2753 = vmatpush1.msra.mxu0 0.0
    %2754 = vmatprep.subr.mxu0 0.0
    %2755 = vmatpush1.msra.mxu0 0.0
    %2756 = vmatprep.mubr.f32.mxu0 0.0
    %2757 = vmatmul.mubr.f32.gmra.mrb[0].mxu0 %v2619
    %v2758 = vpop.f32.mrb[0].mxu0
    %v2759 = vadd.f32 0.0, %v2758
    %v2760 = vpop.f32.mrb[0].mxu0
    %v2761 = vadd.f32 0.0, %v2760
    %2762 = vdwg.mxu0
    %v2767 = vrot.slane %v2688, 4
    %v2768 = vrot.slane %v2690, 4
    %v2769 = vrot.slane %v2759, 4
    %v2770 = vrot.slane %v2761, 4
    %v2775 = vadd.f32 %v2614, %v2767
    %v2776 = vadd.f32 %v2615, %v2768
    %v2777 = vadd.f32 %v2616, %v2769
    %v2778 = vadd.f32 %v2617, %v2770
    %v2779 = vxor.u32 %v2775, 2147483648
    %v2780 = vmul.f32 %v2779, 1.442695
    %v2781 = vpow.pop %v2780
    %v2782 = vadd.f32 %v2781, 1.0
    %v2783 = vrcp.pop %v2782
    %v2784 = vmul.f32 1.0, %v2783
    %v2785 = vxor.u32 %v2776, 2147483648
    %v2786 = vmul.f32 %v2785, 1.442695
    %v2787 = vpow.pop %v2786
    %v2788 = vadd.f32 %v2787, 1.0
    %v2789 = vrcp.pop %v2788
    %v2790 = vmul.f32 1.0, %v2789
    %v2791 = vtanh.pop %v2777
    %v2792 = vxor.u32 %v2778, 2147483648
    %v2793 = vmul.f32 %v2792, 1.442695
    %v2794 = vpow.pop %v2793
    %v2795 = vadd.f32 %v2794, 1.0
    %v2796 = vrcp.pop %v2795
    %v2797 = vmul.f32 1.0, %v2796
    %v2799 = vrot.slane %v2420, 2
    %v2801 = vmul.f32 %v2790, %v2799
    %v2802 = vmul.f32 %v2784, %v2791
    %v2803 = vadd.f32 %v2801, %v2802
    %v2804 = vtanh.pop %v2803
    %v2805 = vmul.f32 %v2797, %v2804
    %2806 = vst [vmem:[#allocation4 + $0x8] sm:$0xc] %v2613
    %2807 = vst [vmem:[#allocation5] sm:$0x30] %v2805
    %v2808 = vld [vmem:[#allocation2 + $0x20] sm:$0x30]
    %v2809 = vld [vmem:[#allocation2 + $0x28] sm:$0x30]
    %v2810 = vld [vmem:[#allocation2 + $0x30] sm:$0x30]
    %v2811 = vld [vmem:[#allocation2 + $0x38] sm:$0x30]
    %v2813 = vrot.slane %v2613, 2
    %2815 = vmatprep.subr.mxu0 %v422
    %2816 = vmatpush1.msra.mxu0 %v421
    %2817 = vmatprep.subr.mxu0 %v426
    %2818 = vmatpush1.msra.mxu0 %v425
    %2819 = vmatprep.subr.mxu0 %v430
    %2820 = vmatpush1.msra.mxu0 %v429
    %2821 = vmatprep.subr.mxu0 %v434
    %2822 = vmatpush1.msra.mxu0 %v433
    %2823 = vmatprep.subr.mxu0 %v438
    %2824 = vmatpush1.msra.mxu0 %v437
    %2825 = vmatprep.subr.mxu0 %v442
    %2826 = vmatpush1.msra.mxu0 %v441
    %2827 = vmatprep.subr.mxu0 %v446
    %2828 = vmatpush1.msra.mxu0 %v445
    %2829 = vmatprep.subr.mxu0 %v450
    %2830 = vmatpush1.msra.mxu0 %v449
    %2831 = vmatprep.subr.mxu0 %v454
    %2832 = vmatpush1.msra.mxu0 %v453
    %2833 = vmatprep.subr.mxu0 %v458
    %2834 = vmatpush1.msra.mxu0 %v457
    %2835 = vmatprep.subr.mxu0 %v462
    %2836 = vmatpush1.msra.mxu0 %v461
    %2837 = vmatprep.subr.mxu0 %v466
    %2838 = vmatpush1.msra.mxu0 %v465
    %2839 = vmatprep.subr.mxu0 %v470
    %2840 = vmatpush1.msra.mxu0 %v469
    %2841 = vmatprep.subr.mxu0 %v474
    %2842 = vmatpush1.msra.mxu0 %v473
    %2843 = vmatprep.subr.mxu0 %v478
    %2844 = vmatpush1.msra.mxu0 %v477
    %2845 = vmatprep.subr.mxu0 %v482
    %2846 = vmatpush1.msra.mxu0 %v481
    %2847 = vmatprep.subr.mxu0 0.0
    %2848 = vmatpush1.msra.mxu0 0.0
    %2849 = vmatprep.subr.mxu0 0.0
    %2850 = vmatpush1.msra.mxu0 0.0
    %2851 = vmatprep.subr.mxu0 0.0
    %2852 = vmatpush1.msra.mxu0 0.0
    %2853 = vmatprep.subr.mxu0 0.0
    %2854 = vmatpush1.msra.mxu0 0.0
    %2855 = vmatprep.subr.mxu0 0.0
    %2856 = vmatpush1.msra.mxu0 0.0
    %2857 = vmatprep.subr.mxu0 0.0
    %2858 = vmatpush1.msra.mxu0 0.0
    %2859 = vmatprep.subr.mxu0 0.0
    %2860 = vmatpush1.msra.mxu0 0.0
    %2861 = vmatprep.subr.mxu0 0.0
    %2862 = vmatpush1.msra.mxu0 0.0
    %2863 = vmatprep.subr.mxu0 0.0
    %2864 = vmatpush1.msra.mxu0 0.0
    %2865 = vmatprep.subr.mxu0 0.0
    %2866 = vmatpush1.msra.mxu0 0.0
    %2867 = vmatprep.subr.mxu0 0.0
    %2868 = vmatpush1.msra.mxu0 0.0
    %2869 = vmatprep.subr.mxu0 0.0
    %2870 = vmatpush1.msra.mxu0 0.0
    %2871 = vmatprep.subr.mxu0 0.0
    %2872 = vmatpush1.msra.mxu0 0.0
    %2873 = vmatprep.subr.mxu0 0.0
    %2874 = vmatpush1.msra.mxu0 0.0
    %2875 = vmatprep.subr.mxu0 0.0
    %2876 = vmatpush1.msra.mxu0 0.0
    %2877 = vmatprep.subr.mxu0 0.0
    %2878 = vmatpush1.msra.mxu0 0.0
    %2879 = vmatprep.mubr.f32.mxu0 0.0
    %2880 = vmatmul.mubr.f32.gmra.mrb[0].mxu0 %v2813
    %v2881 = vpop.f32.mrb[0].mxu0
    %v2882 = vadd.f32 0.0, %v2881
    %v2883 = vpop.f32.mrb[0].mxu0
    %v2884 = vadd.f32 0.0, %v2883
    %2885 = vdwg.mxu0
    %2886 = vmatprep.subr.mxu0 %v424
    %2887 = vmatpush1.msra.mxu0 %v423
    %2888 = vmatprep.subr.mxu0 %v428
    %2889 = vmatpush1.msra.mxu0 %v427
    %2890 = vmatprep.subr.mxu0 %v432
    %2891 = vmatpush1.msra.mxu0 %v431
    %2892 = vmatprep.subr.mxu0 %v436
    %2893 = vmatpush1.msra.mxu0 %v435
    %2894 = vmatprep.subr.mxu0 %v440
    %2895 = vmatpush1.msra.mxu0 %v439
    %2896 = vmatprep.subr.mxu0 %v444
    %2897 = vmatpush1.msra.mxu0 %v443
    %2898 = vmatprep.subr.mxu0 %v448
    %2899 = vmatpush1.msra.mxu0 %v447
    %2900 = vmatprep.subr.mxu0 %v452
    %2901 = vmatpush1.msra.mxu0 %v451
    %2902 = vmatprep.subr.mxu0 %v456
    %2903 = vmatpush1.msra.mxu0 %v455
    %2904 = vmatprep.subr.mxu0 %v460
    %2905 = vmatpush1.msra.mxu0 %v459
    %2906 = vmatprep.subr.mxu0 %v464
    %2907 = vmatpush1.msra.mxu0 %v463
    %2908 = vmatprep.subr.mxu0 %v468
    %2909 = vmatpush1.msra.mxu0 %v467
    %2910 = vmatprep.subr.mxu0 %v472
    %2911 = vmatpush1.msra.mxu0 %v471
    %2912 = vmatprep.subr.mxu0 %v476
    %2913 = vmatpush1.msra.mxu0 %v475
    %2914 = vmatprep.subr.mxu0 %v480
    %2915 = vmatpush1.msra.mxu0 %v479
    %2916 = vmatprep.subr.mxu0 %v484
    %2917 = vmatpush1.msra.mxu0 %v483
    %2918 = vmatprep.subr.mxu0 0.0
    %2919 = vmatpush1.msra.mxu0 0.0
    %2920 = vmatprep.subr.mxu0 0.0
    %2921 = vmatpush1.msra.mxu0 0.0
    %2922 = vmatprep.subr.mxu0 0.0
    %2923 = vmatpush1.msra.mxu0 0.0
    %2924 = vmatprep.subr.mxu0 0.0
    %2925 = vmatpush1.msra.mxu0 0.0
    %2926 = vmatprep.subr.mxu0 0.0
    %2927 = vmatpush1.msra.mxu0 0.0
    %2928 = vmatprep.subr.mxu0 0.0
    %2929 = vmatpush1.msra.mxu0 0.0
    %2930 = vmatprep.subr.mxu0 0.0
    %2931 = vmatpush1.msra.mxu0 0.0
    %2932 = vmatprep.subr.mxu0 0.0
    %2933 = vmatpush1.msra.mxu0 0.0
    %2934 = vmatprep.subr.mxu0 0.0
    %2935 = vmatpush1.msra.mxu0 0.0
    %2936 = vmatprep.subr.mxu0 0.0
    %2937 = vmatpush1.msra.mxu0 0.0
    %2938 = vmatprep.subr.mxu0 0.0
    %2939 = vmatpush1.msra.mxu0 0.0
    %2940 = vmatprep.subr.mxu0 0.0
    %2941 = vmatpush1.msra.mxu0 0.0
    %2942 = vmatprep.subr.mxu0 0.0
    %2943 = vmatpush1.msra.mxu0 0.0
    %2944 = vmatprep.subr.mxu0 0.0
    %2945 = vmatpush1.msra.mxu0 0.0
    %2946 = vmatprep.subr.mxu0 0.0
    %2947 = vmatpush1.msra.mxu0 0.0
    %2948 = vmatprep.subr.mxu0 0.0
    %2949 = vmatpush1.msra.mxu0 0.0
    %2950 = vmatprep.mubr.f32.mxu0 0.0
    %2951 = vmatmul.mubr.f32.gmra.mrb[0].mxu0 %v2813
    %v2952 = vpop.f32.mrb[0].mxu0
    %v2953 = vadd.f32 0.0, %v2952
    %v2954 = vpop.f32.mrb[0].mxu0
    %v2955 = vadd.f32 0.0, %v2954
    %2956 = vdwg.mxu0
    %v2961 = vrot.slane %v2882, 4
    %v2962 = vrot.slane %v2884, 4
    %v2963 = vrot.slane %v2953, 4
    %v2964 = vrot.slane %v2955, 4
    %v2969 = vadd.f32 %v2808, %v2961
    %v2970 = vadd.f32 %v2809, %v2962
    %v2971 = vadd.f32 %v2810, %v2963
    %v2972 = vadd.f32 %v2811, %v2964
    %v2973 = vxor.u32 %v2969, 2147483648
    %v2974 = vmul.f32 %v2973, 1.442695
    %v2975 = vpow.pop %v2974
    %v2976 = vadd.f32 %v2975, 1.0
    %v2977 = vrcp.pop %v2976
    %v2978 = vmul.f32 1.0, %v2977
    %v2979 = vxor.u32 %v2970, 2147483648
    %v2980 = vmul.f32 %v2979, 1.442695
    %v2981 = vpow.pop %v2980
    %v2982 = vadd.f32 %v2981, 1.0
    %v2983 = vrcp.pop %v2982
    %v2984 = vmul.f32 1.0, %v2983
    %v2985 = vtanh.pop %v2971
    %v2986 = vxor.u32 %v2972, 2147483648
    %v2987 = vmul.f32 %v2986, 1.442695
    %v2988 = vpow.pop %v2987
    %v2989 = vadd.f32 %v2988, 1.0
    %v2990 = vrcp.pop %v2989
    %v2991 = vmul.f32 1.0, %v2990
    %v2993 = vrot.slane %v2611, 6
    %v2995 = vmul.f32 %v2984, %v2993
    %v2996 = vmul.f32 %v2978, %v2985
    %v2997 = vadd.f32 %v2995, %v2996
    %v2998 = vtanh.pop %v2997
    %v2999 = vmul.f32 %v2991, %v2998
    %v3000 = vld [vmem:[#allocation3] sm:$0xc]
    %v3001 = vld [vmem:[#allocation3 + $0x8] sm:$0xc]
    %v3002 = vld [vmem:[#allocation3 + $0x10] sm:$0xc]
    %v3003 = vld [vmem:[#allocation3 + $0x18] sm:$0xc]
    %v3005 = vrot.slane %v2805, 4
    %3007 = vmatprep.subr.mxu0 %v486
    %3008 = vmatpush1.msra.mxu0 %v485
    %3009 = vmatprep.subr.mxu0 %v490
    %3010 = vmatpush1.msra.mxu0 %v489
    %3011 = vmatprep.subr.mxu0 %v494
    %3012 = vmatpush1.msra.mxu0 %v493
    %3013 = vmatprep.subr.mxu0 %v498
    %3014 = vmatpush1.msra.mxu0 %v497
    %3015 = vmatprep.subr.mxu0 %v502
    %3016 = vmatpush1.msra.mxu0 %v501
    %3017 = vmatprep.subr.mxu0 %v506
    %3018 = vmatpush1.msra.mxu0 %v505
    %3019 = vmatprep.subr.mxu0 %v510
    %3020 = vmatpush1.msra.mxu0 %v509
    %3021 = vmatprep.subr.mxu0 %v514
    %3022 = vmatpush1.msra.mxu0 %v513
    %3023 = vmatprep.subr.mxu0 %v518
    %3024 = vmatpush1.msra.mxu0 %v517
    %3025 = vmatprep.subr.mxu0 %v522
    %3026 = vmatpush1.msra.mxu0 %v521
    %3027 = vmatprep.subr.mxu0 %v526
    %3028 = vmatpush1.msra.mxu0 %v525
    %3029 = vmatprep.subr.mxu0 %v530
    %3030 = vmatpush1.msra.mxu0 %v529
    %3031 = vmatprep.subr.mxu0 %v534
    %3032 = vmatpush1.msra.mxu0 %v533
    %3033 = vmatprep.subr.mxu0 %v538
    %3034 = vmatpush1.msra.mxu0 %v537
    %3035 = vmatprep.subr.mxu0 %v542
    %3036 = vmatpush1.msra.mxu0 %v541
    %3037 = vmatprep.subr.mxu0 %v546
    %3038 = vmatpush1.msra.mxu0 %v545
    %3039 = vmatprep.subr.mxu0 0.0
    %3040 = vmatpush1.msra.mxu0 0.0
    %3041 = vmatprep.subr.mxu0 0.0
    %3042 = vmatpush1.msra.mxu0 0.0
    %3043 = vmatprep.subr.mxu0 0.0
    %3044 = vmatpush1.msra.mxu0 0.0
    %3045 = vmatprep.subr.mxu0 0.0
    %3046 = vmatpush1.msra.mxu0 0.0
    %3047 = vmatprep.subr.mxu0 0.0
    %3048 = vmatpush1.msra.mxu0 0.0
    %3049 = vmatprep.subr.mxu0 0.0
    %3050 = vmatpush1.msra.mxu0 0.0
    %3051 = vmatprep.subr.mxu0 0.0
    %3052 = vmatpush1.msra.mxu0 0.0
    %3053 = vmatprep.subr.mxu0 0.0
    %3054 = vmatpush1.msra.mxu0 0.0
    %3055 = vmatprep.subr.mxu0 0.0
    %3056 = vmatpush1.msra.mxu0 0.0
    %3057 = vmatprep.subr.mxu0 0.0
    %3058 = vmatpush1.msra.mxu0 0.0
    %3059 = vmatprep.subr.mxu0 0.0
    %3060 = vmatpush1.msra.mxu0 0.0
    %3061 = vmatprep.subr.mxu0 0.0
    %3062 = vmatpush1.msra.mxu0 0.0
    %3063 = vmatprep.subr.mxu0 0.0
    %3064 = vmatpush1.msra.mxu0 0.0
    %3065 = vmatprep.subr.mxu0 0.0
    %3066 = vmatpush1.msra.mxu0 0.0
    %3067 = vmatprep.subr.mxu0 0.0
    %3068 = vmatpush1.msra.mxu0 0.0
    %3069 = vmatprep.subr.mxu0 0.0
    %3070 = vmatpush1.msra.mxu0 0.0
    %3071 = vmatprep.mubr.f32.mxu0 0.0
    %3072 = vmatmul.mubr.f32.gmra.mrb[0].mxu0 %v3005
    %v3073 = vpop.f32.mrb[0].mxu0
    %v3074 = vadd.f32 0.0, %v3073
    %v3075 = vpop.f32.mrb[0].mxu0
    %v3076 = vadd.f32 0.0, %v3075
    %3077 = vdwg.mxu0
    %3078 = vmatprep.subr.mxu0 %v488
    %3079 = vmatpush1.msra.mxu0 %v487
    %3080 = vmatprep.subr.mxu0 %v492
    %3081 = vmatpush1.msra.mxu0 %v491
    %3082 = vmatprep.subr.mxu0 %v496
    %3083 = vmatpush1.msra.mxu0 %v495
    %3084 = vmatprep.subr.mxu0 %v500
    %3085 = vmatpush1.msra.mxu0 %v499
    %3086 = vmatprep.subr.mxu0 %v504
    %3087 = vmatpush1.msra.mxu0 %v503
    %3088 = vmatprep.subr.mxu0 %v508
    %3089 = vmatpush1.msra.mxu0 %v507
    %3090 = vmatprep.subr.mxu0 %v512
    %3091 = vmatpush1.msra.mxu0 %v511
    %3092 = vmatprep.subr.mxu0 %v516
    %3093 = vmatpush1.msra.mxu0 %v515
    %3094 = vmatprep.subr.mxu0 %v520
    %3095 = vmatpush1.msra.mxu0 %v519
    %3096 = vmatprep.subr.mxu0 %v524
    %3097 = vmatpush1.msra.mxu0 %v523
    %3098 = vmatprep.subr.mxu0 %v528
    %3099 = vmatpush1.msra.mxu0 %v527
    %3100 = vmatprep.subr.mxu0 %v532
    %3101 = vmatpush1.msra.mxu0 %v531
    %3102 = vmatprep.subr.mxu0 %v536
    %3103 = vmatpush1.msra.mxu0 %v535
    %3104 = vmatprep.subr.mxu0 %v540
    %3105 = vmatpush1.msra.mxu0 %v539
    %3106 = vmatprep.subr.mxu0 %v544
    %3107 = vmatpush1.msra.mxu0 %v543
    %3108 = vmatprep.subr.mxu0 %v548
    %3109 = vmatpush1.msra.mxu0 %v547
    %3110 = vmatprep.subr.mxu0 0.0
    %3111 = vmatpush1.msra.mxu0 0.0
    %3112 = vmatprep.subr.mxu0 0.0
    %3113 = vmatpush1.msra.mxu0 0.0
    %3114 = vmatprep.subr.mxu0 0.0
    %3115 = vmatpush1.msra.mxu0 0.0
    %3116 = vmatprep.subr.mxu0 0.0
    %3117 = vmatpush1.msra.mxu0 0.0
    %3118 = vmatprep.subr.mxu0 0.0
    %3119 = vmatpush1.msra.mxu0 0.0
    %3120 = vmatprep.subr.mxu0 0.0
    %3121 = vmatpush1.msra.mxu0 0.0
    %3122 = vmatprep.subr.mxu0 0.0
    %3123 = vmatpush1.msra.mxu0 0.0
    %3124 = vmatprep.subr.mxu0 0.0
    %3125 = vmatpush1.msra.mxu0 0.0
    %3126 = vmatprep.subr.mxu0 0.0
    %3127 = vmatpush1.msra.mxu0 0.0
    %3128 = vmatprep.subr.mxu0 0.0
    %3129 = vmatpush1.msra.mxu0 0.0
    %3130 = vmatprep.subr.mxu0 0.0
    %3131 = vmatpush1.msra.mxu0 0.0
    %3132 = vmatprep.subr.mxu0 0.0
    %3133 = vmatpush1.msra.mxu0 0.0
    %3134 = vmatprep.subr.mxu0 0.0
    %3135 = vmatpush1.msra.mxu0 0.0
    %3136 = vmatprep.subr.mxu0 0.0
    %3137 = vmatpush1.msra.mxu0 0.0
    %3138 = vmatprep.subr.mxu0 0.0
    %3139 = vmatpush1.msra.mxu0 0.0
    %3140 = vmatprep.subr.mxu0 0.0
    %3141 = vmatpush1.msra.mxu0 0.0
    %3142 = vmatprep.mubr.f32.mxu0 0.0
    %3143 = vmatmul.mubr.f32.gmra.mrb[0].mxu0 %v3005
    %v3144 = vpop.f32.mrb[0].mxu0
    %v3145 = vadd.f32 0.0, %v3144
    %v3146 = vpop.f32.mrb[0].mxu0
    %v3147 = vadd.f32 0.0, %v3146
    %3148 = vdwg.mxu0
    %v3153 = vrot.slane %v3074, 6
    %v3154 = vrot.slane %v3076, 6
    %v3155 = vrot.slane %v3145, 6
    %v3156 = vrot.slane %v3147, 6
    %v3161 = vadd.f32 %v3000, %v3153
    %v3162 = vadd.f32 %v3001, %v3154
    %v3163 = vadd.f32 %v3002, %v3155
    %v3164 = vadd.f32 %v3003, %v3156
    %v3165 = vxor.u32 %v3161, 2147483648
    %v3166 = vmul.f32 %v3165, 1.442695
    %v3167 = vpow.pop %v3166
    %v3168 = vadd.f32 %v3167, 1.0
    %v3169 = vrcp.pop %v3168
    %v3170 = vmul.f32 1.0, %v3169
    %v3171 = vxor.u32 %v3162, 2147483648
    %v3172 = vmul.f32 %v3171, 1.442695
    %v3173 = vpow.pop %v3172
    %v3174 = vadd.f32 %v3173, 1.0
    %v3175 = vrcp.pop %v3174
    %v3176 = vmul.f32 1.0, %v3175
    %v3177 = vtanh.pop %v3163
    %v3178 = vxor.u32 %v3164, 2147483648
    %v3179 = vmul.f32 %v3178, 1.442695
    %v3180 = vpow.pop %v3179
    %v3181 = vadd.f32 %v3180, 1.0
    %v3182 = vrcp.pop %v3181
    %v3183 = vmul.f32 1.0, %v3182
    %v3185 = vrot.slane %v2803, 2
    %v3187 = vmul.f32 %v3176, %v3185
    %v3188 = vmul.f32 %v3170, %v3177
    %v3189 = vadd.f32 %v3187, %v3188
    %v3190 = vtanh.pop %v3189
    %v3191 = vmul.f32 %v3183, %v3190
    %3192 = vst [vmem:[#allocation4 + $0x8] sm:$0x30] %v2999
    %3193 = vst [vmem:[#allocation5] sm:$0xc] %v3191
    %v3194 = vld [vmem:[#allocation2 + $0x20] sm:$0xc0]
    %v3195 = vld [vmem:[#allocation2 + $0x28] sm:$0xc0]
    %v3196 = vld [vmem:[#allocation2 + $0x30] sm:$0xc0]
    %v3197 = vld [vmem:[#allocation2 + $0x38] sm:$0xc0]
    %v3199 = vrot.slane %v2999, 4
    %3201 = vmatprep.subr.mxu0 %v422
    %3202 = vmatpush1.msra.mxu0 %v421
    %3203 = vmatprep.subr.mxu0 %v426
    %3204 = vmatpush1.msra.mxu0 %v425
    %3205 = vmatprep.subr.mxu0 %v430
    %3206 = vmatpush1.msra.mxu0 %v429
    %3207 = vmatprep.subr.mxu0 %v434
    %3208 = vmatpush1.msra.mxu0 %v433
    %3209 = vmatprep.subr.mxu0 %v438
    %3210 = vmatpush1.msra.mxu0 %v437
    %3211 = vmatprep.subr.mxu0 %v442
    %3212 = vmatpush1.msra.mxu0 %v441
    %3213 = vmatprep.subr.mxu0 %v446
    %3214 = vmatpush1.msra.mxu0 %v445
    %3215 = vmatprep.subr.mxu0 %v450
    %3216 = vmatpush1.msra.mxu0 %v449
    %3217 = vmatprep.subr.mxu0 %v454
    %3218 = vmatpush1.msra.mxu0 %v453
    %3219 = vmatprep.subr.mxu0 %v458
    %3220 = vmatpush1.msra.mxu0 %v457
    %3221 = vmatprep.subr.mxu0 %v462
    %3222 = vmatpush1.msra.mxu0 %v461
    %3223 = vmatprep.subr.mxu0 %v466
    %3224 = vmatpush1.msra.mxu0 %v465
    %3225 = vmatprep.subr.mxu0 %v470
    %3226 = vmatpush1.msra.mxu0 %v469
    %3227 = vmatprep.subr.mxu0 %v474
    %3228 = vmatpush1.msra.mxu0 %v473
    %3229 = vmatprep.subr.mxu0 %v478
    %3230 = vmatpush1.msra.mxu0 %v477
    %3231 = vmatprep.subr.mxu0 %v482
    %3232 = vmatpush1.msra.mxu0 %v481
    %3233 = vmatprep.subr.mxu0 0.0
    %3234 = vmatpush1.msra.mxu0 0.0
    %3235 = vmatprep.subr.mxu0 0.0
    %3236 = vmatpush1.msra.mxu0 0.0
    %3237 = vmatprep.subr.mxu0 0.0
    %3238 = vmatpush1.msra.mxu0 0.0
    %3239 = vmatprep.subr.mxu0 0.0
    %3240 = vmatpush1.msra.mxu0 0.0
    %3241 = vmatprep.subr.mxu0 0.0
    %3242 = vmatpush1.msra.mxu0 0.0
    %3243 = vmatprep.subr.mxu0 0.0
    %3244 = vmatpush1.msra.mxu0 0.0
    %3245 = vmatprep.subr.mxu0 0.0
    %3246 = vmatpush1.msra.mxu0 0.0
    %3247 = vmatprep.subr.mxu0 0.0
    %3248 = vmatpush1.msra.mxu0 0.0
    %3249 = vmatprep.subr.mxu0 0.0
    %3250 = vmatpush1.msra.mxu0 0.0
    %3251 = vmatprep.subr.mxu0 0.0
    %3252 = vmatpush1.msra.mxu0 0.0
    %3253 = vmatprep.subr.mxu0 0.0
    %3254 = vmatpush1.msra.mxu0 0.0
    %3255 = vmatprep.subr.mxu0 0.0
    %3256 = vmatpush1.msra.mxu0 0.0
    %3257 = vmatprep.subr.mxu0 0.0
    %3258 = vmatpush1.msra.mxu0 0.0
    %3259 = vmatprep.subr.mxu0 0.0
    %3260 = vmatpush1.msra.mxu0 0.0
    %3261 = vmatprep.subr.mxu0 0.0
    %3262 = vmatpush1.msra.mxu0 0.0
    %3263 = vmatprep.subr.mxu0 0.0
    %3264 = vmatpush1.msra.mxu0 0.0
    %3265 = vmatprep.mubr.f32.mxu0 0.0
    %3266 = vmatmul.mubr.f32.gmra.mrb[0].mxu0 %v3199
    %v3267 = vpop.f32.mrb[0].mxu0
    %v3268 = vadd.f32 0.0, %v3267
    %v3269 = vpop.f32.mrb[0].mxu0
    %v3270 = vadd.f32 0.0, %v3269
    %3271 = vdwg.mxu0
    %3272 = vmatprep.subr.mxu0 %v424
    %3273 = vmatpush1.msra.mxu0 %v423
    %3274 = vmatprep.subr.mxu0 %v428
    %3275 = vmatpush1.msra.mxu0 %v427
    %3276 = vmatprep.subr.mxu0 %v432
    %3277 = vmatpush1.msra.mxu0 %v431
    %3278 = vmatprep.subr.mxu0 %v436
    %3279 = vmatpush1.msra.mxu0 %v435
    %3280 = vmatprep.subr.mxu0 %v440
    %3281 = vmatpush1.msra.mxu0 %v439
    %3282 = vmatprep.subr.mxu0 %v444
    %3283 = vmatpush1.msra.mxu0 %v443
    %3284 = vmatprep.subr.mxu0 %v448
    %3285 = vmatpush1.msra.mxu0 %v447
    %3286 = vmatprep.subr.mxu0 %v452
    %3287 = vmatpush1.msra.mxu0 %v451
    %3288 = vmatprep.subr.mxu0 %v456
    %3289 = vmatpush1.msra.mxu0 %v455
    %3290 = vmatprep.subr.mxu0 %v460
    %3291 = vmatpush1.msra.mxu0 %v459
    %3292 = vmatprep.subr.mxu0 %v464
    %3293 = vmatpush1.msra.mxu0 %v463
    %3294 = vmatprep.subr.mxu0 %v468
    %3295 = vmatpush1.msra.mxu0 %v467
    %3296 = vmatprep.subr.mxu0 %v472
    %3297 = vmatpush1.msra.mxu0 %v471
    %3298 = vmatprep.subr.mxu0 %v476
    %3299 = vmatpush1.msra.mxu0 %v475
    %3300 = vmatprep.subr.mxu0 %v480
    %3301 = vmatpush1.msra.mxu0 %v479
    %3302 = vmatprep.subr.mxu0 %v484
    %3303 = vmatpush1.msra.mxu0 %v483
    %3304 = vmatprep.subr.mxu0 0.0
    %3305 = vmatpush1.msra.mxu0 0.0
    %3306 = vmatprep.subr.mxu0 0.0
    %3307 = vmatpush1.msra.mxu0 0.0
    %3308 = vmatprep.subr.mxu0 0.0
    %3309 = vmatpush1.msra.mxu0 0.0
    %3310 = vmatprep.subr.mxu0 0.0
    %3311 = vmatpush1.msra.mxu0 0.0
    %3312 = vmatprep.subr.mxu0 0.0
    %3313 = vmatpush1.msra.mxu0 0.0
    %3314 = vmatprep.subr.mxu0 0.0
    %3315 = vmatpush1.msra.mxu0 0.0
    %3316 = vmatprep.subr.mxu0 0.0
    %3317 = vmatpush1.msra.mxu0 0.0
    %3318 = vmatprep.subr.mxu0 0.0
    %3319 = vmatpush1.msra.mxu0 0.0
    %3320 = vmatprep.subr.mxu0 0.0
    %3321 = vmatpush1.msra.mxu0 0.0
    %3322 = vmatprep.subr.mxu0 0.0
    %3323 = vmatpush1.msra.mxu0 0.0
    %3324 = vmatprep.subr.mxu0 0.0
    %3325 = vmatpush1.msra.mxu0 0.0
    %3326 = vmatprep.subr.mxu0 0.0
    %3327 = vmatpush1.msra.mxu0 0.0
    %3328 = vmatprep.subr.mxu0 0.0
    %3329 = vmatpush1.msra.mxu0 0.0
    %3330 = vmatprep.subr.mxu0 0.0
    %3331 = vmatpush1.msra.mxu0 0.0
    %3332 = vmatprep.subr.mxu0 0.0
    %3333 = vmatpush1.msra.mxu0 0.0
    %3334 = vmatprep.subr.mxu0 0.0
    %3335 = vmatpush1.msra.mxu0 0.0
    %3336 = vmatprep.mubr.f32.mxu0 0.0
    %3337 = vmatmul.mubr.f32.gmra.mrb[0].mxu0 %v3199
    %v3338 = vpop.f32.mrb[0].mxu0
    %v3339 = vadd.f32 0.0, %v3338
    %v3340 = vpop.f32.mrb[0].mxu0
    %v3341 = vadd.f32 0.0, %v3340
    %3342 = vdwg.mxu0
    %v3347 = vrot.slane %v3268, 2
    %v3348 = vrot.slane %v3270, 2
    %v3349 = vrot.slane %v3339, 2
    %v3350 = vrot.slane %v3341, 2
    %v3355 = vadd.f32 %v3194, %v3347
    %v3356 = vadd.f32 %v3195, %v3348
    %v3357 = vadd.f32 %v3196, %v3349
    %v3358 = vadd.f32 %v3197, %v3350
    %v3359 = vxor.u32 %v3355, 2147483648
    %v3360 = vmul.f32 %v3359, 1.442695
    %v3361 = vpow.pop %v3360
    %v3362 = vadd.f32 %v3361, 1.0
    %v3363 = vrcp.pop %v3362
    %v3364 = vmul.f32 1.0, %v3363
    %v3365 = vxor.u32 %v3356, 2147483648
    %v3366 = vmul.f32 %v3365, 1.442695
    %v3367 = vpow.pop %v3366
    %v3368 = vadd.f32 %v3367, 1.0
    %v3369 = vrcp.pop %v3368
    %v3370 = vmul.f32 1.0, %v3369
    %v3371 = vtanh.pop %v3357
    %v3372 = vxor.u32 %v3358, 2147483648
    %v3373 = vmul.f32 %v3372, 1.442695
    %v3374 = vpow.pop %v3373
    %v3375 = vadd.f32 %v3374, 1.0
    %v3376 = vrcp.pop %v3375
    %v3377 = vmul.f32 1.0, %v3376
    %v3379 = vrot.slane %v2997, 6
    %v3381 = vmul.f32 %v3370, %v3379
    %v3382 = vmul.f32 %v3364, %v3371
    %v3383 = vadd.f32 %v3381, %v3382
    %v3384 = vtanh.pop %v3383
    %v3385 = vmul.f32 %v3377, %v3384
    %v3386 = vld [vmem:[#allocation3] sm:$0x3]
    %v3387 = vld [vmem:[#allocation3 + $0x8] sm:$0x3]
    %v3388 = vld [vmem:[#allocation3 + $0x10] sm:$0x3]
    %v3389 = vld [vmem:[#allocation3 + $0x18] sm:$0x3]
    %v3391 = vrot.slane %v3191, 2
    %3393 = vmatprep.subr.mxu0 %v486
    %3394 = vmatpush1.msra.mxu0 %v485
    %3395 = vmatprep.subr.mxu0 %v490
    %3396 = vmatpush1.msra.mxu0 %v489
    %3397 = vmatprep.subr.mxu0 %v494
    %3398 = vmatpush1.msra.mxu0 %v493
    %3399 = vmatprep.subr.mxu0 %v498
    %3400 = vmatpush1.msra.mxu0 %v497
    %3401 = vmatprep.subr.mxu0 %v502
    %3402 = vmatpush1.msra.mxu0 %v501
    %3403 = vmatprep.subr.mxu0 %v506
    %3404 = vmatpush1.msra.mxu0 %v505
    %3405 = vmatprep.subr.mxu0 %v510
    %3406 = vmatpush1.msra.mxu0 %v509
    %3407 = vmatprep.subr.mxu0 %v514
    %3408 = vmatpush1.msra.mxu0 %v513
    %3409 = vmatprep.subr.mxu0 %v518
    %3410 = vmatpush1.msra.mxu0 %v517
    %3411 = vmatprep.subr.mxu0 %v522
    %3412 = vmatpush1.msra.mxu0 %v521
    %3413 = vmatprep.subr.mxu0 %v526
    %3414 = vmatpush1.msra.mxu0 %v525
    %3415 = vmatprep.subr.mxu0 %v530
    %3416 = vmatpush1.msra.mxu0 %v529
    %3417 = vmatprep.subr.mxu0 %v534
    %3418 = vmatpush1.msra.mxu0 %v533
    %3419 = vmatprep.subr.mxu0 %v538
    %3420 = vmatpush1.msra.mxu0 %v537
    %3421 = vmatprep.subr.mxu0 %v542
    %3422 = vmatpush1.msra.mxu0 %v541
    %3423 = vmatprep.subr.mxu0 %v546
    %3424 = vmatpush1.msra.mxu0 %v545
    %3425 = vmatprep.subr.mxu0 0.0
    %3426 = vmatpush1.msra.mxu0 0.0
    %3427 = vmatprep.subr.mxu0 0.0
    %3428 = vmatpush1.msra.mxu0 0.0
    %3429 = vmatprep.subr.mxu0 0.0
    %3430 = vmatpush1.msra.mxu0 0.0
    %3431 = vmatprep.subr.mxu0 0.0
    %3432 = vmatpush1.msra.mxu0 0.0
    %3433 = vmatprep.subr.mxu0 0.0
    %3434 = vmatpush1.msra.mxu0 0.0
    %3435 = vmatprep.subr.mxu0 0.0
    %3436 = vmatpush1.msra.mxu0 0.0
    %3437 = vmatprep.subr.mxu0 0.0
    %3438 = vmatpush1.msra.mxu0 0.0
    %3439 = vmatprep.subr.mxu0 0.0
    %3440 = vmatpush1.msra.mxu0 0.0
    %3441 = vmatprep.subr.mxu0 0.0
    %3442 = vmatpush1.msra.mxu0 0.0
    %3443 = vmatprep.subr.mxu0 0.0
    %3444 = vmatpush1.msra.mxu0 0.0
    %3445 = vmatprep.subr.mxu0 0.0
    %3446 = vmatpush1.msra.mxu0 0.0
    %3447 = vmatprep.subr.mxu0 0.0
    %3448 = vmatpush1.msra.mxu0 0.0
    %3449 = vmatprep.subr.mxu0 0.0
    %3450 = vmatpush1.msra.mxu0 0.0
    %3451 = vmatprep.subr.mxu0 0.0
    %3452 = vmatpush1.msra.mxu0 0.0
    %3453 = vmatprep.subr.mxu0 0.0
    %3454 = vmatpush1.msra.mxu0 0.0
    %3455 = vmatprep.subr.mxu0 0.0
    %3456 = vmatpush1.msra.mxu0 0.0
    %3457 = vmatprep.mubr.f32.mxu0 0.0
    %3458 = vmatmul.mubr.f32.gmra.mrb[0].mxu0 %v3391
    %v3459 = vpop.f32.mrb[0].mxu0
    %v3460 = vadd.f32 0.0, %v3459
    %v3461 = vpop.f32.mrb[0].mxu0
    %v3462 = vadd.f32 0.0, %v3461
    %3463 = vdwg.mxu0
    %3464 = vmatprep.subr.mxu0 %v488
    %3465 = vmatpush1.msra.mxu0 %v487
    %3466 = vmatprep.subr.mxu0 %v492
    %3467 = vmatpush1.msra.mxu0 %v491
    %3468 = vmatprep.subr.mxu0 %v496
    %3469 = vmatpush1.msra.mxu0 %v495
    %3470 = vmatprep.subr.mxu0 %v500
    %3471 = vmatpush1.msra.mxu0 %v499
    %3472 = vmatprep.subr.mxu0 %v504
    %3473 = vmatpush1.msra.mxu0 %v503
    %3474 = vmatprep.subr.mxu0 %v508
    %3475 = vmatpush1.msra.mxu0 %v507
    %3476 = vmatprep.subr.mxu0 %v512
    %3477 = vmatpush1.msra.mxu0 %v511
    %3478 = vmatprep.subr.mxu0 %v516
    %3479 = vmatpush1.msra.mxu0 %v515
    %3480 = vmatprep.subr.mxu0 %v520
    %3481 = vmatpush1.msra.mxu0 %v519
    %3482 = vmatprep.subr.mxu0 %v524
    %3483 = vmatpush1.msra.mxu0 %v523
    %3484 = vmatprep.subr.mxu0 %v528
    %3485 = vmatpush1.msra.mxu0 %v527
    %3486 = vmatprep.subr.mxu0 %v532
    %3487 = vmatpush1.msra.mxu0 %v531
    %3488 = vmatprep.subr.mxu0 %v536
    %3489 = vmatpush1.msra.mxu0 %v535
    %3490 = vmatprep.subr.mxu0 %v540
    %3491 = vmatpush1.msra.mxu0 %v539
    %3492 = vmatprep.subr.mxu0 %v544
    %3493 = vmatpush1.msra.mxu0 %v543
    %3494 = vmatprep.subr.mxu0 %v548
    %3495 = vmatpush1.msra.mxu0 %v547
    %3496 = vmatprep.subr.mxu0 0.0
    %3497 = vmatpush1.msra.mxu0 0.0
    %3498 = vmatprep.subr.mxu0 0.0
    %3499 = vmatpush1.msra.mxu0 0.0
    %3500 = vmatprep.subr.mxu0 0.0
    %3501 = vmatpush1.msra.mxu0 0.0
    %3502 = vmatprep.subr.mxu0 0.0
    %3503 = vmatpush1.msra.mxu0 0.0
    %3504 = vmatprep.subr.mxu0 0.0
    %3505 = vmatpush1.msra.mxu0 0.0
    %3506 = vmatprep.subr.mxu0 0.0
    %3507 = vmatpush1.msra.mxu0 0.0
    %3508 = vmatprep.subr.mxu0 0.0
    %3509 = vmatpush1.msra.mxu0 0.0
    %3510 = vmatprep.subr.mxu0 0.0
    %3511 = vmatpush1.msra.mxu0 0.0
    %3512 = vmatprep.subr.mxu0 0.0
    %3513 = vmatpush1.msra.mxu0 0.0
    %3514 = vmatprep.subr.mxu0 0.0
    %3515 = vmatpush1.msra.mxu0 0.0
    %3516 = vmatprep.subr.mxu0 0.0
    %3517 = vmatpush1.msra.mxu0 0.0
    %3518 = vmatprep.subr.mxu0 0.0
    %3519 = vmatpush1.msra.mxu0 0.0
    %3520 = vmatprep.subr.mxu0 0.0
    %3521 = vmatpush1.msra.mxu0 0.0
    %3522 = vmatprep.subr.mxu0 0.0
    %3523 = vmatpush1.msra.mxu0 0.0
    %3524 = vmatprep.subr.mxu0 0.0
    %3525 = vmatpush1.msra.mxu0 0.0
    %3526 = vmatprep.subr.mxu0 0.0
    %3527 = vmatpush1.msra.mxu0 0.0
    %3528 = vmatprep.mubr.f32.mxu0 0.0
    %3529 = vmatmul.mubr.f32.gmra.mrb[0].mxu0 %v3391
    %v3530 = vpop.f32.mrb[0].mxu0
    %v3531 = vadd.f32 0.0, %v3530
    %v3532 = vpop.f32.mrb[0].mxu0
    %v3533 = vadd.f32 0.0, %v3532
    %3534 = vdwg.mxu0
    %v3535 = vadd.f32 %v3386, %v3460
    %v3536 = vadd.f32 %v3387, %v3462
    %v3537 = vadd.f32 %v3388, %v3531
    %v3538 = vadd.f32 %v3389, %v3533
    %v3539 = vxor.u32 %v3535, 2147483648
    %v3540 = vmul.f32 %v3539, 1.442695
    %v3541 = vpow.pop %v3540
    %v3542 = vadd.f32 %v3541, 1.0
    %v3543 = vrcp.pop %v3542
    %v3544 = vmul.f32 1.0, %v3543
    %v3545 = vxor.u32 %v3536, 2147483648
    %v3546 = vmul.f32 %v3545, 1.442695
    %v3547 = vpow.pop %v3546
    %v3548 = vadd.f32 %v3547, 1.0
    %v3549 = vrcp.pop %v3548
    %v3550 = vmul.f32 1.0, %v3549
    %v3551 = vtanh.pop %v3537
    %v3552 = vxor.u32 %v3538, 2147483648
    %v3553 = vmul.f32 %v3552, 1.442695
    %v3554 = vpow.pop %v3553
    %v3555 = vadd.f32 %v3554, 1.0
    %v3556 = vrcp.pop %v3555
    %v3557 = vmul.f32 1.0, %v3556
    %v3559 = vrot.slane %v3189, 2
    %v3561 = vmul.f32 %v3550, %v3559
    %v3562 = vmul.f32 %v3544, %v3551
    %v3563 = vadd.f32 %v3561, %v3562
    %v3564 = vtanh.pop %v3563
    %v3565 = vmul.f32 %v3557, %v3564
    %3566 = vst [vmem:[#allocation4 + $0x8] sm:$0xc0] %v3385
    %3567 = vst [vmem:[#allocation5] sm:$0x3] %v3565
    %v3568 = vld [vmem:[#allocation4] sm:$0xff]
    %v3569 = vld [vmem:[#allocation4 + $0x8] sm:$0xff]
    %v3570 = vld [vmem:[%s5] sm:$0xff]
    %v3571 = vld [vmem:[%s5 + $0x8] sm:$0xff]
    %v3572 = vld [vmem:[%s5 + $0x10] sm:$0xff]
    %v3573 = vld [vmem:[%s5 + $0x18] sm:$0xff]
    %v3574 = vld [vmem:[%s5 + $0x20] sm:$0xff]
    %v3575 = vld [vmem:[%s5 + $0x28] sm:$0xff]
    %v3576 = vld [vmem:[%s5 + $0x30] sm:$0xff]
    %v3577 = vld [vmem:[%s5 + $0x38] sm:$0xff]
    %v3578 = vld [vmem:[%s5 + $0x40] sm:$0xff]
    %v3579 = vld [vmem:[%s5 + $0x48] sm:$0xff]
    %v3580 = vld [vmem:[%s5 + $0x50] sm:$0xff]
    %v3581 = vld [vmem:[%s5 + $0x58] sm:$0xff]
    %v3582 = vld [vmem:[%s5 + $0x60] sm:$0xff]
    %v3583 = vld [vmem:[%s5 + $0x68] sm:$0xff]
    %v3584 = vld [vmem:[%s5 + $0x70] sm:$0xff]
    %v3585 = vld [vmem:[%s5 + $0x78] sm:$0xff]
    %v3586 = vld [vmem:[#allocation5] sm:$0xff]
    %v3587 = vld [vmem:[#allocation5 + $0x8] sm:$0xff]
    %v3588 = vld [vmem:[%s6] sm:$0xff]
    %v3589 = vld [vmem:[%s6 + $0x8] sm:$0xff]
    %v3590 = vld [vmem:[%s6 + $0x10] sm:$0xff]
    %v3591 = vld [vmem:[%s6 + $0x18] sm:$0xff]
    %v3592 = vld [vmem:[%s6 + $0x20] sm:$0xff]
    %v3593 = vld [vmem:[%s6 + $0x28] sm:$0xff]
    %v3594 = vld [vmem:[%s6 + $0x30] sm:$0xff]
    %v3595 = vld [vmem:[%s6 + $0x38] sm:$0xff]
    %v3596 = vld [vmem:[%s6 + $0x40] sm:$0xff]
    %v3597 = vld [vmem:[%s6 + $0x48] sm:$0xff]
    %v3598 = vld [vmem:[%s6 + $0x50] sm:$0xff]
    %v3599 = vld [vmem:[%s6 + $0x58] sm:$0xff]
    %v3600 = vld [vmem:[%s6 + $0x60] sm:$0xff]
    %v3601 = vld [vmem:[%s6 + $0x68] sm:$0xff]
    %v3602 = vld [vmem:[%s6 + $0x70] sm:$0xff]
    %v3603 = vld [vmem:[%s6 + $0x78] sm:$0xff]
    %3604 = vmatprep.subr.mxu0 0.0
    %3605 = vmatpush1.msra.mxu0 %v3588
    %3606 = vmatprep.subr.mxu0 0.0
    %3607 = vmatpush1.msra.mxu0 %v3589
    %3608 = vmatprep.subr.mxu0 0.0
    %3609 = vmatpush1.msra.mxu0 %v3590
    %3610 = vmatprep.subr.mxu0 0.0
    %3611 = vmatpush1.msra.mxu0 %v3591
    %3612 = vmatprep.subr.mxu0 0.0
    %3613 = vmatpush1.msra.mxu0 %v3592
    %3614 = vmatprep.subr.mxu0 0.0
    %3615 = vmatpush1.msra.mxu0 %v3593
    %3616 = vmatprep.subr.mxu0 0.0
    %3617 = vmatpush1.msra.mxu0 %v3594
    %3618 = vmatprep.subr.mxu0 0.0
    %3619 = vmatpush1.msra.mxu0 %v3595
    %3620 = vmatprep.subr.mxu0 0.0
    %3621 = vmatpush1.msra.mxu0 %v3596
    %3622 = vmatprep.subr.mxu0 0.0
    %3623 = vmatpush1.msra.mxu0 %v3597
    %3624 = vmatprep.subr.mxu0 0.0
    %3625 = vmatpush1.msra.mxu0 %v3598
    %3626 = vmatprep.subr.mxu0 0.0
    %3627 = vmatpush1.msra.mxu0 %v3599
    %3628 = vmatprep.subr.mxu0 0.0
    %3629 = vmatpush1.msra.mxu0 %v3600
    %3630 = vmatprep.subr.mxu0 0.0
    %3631 = vmatpush1.msra.mxu0 %v3601
    %3632 = vmatprep.subr.mxu0 0.0
    %3633 = vmatpush1.msra.mxu0 %v3602
    %3634 = vmatprep.subr.mxu0 0.0
    %3635 = vmatpush1.msra.mxu0 %v3603
    %3636 = vmatprep.subr.mxu0 0.0
    %3637 = vmatpush1.msra.mxu0 0.0
    %3638 = vmatprep.subr.mxu0 0.0
    %3639 = vmatpush1.msra.mxu0 0.0
    %3640 = vmatprep.subr.mxu0 0.0
    %3641 = vmatpush1.msra.mxu0 0.0
    %3642 = vmatprep.subr.mxu0 0.0
    %3643 = vmatpush1.msra.mxu0 0.0
    %3644 = vmatprep.subr.mxu0 0.0
    %3645 = vmatpush1.msra.mxu0 0.0
    %3646 = vmatprep.subr.mxu0 0.0
    %3647 = vmatpush1.msra.mxu0 0.0
    %3648 = vmatprep.subr.mxu0 0.0
    %3649 = vmatpush1.msra.mxu0 0.0
    %3650 = vmatprep.subr.mxu0 0.0
    %3651 = vmatpush1.msra.mxu0 0.0
    %3652 = vmatprep.subr.mxu0 0.0
    %3653 = vmatpush1.msra.mxu0 0.0
    %3654 = vmatprep.subr.mxu0 0.0
    %3655 = vmatpush1.msra.mxu0 0.0
    %3656 = vmatprep.subr.mxu0 0.0
    %3657 = vmatpush1.msra.mxu0 0.0
    %3658 = vmatprep.subr.mxu0 0.0
    %3659 = vmatpush1.msra.mxu0 0.0
    %3660 = vmatprep.subr.mxu0 0.0
    %3661 = vmatpush1.msra.mxu0 0.0
    %3662 = vmatprep.subr.mxu0 0.0
    %3663 = vmatpush1.msra.mxu0 0.0
    %3664 = vmatprep.subr.mxu0 0.0
    %3665 = vmatpush1.msra.mxu0 0.0
    %3666 = vmatprep.subr.mxu0 0.0
    %3667 = vmatpush1.msra.mxu0 0.0
    %3668 = vmatprep.mubr.f32.mxu0 0.0
    %3669 = vmatmul.mubr.f32.gmra.mrb[0].mxu0 %v3586
    %v3670 = vpop.f32.mrb[0].mxu0
    %v3671 = vadd.f32 0.0, %v3670
    %v3672 = vpop.f32.mrb[0].mxu0
    %3673 = vmatprep.mubr.f32.mxu0 0.0
    %3674 = vmatmul.mubr.f32.gmra.mrb[0].mxu0 %v3587
    %v3675 = vpop.f32.mrb[0].mxu0
    %v3676 = vadd.f32 0.0, %v3675
    %v3677 = vpop.f32.mrb[0].mxu0
    %3678 = vdwg.mxu0
    %3679 = vmatprep.subr.mxu0 0.0
    %3680 = vmatpush1.msra.mxu0 %v3570
    %3681 = vmatprep.subr.mxu0 0.0
    %3682 = vmatpush1.msra.mxu0 %v3571
    %3683 = vmatprep.subr.mxu0 0.0
    %3684 = vmatpush1.msra.mxu0 %v3572
    %3685 = vmatprep.subr.mxu0 0.0
    %3686 = vmatpush1.msra.mxu0 %v3573
    %3687 = vmatprep.subr.mxu0 0.0
    %3688 = vmatpush1.msra.mxu0 %v3574
    %3689 = vmatprep.subr.mxu0 0.0
    %3690 = vmatpush1.msra.mxu0 %v3575
    %3691 = vmatprep.subr.mxu0 0.0
    %3692 = vmatpush1.msra.mxu0 %v3576
    %3693 = vmatprep.subr.mxu0 0.0
    %3694 = vmatpush1.msra.mxu0 %v3577
    %3695 = vmatprep.subr.mxu0 0.0
    %3696 = vmatpush1.msra.mxu0 %v3578
    %3697 = vmatprep.subr.mxu0 0.0
    %3698 = vmatpush1.msra.mxu0 %v3579
    %3699 = vmatprep.subr.mxu0 0.0
    %3700 = vmatpush1.msra.mxu0 %v3580
    %3701 = vmatprep.subr.mxu0 0.0
    %3702 = vmatpush1.msra.mxu0 %v3581
    %3703 = vmatprep.subr.mxu0 0.0
    %3704 = vmatpush1.msra.mxu0 %v3582
    %3705 = vmatprep.subr.mxu0 0.0
    %3706 = vmatpush1.msra.mxu0 %v3583
    %3707 = vmatprep.subr.mxu0 0.0
    %3708 = vmatpush1.msra.mxu0 %v3584
    %3709 = vmatprep.subr.mxu0 0.0
    %3710 = vmatpush1.msra.mxu0 %v3585
    %3711 = vmatprep.subr.mxu0 0.0
    %3712 = vmatpush1.msra.mxu0 0.0
    %3713 = vmatprep.subr.mxu0 0.0
    %3714 = vmatpush1.msra.mxu0 0.0
    %3715 = vmatprep.subr.mxu0 0.0
    %3716 = vmatpush1.msra.mxu0 0.0
    %3717 = vmatprep.subr.mxu0 0.0
    %3718 = vmatpush1.msra.mxu0 0.0
    %3719 = vmatprep.subr.mxu0 0.0
    %3720 = vmatpush1.msra.mxu0 0.0
    %3721 = vmatprep.subr.mxu0 0.0
    %3722 = vmatpush1.msra.mxu0 0.0
    %3723 = vmatprep.subr.mxu0 0.0
    %3724 = vmatpush1.msra.mxu0 0.0
    %3725 = vmatprep.subr.mxu0 0.0
    %3726 = vmatpush1.msra.mxu0 0.0
    %3727 = vmatprep.subr.mxu0 0.0
    %3728 = vmatpush1.msra.mxu0 0.0
    %3729 = vmatprep.subr.mxu0 0.0
    %3730 = vmatpush1.msra.mxu0 0.0
    %3731 = vmatprep.subr.mxu0 0.0
    %3732 = vmatpush1.msra.mxu0 0.0
    %3733 = vmatprep.subr.mxu0 0.0
    %3734 = vmatpush1.msra.mxu0 0.0
    %3735 = vmatprep.subr.mxu0 0.0
    %3736 = vmatpush1.msra.mxu0 0.0
    %3737 = vmatprep.subr.mxu0 0.0
    %3738 = vmatpush1.msra.mxu0 0.0
    %3739 = vmatprep.subr.mxu0 0.0
    %3740 = vmatpush1.msra.mxu0 0.0
    %3741 = vmatprep.subr.mxu0 0.0
    %3742 = vmatpush1.msra.mxu0 0.0
    %3743 = vmatprep.mubr.f32.mxu0 0.0
    %3744 = vmatmul.mubr.f32.gmra.mrb[0].mxu0 %v3568
    %v3745 = vpop.f32.mrb[0].mxu0
    %v3746 = vadd.f32 %v3671, %v3745
    %v3747 = vpop.f32.mrb[0].mxu0
    %3748 = vmatprep.mubr.f32.mxu0 0.0
    %3749 = vmatmul.mubr.f32.gmra.mrb[0].mxu0 %v3569
    %v3750 = vpop.f32.mrb[0].mxu0
    %v3751 = vadd.f32 %v3676, %v3750
    %v3752 = vpop.f32.mrb[0].mxu0
    %3753 = vdwg.mxu0
    %v3754 = vld [vmem:[%s7] sm:$0x1]
    %v3756 = vlaneseq
    %v3757 = vshrl.u32 %v3756, 7
    %v3758 = vsub.s32 0, %v3757
    %v3759 = vrot.slane %v3754, %v3758
    %v3761 = vadd.f32 %v3746, %v3759
    %v3762 = vadd.f32 %v3751, %v3759
    %3763 = vst [vmem:[#allocation6] sm:$0xff] %v3761
    %3764 = vst [vmem:[#allocation6 + $0x8] sm:$0xff] %v3762
    // Predicated region
    $region34: #{bidirectional_lstm.1} parent=1 // pred_check
      _
    $region35: #{bidirectional_lstm.1} parent=1 // pred_check_branch
      %3766 = sbr.rel (0) target = $region37
    $region36: #{bidirectional_lstm.1} parent=1 // pred_region
      %s3768 = ssub.s32 256, 256
      %3769 = vsyncadd [#allocation7], %s3768
      %s3770 = sshll.u32 [#allocation6], 4
      %s3771 = int_to_ptr.vmem [resolvable:$true] %s3770
      %3776 = dma.vmem_to_hbm [thread:$0]  %s3771, 256, %s8, [#allocation7], 128, 128, 8
    $region37: #{bidirectional_lstm.1} parent=1 // pred_fallthru
      _
    // Predicated region
    $region38: #{bidirectional_lstm.1} parent=1 // pred_check
      _
    $region39: #{bidirectional_lstm.1} parent=1 // pred_check_branch
      %3778 = sbr.rel (0) target = $region41
    $region40: #{bidirectional_lstm.1} parent=1 // pred_region
      %3779 = dma.done [#allocation7], 256
    $region41: #{bidirectional_lstm.1} parent=1 // pred_fallthru
      _
    %3780 = vsyncpa [#allocation7], 1

</llo_original>
